<compile_context>
chip_gen: v5e
topology: v5e:2x2
jax: 0.10.0
libtpu: 0.0.40
codegen_flags: <defaults>
</compile_context>

<pallas_src>
import functools

import jax
import jax.numpy as jnp
from jax import lax
from jax.experimental import pallas as pl
from jax.experimental.pallas import tpu as pltpu


def _round_up(x, m):
    return (x + m - 1) // m * m


def _chip_has_multiple_tensorcores():
    """True on chips whose TensorCores are fed by the 'parallel' grid axis (v4/v5p/v7x)."""
    try:
        kind = jax.devices()[0].device_kind.lower()
    except Exception:
        return False
    return any(tag in kind for tag in ("v4", "v5p", "7"))


_MULTI_TC = _chip_has_multiple_tensorcores()


def _pick_tk(kp, m):
    """K tile: bounded static unroll; fatter tiles for tiny-M (overhead-bound) layers."""
    if m <= 64:
        for cand in (512, 384, 256, 128):
            if kp % cand == 0:
                return cand
    for cand in (256, 128):
        if kp % cand == 0:
            return cand
    return 128


def _pick_tc(cout, multi_tc):
    """Cout tile.  Single-TC chips: as wide as possible (256).  Multi-TC chips: keep
    >=2 Cout blocks so the 'parallel' grid axis gives both TensorCores work."""
    if cout <= 128:
        return cout
    if cout % 256 == 0:
        if multi_tc and cout == 256:
            return 128
        return 256
    return 128


def _pick_rows(m):
    """Row-slab width.  Wider slabs amortize the per-k narrow loads over more output
    vregs; padding waste grows with slab width.  Simple cost model: padded rows times
    (1 + fixed-per-k-cost shared across rows/8 row-vregs)."""
    best_rows, best_cost = 8, None
    for rows in (32, 24, 16, 8):
        mp = _round_up(m, rows)
        cost = mp * (1.0 + 1.0 / (rows // 8))
        if best_cost is None or cost <= best_cost:
            best_cost, best_rows = cost, rows
    return best_rows


# ---------------------------------------------------------------------------
# Fused adder2d (+ ReLU + BatchNorm) kernel.
#   grid = (Cout tiles [parallel], K tiles [arbitrary / reduction]).
#   x block:  (Mp, tk)    w block: (tk, tc)    gamma/beta: (1, tc)
#   output block (Mp, tc) is resident across the k axis and used as accumulator.
# ---------------------------------------------------------------------------
def _adder_relu_bn_kernel(x_ref, wt_ref, g_ref, b_ref, o_ref, *,
                          tk, tc, rows, m_valid, with_relu, with_bn, eps):
    k_step = pl.program_id(1)

    @pl.when(k_step == 0)
    def _init():
        o_ref[...] = jnp.zeros_like(o_ref)

    mp = o_ref.shape[0]
    n_row_blocks = mp // rows
    # One accumulator is enough once the slab spans >=4 vregs (each vreg is its own
    # independent add chain); keep two for the tiny tail/test cases to preserve ILP.
    n_acc = 1 if (rows // 8) * max(tc // 128, 1) >= 4 else 2

    def row_body(rb, carry):
        r = pl.multiple_of(rb * rows, rows)
        accs = [jnp.zeros((rows, tc), jnp.float32) for _ in range(n_acc)]
        # Static unroll over the K tile.  Per k: 3 VALU ops per output vreg
        # (sub/abs/add), one (rows,1) patch-column load (lane broadcast) and one
        # (1,tc) weight-row load (sublane broadcast).  The wide `rows` slab
        # amortizes the two narrow loads and the o_ref RMW over (rows/8)*(tc/128)
        # output vregs so the 4-wide VALU stays the only saturated slot.
        # TODO(synk): if a bundle dump shows the (rows,1)->(rows,tc) lane broadcast
        # lowering to multi-op XLU shuffles, route it through the idle MXU instead
        # (xj @ ones((1, tc))) -- the MXU is completely unused by this kernel.
        for j in range(tk):
            xj = x_ref[pl.ds(r, rows), pl.ds(j, 1)]      # (rows, 1) patch values
            wj = wt_ref[pl.ds(j, 1), :]                  # (1, tc)   weight row
            accs[j % n_acc] = accs[j % n_acc] + jnp.abs(xj - wj)
        acc = accs[0]
        for extra in accs[1:]:
            acc = acc + extra
        o_ref[pl.ds(r, rows), :] += acc                  # accumulate across K grid steps
        return carry

    lax.fori_loop(0, n_row_blocks, row_body, 0)

    @pl.when(k_step == pl.num_programs(1) - 1)
    def _finalize():
        y = -o_ref[...]                                  # adder2d output = -sum|x - w|
        if with_relu:
            y = jnp.maximum(y, 0.0)                      # ReLU (before BN, as in the module)
        if with_bn:
            # BatchNorm2d with batch statistics; padded rows (>= m_valid) are masked out.
            row_idx = lax.broadcasted_iota(jnp.int32, y.shape, 0)
            valid = (row_idx < m_valid).astype(jnp.float32)
            inv_m = 1.0 / float(m_valid)
            mean = jnp.sum(y * valid, axis=0, keepdims=True) * inv_m
            cen = (y - mean) * valid
            var = jnp.sum(cen * cen, axis=0, keepdims=True) * inv_m
            y = (y - mean) * (g_ref[...] * lax.rsqrt(var + eps)) + b_ref[...]
        o_ref[...] = y


def adder_relu_bn(patches, wt_padded, gamma, beta, *,
                  with_relu=True, with_bn=True, eps=1e-5):
    """patches: (M, K) f32, wt_padded: (Kp, Cout) f32 (Kp multiple of 128, zero padded)."""
    m, k = patches.shape
    kp, cout = wt_padded.shape
    tk = _pick_tk(kp, m)
    tc = _pick_tc(cout, _MULTI_TC)
    rows = _pick_rows(m)
    assert kp % tk == 0 and cout % tc == 0
    mp = _round_up(m, rows)

    # zero padding: |0 - 0| = 0, so padded K lanes contribute nothing; padded M rows
    # are excluded from the BN statistics inside the kernel and sliced off below.
    xp = jnp.pad(patches.astype(jnp.float32), ((0, mp - m), (0, kp - k)))

    kernel = functools.partial(
        _adder_relu_bn_kernel, tk=tk, tc=tc, rows=rows, m_valid=m,
        with_relu=with_relu, with_bn=with_bn, eps=eps)

    out = pl.pallas_call(
        kernel,
        out_shape=jax.ShapeDtypeStruct((mp, cout), jnp.float32),
        grid_spec=pltpu.PrefetchScalarGridSpec(
            num_scalar_prefetch=0,
            grid=(cout // tc, kp // tk),
            in_specs=[
                # NOTE: the patch tile is re-DMA'd once per Cout block (<1 MiB/layer);
                # harmless since the kernel is VALU-bound.
                pl.BlockSpec((mp, tk), lambda j, kk: (0, kk)),   # patches
                pl.BlockSpec((tk, tc), lambda j, kk: (kk, j)),   # weights (K, Cout)
                pl.BlockSpec((1, tc), lambda j, kk: (0, j)),     # gamma
                pl.BlockSpec((1, tc), lambda j, kk: (0, j)),     # beta
            ],
            out_specs=pl.BlockSpec((mp, tc), lambda j, kk: (0, j)),
        ),
        compiler_params=pltpu.CompilerParams(
            dimension_semantics=("parallel", "arbitrary")),
    )(xp, wt_padded,
      gamma.reshape(1, cout).astype(jnp.float32),
      beta.reshape(1, cout).astype(jnp.float32))
    return out[:m]


# ---------------------------------------------------------------------------
# Linear classifier (real matmul + bias); weights pre-transposed at packing time.
# ---------------------------------------------------------------------------
def _linear_kernel(x_ref, w_ref, b_ref, o_ref):
    o_ref[...] = jnp.dot(x_ref[...], w_ref[...],
                         preferred_element_type=jnp.float32) + b_ref[...]


def linear_pallas(x, wt, b2):
    """x: (N, Cin), wt: (Cin, Cout), b2: (1, Cout) -> (N, Cout)."""
    n, _ = x.shape
    cout = wt.shape[1]
    return pl.pallas_call(
        _linear_kernel,
        out_shape=jax.ShapeDtypeStruct((n, cout), jnp.float32),
    )(x, wt, b2)


# ---------------------------------------------------------------------------
# Glue: im2col (valid 3x3 patches), parameter init/packing, network definition.
# ---------------------------------------------------------------------------
def im2col(x_nhwc, k, stride):
    n, h, w, c = x_nhwc.shape
    ho = (h - k) // stride + 1
    wo = (w - k) // stride + 1
    cols = []
    for kh in range(k):
        for kw in range(k):
            cols.append(x_nhwc[:, kh:kh + stride * ho:stride,
                               kw:kw + stride * wo:stride, :])
    p = jnp.stack(cols, axis=3)                       # (N, Ho, Wo, k*k, C)
    return p.reshape(n * ho * wo, k * k * c), (n, ho, wo)


# (Cin, Cout, stride) for the 8 adder conv layers of this VGG variant.
VGG_CFG = [(3, 64, 2), (64, 128, 1), (128, 256, 1), (256, 256, 1),
           (256, 512, 1), (512, 512, 1), (512, 512, 1), (512, 512, 1)]


def init_params(key):
    keys = jax.random.split(key, len(VGG_CFG) + 2)
    feats = []
    for kk, (cin, cout, _s) in zip(keys[:len(VGG_CFG)], VGG_CFG):
        w = jax.random.normal(kk, (cout, cin, 3, 3), jnp.float32) * 0.1
        feats.append(dict(w=w,
                          gamma=jnp.ones((cout,), jnp.float32),   # BN default init
                          beta=jnp.zeros((cout,), jnp.float32)))
    fc_w = jax.random.normal(keys[-2], (10, 512), jnp.float32) / jnp.sqrt(512.0)
    fc_b = jax.random.normal(keys[-1], (10,), jnp.float32) * 0.01
    return dict(features=feats, fc_w=fc_w, fc_b=fc_b)


def pack_adder_weight(w):
    """(Cout, Cin, 3, 3) -> (Kp, Cout_p); K index = (kh*3+kw)*Cin + cin (im2col order).
    K is zero-padded to a multiple of 128; Cout is zero-padded to a multiple of 128 so
    every output store is lane-dense (padded channels are sliced off by the caller)."""
    cout, cin = w.shape[0], w.shape[1]
    k = 9 * cin
    w_flat = jnp.transpose(w, (0, 2, 3, 1)).reshape(cout, k)      # (Cout, K)
    kp = _round_up(k, 128)
    cout_p = _round_up(cout, 128)
    wt = jnp.transpose(w_flat)                                    # (K, Cout)
    return jnp.pad(wt, ((0, kp - k), (0, cout_p - cout))).astype(jnp.float32)


def pack_params(params):
    """One-time preprocessing hoisted out of the forward pass."""
    feats = []
    for layer, (_cin, cout, _s) in zip(params["features"], VGG_CFG):
        cout_p = _round_up(cout, 128)
        gamma = jnp.pad(layer["gamma"].astype(jnp.float32), (0, cout_p - cout),
                        constant_values=1.0)
        beta = jnp.pad(layer["beta"].astype(jnp.float32), (0, cout_p - cout))
        feats.append(dict(wt=pack_adder_weight(layer["w"]), gamma=gamma, beta=beta))
    return dict(features=feats,
                fc_wt=jnp.transpose(params["fc_w"]).astype(jnp.float32),
                fc_b2=params["fc_b"].reshape(1, -1).astype(jnp.float32))


def vgg_forward(x_nchw, packed):
    x = jnp.transpose(x_nchw, (0, 2, 3, 1)).astype(jnp.float32)   # NCHW -> NHWC
    for layer, (_cin, cout, stride) in zip(packed["features"], VGG_CFG):
        # TODO(synk): im2col patch extraction stays in XLA; could be folded into the
        # kernel with overlapping-window BlockSpecs to cut HBM traffic further.
        patches, (n, ho, wo) = im2col(x, 3, stride)
        y = adder_relu_bn(patches, layer["wt"], layer["gamma"], layer["beta"])
        x = y[:, :cout].reshape(n, ho, wo, cout)                  # drop lane-padding channels
    flat = x.reshape(x.shape[0], -1)                              # (N, 512); spatial is 1x1
    return linear_pallas(flat, packed["fc_wt"], packed["fc_b2"])  # (N, 10)


# ---------------------------------------------------------------------------
# Pure-JAX references for correctness checks.
# ---------------------------------------------------------------------------
def adder_ref(patches, w_ck):
    """w_ck: (Cout, K). Chunked over Cout to bound the rank-3 intermediate."""
    outs = []
    for c0 in range(0, w_ck.shape[0], 64):
        wc = w_ck[c0:c0 + 64]
        outs.append(-jnp.sum(jnp.abs(patches[:, None, :] - wc[None, :, :]), axis=-1))
    return jnp.concatenate(outs, axis=1)


def adder_relu_bn_ref(patches, w_ck, gamma, beta, with_relu=True, with_bn=True, eps=1e-5):
    y = adder_ref(patches, w_ck)
    if with_relu:
        y = jnp.maximum(y, 0.0)
    if with_bn:
        mean = jnp.mean(y, axis=0, keepdims=True)
        var = jnp.mean((y - mean) ** 2, axis=0, keepdims=True)
        y = (y - mean) * lax.rsqrt(var + eps) * gamma[None, :] + beta[None, :]
    return y


def vgg_forward_ref(x_nchw, params):
    x = jnp.transpose(x_nchw, (0, 2, 3, 1)).astype(jnp.float32)
    for layer, (_cin, cout, stride) in zip(params["features"], VGG_CFG):
        patches, (n, ho, wo) = im2col(x, 3, stride)
        w_ck = jnp.transpose(layer["w"], (0, 2, 3, 1)).reshape(cout, -1)
        y = adder_relu_bn_ref(patches, w_ck, layer["gamma"], layer["beta"])
        x = y.reshape(n, ho, wo, cout)
    flat = x.reshape(x.shape[0], -1)
    return flat @ params["fc_w"].T + params["fc_b"][None, :]


if __name__ == "__main__":
    key = jax.random.PRNGKey(0)
    kx, kp, k1, k2, k3, k4, k5, k6 = jax.random.split(key, 8)

    # --- unit check 1: raw adder (no ReLU/BN), small K, odd M, non-128 Cout ---
    xa = jax.random.normal(k1, (37, 27), jnp.float32)
    wa = jax.random.normal(k2, (64, 27), jnp.float32)           # (Cout, K)
    wa_t = jnp.pad(jnp.transpose(wa), ((0, 128 - 27), (0, 0)))  # (Kp, Cout)
    got = adder_relu_bn(xa, wa_t, jnp.ones((64,), jnp.float32),
                        jnp.zeros((64,), jnp.float32),
                        with_relu=False, with_bn=False)
    ref = adder_ref(xa, wa)
    assert jnp.allclose(got, ref, atol=1e-3, rtol=1e-4), "adder kernel mismatch (small K)"

    # --- unit check 2: raw adder, tiled K and Cout ---
    xb = jax.random.normal(k3, (200, 576), jnp.float32)
    wb = jax.random.normal(k4, (256, 576), jnp.float32)
    kp_b = _round_up(576, 128)
    wb_t = jnp.pad(jnp.transpose(wb), ((0, kp_b - 576), (0, 0)))
    got_b = adder_relu_bn(xb, wb_t, jnp.ones((256,), jnp.float32),
                          jnp.zeros((256,), jnp.float32),
                          with_relu=False, with_bn=False)
    ref_b = adder_ref(xb, wb)
    assert jnp.allclose(got_b, ref_b, atol=2e-2, rtol=1e-4), "adder kernel mismatch (tiled K)"

    # --- unit check 3: fused BatchNorm path (no ReLU so the statistics are non-trivial) ---
    gc = jax.random.normal(k5, (256,), jnp.float32) * 0.5 + 1.0
    bc = jax.random.normal(k6, (256,), jnp.float32) * 0.5
    got_c = adder_relu_bn(xb, wb_t, gc, bc, with_relu=False, with_bn=True)
    ref_c = adder_relu_bn_ref(xb, wb, gc, bc, with_relu=False, with_bn=True)
    assert jnp.allclose(got_c, ref_c, atol=5e-3, rtol=1e-3), "fused BN mismatch"

    # --- full forward pass vs pure-JAX reference ---
    params = init_params(kp)
    packed = pack_params(params)
    x = jax.random.normal(kx, (2, 3, 32, 32), jnp.float32)       # small batch, CIFAR-size input

    logits = jax.jit(vgg_forward)(x, packed)
    jax.block_until_ready(logits)
    assert logits.shape == (2, 10) and bool(jnp.all(jnp.isfinite(logits)))

    ref_logits = jax.jit(vgg_forward_ref)(x, params)
    assert jnp.allclose(logits, ref_logits, atol=5e-3, rtol=1e-3), "forward mismatch vs reference"

    print("KERNEL_OK")
</pallas_src>

<mosaic_0001>
module attributes {stable_mosaic.version = 11 : i64} {
  func.func @_adder_relu_bn_kernel(%arg0: i32, %arg1: i32, %arg2: memref<48x128xf32, #tpu.memory_space<vmem>>, %arg3: memref<128x64xf32, #tpu.memory_space<vmem>>, %arg4: memref<1x64xf32, #tpu.memory_space<vmem>>, %arg5: memref<1x64xf32, #tpu.memory_space<vmem>>, %arg6: memref<48x64xf32, #tpu.memory_space<vmem>>) attributes {dimension_semantics = [#tpu.dimension_semantics<parallel>, #tpu.dimension_semantics<arbitrary>], iteration_bounds = array<i64: 1, 1>, scalar_prefetch = 0 : i64, scratch_operands = 0 : i64, tpu.core_type = #tpu.core_type<tc>, window_params = [{transform_indices = @transform_0, window_bounds = array<i64: 48, 128>}, {transform_indices = @transform_1, window_bounds = array<i64: 128, 64>}, {transform_indices = @transform_2, window_bounds = array<i64: 1, 64>}, {transform_indices = @transform_3, window_bounds = array<i64: 1, 64>}, {transform_indices = @transform_4, window_bounds = array<i64: 48, 64>}]} {
    %c0_i32 = arith.constant 0 : i32
    %0 = arith.cmpi eq, %arg1, %c0_i32 : i32
    %1 = arith.extui %0 : i1 to i32
    %c0_i32_0 = arith.constant 0 : i32
    %2 = arith.cmpi ne, %1, %c0_i32_0 : i32
    scf.if %2 {
      %cst = arith.constant 0.000000e+00 : f32
      %7 = vector.broadcast %cst : f32 to vector<48x64xf32>
      %c0 = arith.constant 0 : index
      %c0_5 = arith.constant 0 : index
      %8 = vector.load %arg6[%c0, %c0_5] : memref<48x64xf32, #tpu.memory_space<vmem>>, vector<48x64xf32>
      tpu.vector_store %arg6[%c0, %c0_5], %7 {strides = array<i32>} : memref<48x64xf32, #tpu.memory_space<vmem>>, vector<48x64xf32>,
    } else {
    }
    %c0_i32_1 = arith.constant 0 : i32
    %c2_i32 = arith.constant 2 : i32
    %3 = arith.addi %c0_i32_1, %c2_i32 : i32
    %c1_i32 = arith.constant 1 : i32
    scf.for %arg7 = %c0_i32_1 to %3 step %c1_i32  : i32 {
      %c24_i32 = arith.constant 24 : i32
      %7 = arith.muli %arg7, %c24_i32 : i32
      %8 = tpu.assume_multiple %7, 24 : i32
      %cst = arith.constant 0.000000e+00 : f32
      %9 = vector.broadcast %cst : f32 to vector<24x64xf32>
      %cst_5 = arith.constant 0.000000e+00 : f32
      %10 = vector.broadcast %cst_5 : f32 to vector<24x64xf32>
      %11 = arith.index_cast %8 : i32 to index
      %c0 = arith.constant 0 : index
      %12 = vector.load %arg2[%11, %c0] : memref<48x128xf32, #tpu.memory_space<vmem>>, vector<24x1xf32>
      %c0_6 = arith.constant 0 : index
      %c0_7 = arith.constant 0 : index
      %13 = vector.load %arg3[%c0_6, %c0_7] : memref<128x64xf32, #tpu.memory_space<vmem>>, vector<1x64xf32>
      %14 = vector.broadcast %12 : vector<24x1xf32> to vector<24x64xf32>
      %15 = vector.broadcast %13 : vector<1x64xf32> to vector<24x64xf32>
      %16 = arith.subf %14, %15 : vector<24x64xf32>
      %17 = math.absf %16 : vector<24x64xf32>
      %18 = arith.addf %9, %17 : vector<24x64xf32>
      %19 = arith.index_cast %8 : i32 to index
      %c1 = arith.constant 1 : index
      %20 = vector.load %arg2[%19, %c1] : memref<48x128xf32, #tpu.memory_space<vmem>>, vector<24x1xf32>
      %c1_8 = arith.constant 1 : index
      %c0_9 = arith.constant 0 : index
      %21 = vector.load %arg3[%c1_8, %c0_9] : memref<128x64xf32, #tpu.memory_space<vmem>>, vector<1x64xf32>
      %22 = vector.broadcast %20 : vector<24x1xf32> to vector<24x64xf32>
      %23 = vector.broadcast %21 : vector<1x64xf32> to vector<24x64xf32>
      %24 = arith.subf %22, %23 : vector<24x64xf32>
      %25 = math.absf %24 : vector<24x64xf32>
      %26 = arith.addf %10, %25 : vector<24x64xf32>
      %27 = arith.index_cast %8 : i32 to index
      %c2 = arith.constant 2 : index
      %28 = vector.load %arg2[%27, %c2] : memref<48x128xf32, #tpu.memory_space<vmem>>, vector<24x1xf32>
      %c2_10 = arith.constant 2 : index
      %c0_11 = arith.constant 0 : index
      %29 = vector.load %arg3[%c2_10, %c0_11] : memref<128x64xf32, #tpu.memory_space<vmem>>, vector<1x64xf32>
      %30 = vector.broadcast %28 : vector<24x1xf32> to vector<24x64xf32>
      %31 = vector.broadcast %29 : vector<1x64xf32> to vector<24x64xf32>
      %32 = arith.subf %30, %31 : vector<24x64xf32>
      %33 = math.absf %32 : vector<24x64xf32>
      %34 = arith.addf %18, %33 : vector<24x64xf32>
      %35 = arith.index_cast %8 : i32 to index
      %c3 = arith.constant 3 : index
      %36 = vector.load %arg2[%35, %c3] : memref<48x128xf32, #tpu.memory_space<vmem>>, vector<24x1xf32>
      %c3_12 = arith.constant 3 : index
      %c0_13 = arith.constant 0 : index
      %37 = vector.load %arg3[%c3_12, %c0_13] : memref<128x64xf32, #tpu.memory_space<vmem>>, vector<1x64xf32>
      %38 = vector.broadcast %36 : vector<24x1xf32> to vector<24x64xf32>
      %39 = vector.broadcast %37 : vector<1x64xf32> to vector<24x64xf32>
      %40 = arith.subf %38, %39 : vector<24x64xf32>
      %41 = math.absf %40 : vector<24x64xf32>
      %42 = arith.addf %26, %41 : vector<24x64xf32>
      %43 = arith.index_cast %8 : i32 to index
      %c4 = arith.constant 4 : index
      %44 = vector.load %arg2[%43, %c4] : memref<48x128xf32, #tpu.memory_space<vmem>>, vector<24x1xf32>
      %c4_14 = arith.constant 4 : index
      %c0_15 = arith.constant 0 : index
      %45 = vector.load %arg3[%c4_14, %c0_15] : memref<128x64xf32, #tpu.memory_space<vmem>>, vector<1x64xf32>
      %46 = vector.broadcast %44 : vector<24x1xf32> to vector<24x64xf32>
      %47 = vector.broadcast %45 : vector<1x64xf32> to vector<24x64xf32>
      %48 = arith.subf %46, %47 : vector<24x64xf32>
      %49 = math.absf %48 : vector<24x64xf32>
      %50 = arith.addf %34, %49 : vector<24x64xf32>
      %51 = arith.index_cast %8 : i32 to index
      %c5 = arith.constant 5 : index
      %52 = vector.load %arg2[%51, %c5] : memref<48x128xf32, #tpu.memory_space<vmem>>, vector<24x1xf32>
      %c5_16 = arith.constant 5 : index
      %c0_17 = arith.constant 0 : index
      %53 = vector.load %arg3[%c5_16, %c0_17] : memref<128x64xf32, #tpu.memory_space<vmem>>, vector<1x64xf32>
      %54 = vector.broadcast %52 : vector<24x1xf32> to vector<24x64xf32>
      %55 = vector.broadcast %53 : vector<1x64xf32> to vector<24x64xf32>
      %56 = arith.subf %54, %55 : vector<24x64xf32>
      %57 = math.absf %56 : vector<24x64xf32>
      %58 = arith.addf %42, %57 : vector<24x64xf32>
      %59 = arith.index_cast %8 : i32 to index
      %c6 = arith.constant 6 : index
      %60 = vector.load %arg2[%59, %c6] : memref<48x128xf32, #tpu.memory_space<vmem>>, vector<24x1xf32>
      %c6_18 = arith.constant 6 : index
      %c0_19 = arith.constant 0 : index
      %61 = vector.load %arg3[%c6_18, %c0_19] : memref<128x64xf32, #tpu.memory_space<vmem>>, vector<1x64xf32>
      %62 = vector.broadcast %60 : vector<24x1xf32> to vector<24x64xf32>
      %63 = vector.broadcast %61 : vector<1x64xf32> to vector<24x64xf32>
      %64 = arith.subf %62, %63 : vector<24x64xf32>
      %65 = math.absf %64 : vector<24x64xf32>
      %66 = arith.addf %50, %65 : vector<24x64xf32>
      %67 = arith.index_cast %8 : i32 to index
      %c7 = arith.constant 7 : index
      %68 = vector.load %arg2[%67, %c7] : memref<48x128xf32, #tpu.memory_space<vmem>>, vector<24x1xf32>
      %c7_20 = arith.constant 7 : index
      %c0_21 = arith.constant 0 : index
      %69 = vector.load %arg3[%c7_20, %c0_21] : memref<128x64xf32, #tpu.memory_space<vmem>>, vector<1x64xf32>
      %70 = vector.broadcast %68 : vector<24x1xf32> to vector<24x64xf32>
      %71 = vector.broadcast %69 : vector<1x64xf32> to vector<24x64xf32>
      %72 = arith.subf %70, %71 : vector<24x64xf32>
      %73 = math.absf %72 : vector<24x64xf32>
      %74 = arith.addf %58, %73 : vector<24x64xf32>
      %75 = arith.index_cast %8 : i32 to index
      %c8 = arith.constant 8 : index
      %76 = vector.load %arg2[%75, %c8] : memref<48x128xf32, #tpu.memory_space<vmem>>, vector<24x1xf32>
      %c8_22 = arith.constant 8 : index
      %c0_23 = arith.constant 0 : index
      %77 = vector.load %arg3[%c8_22, %c0_23] : memref<128x64xf32, #tpu.memory_space<vmem>>, vector<1x64xf32>
      %78 = vector.broadcast %76 : vector<24x1xf32> to vector<24x64xf32>
      %79 = vector.broadcast %77 : vector<1x64xf32> to vector<24x64xf32>
      %80 = arith.subf %78, %79 : vector<24x64xf32>
      %81 = math.absf %80 : vector<24x64xf32>
      %82 = arith.addf %66, %81 : vector<24x64xf32>
      %83 = arith.index_cast %8 : i32 to index
      %c9 = arith.constant 9 : index
      %84 = vector.load %arg2[%83, %c9] : memref<48x128xf32, #tpu.memory_space<vmem>>, vector<24x1xf32>
      %c9_24 = arith.constant 9 : index
      %c0_25 = arith.constant 0 : index
      %85 = vector.load %arg3[%c9_24, %c0_25] : memref<128x64xf32, #tpu.memory_space<vmem>>, vector<1x64xf32>
      %86 = vector.broadcast %84 : vector<24x1xf32> to vector<24x64xf32>
      %87 = vector.broadcast %85 : vector<1x64xf32> to vector<24x64xf32>
      %88 = arith.subf %86, %87 : vector<24x64xf32>
      %89 = math.absf %88 : vector<24x64xf32>
      %90 = arith.addf %74, %89 : vector<24x64xf32>
      %91 = arith.index_cast %8 : i32 to index
      %c10 = arith.constant 10 : index
      %92 = vector.load %arg2[%91, %c10] : memref<48x128xf32, #tpu.memory_space<vmem>>, vector<24x1xf32>
      %c10_26 = arith.constant 10 : index
      %c0_27 = arith.constant 0 : index
      %93 = vector.load %arg3[%c10_26, %c0_27] : memref<128x64xf32, #tpu.memory_space<vmem>>, vector<1x64xf32>
      %94 = vector.broadcast %92 : vector<24x1xf32> to vector<24x64xf32>
      %95 = vector.broadcast %93 : vector<1x64xf32> to vector<24x64xf32>
      %96 = arith.subf %94, %95 : vector<24x64xf32>
      %97 = math.absf %96 : vector<24x64xf32>
      %98 = arith.addf %82, %97 : vector<24x64xf32>
      %99 = arith.index_cast %8 : i32 to index
      %c11 = arith.constant 11 : index
      %100 = vector.load %arg2[%99, %c11] : memref<48x128xf32, #tpu.memory_space<vmem>>, vector<24x1xf32>
      %c11_28 = arith.constant 11 : index
      %c0_29 = arith.constant 0 : index
      %101 = vector.load %arg3[%c11_28, %c0_29] : memref<128x64xf32, #tpu.memory_space<vmem>>, vector<1x64xf32>
      %102 = vector.broadcast %100 : vector<24x1xf32> to vector<24x64xf32>
      %103 = vector.broadcast %101 : vector<1x64xf32> to vector<24x64xf32>
      %104 = arith.subf %102, %103 : vector<24x64xf32>
      %105 = math.absf %104 : vector<24x64xf32>
      %106 = arith.addf %90, %105 : vector<24x64xf32>
      %107 = arith.index_cast %8 : i32 to index
      %c12 = arith.constant 12 : index
      %108 = vector.load %arg2[%107, %c12] : memref<48x128xf32, #tpu.memory_space<vmem>>, vector<24x1xf32>
      %c12_30 = arith.constant 12 : index
      %c0_31 = arith.constant 0 : index
      %109 = vector.load %arg3[%c12_30, %c0_31] : memref<128x64xf32, #tpu.memory_space<vmem>>, vector<1x64xf32>
      %110 = vector.broadcast %108 : vector<24x1xf32> to vector<24x64xf32>
      %111 = vector.broadcast %109 : vector<1x64xf32> to vector<24x64xf32>
      %112 = arith.subf %110, %111 : vector<24x64xf32>
      %113 = math.absf %112 : vector<24x64xf32>
      %114 = arith.addf %98, %113 : vector<24x64xf32>
      %115 = arith.index_cast %8 : i32 to index
      %c13 = arith.constant 13 : index
      %116 = vector.load %arg2[%115, %c13] : memref<48x128xf32, #tpu.memory_space<vmem>>, vector<24x1xf32>
      %c13_32 = arith.constant 13 : index
      %c0_33 = arith.constant 0 : index
      %117 = vector.load %arg3[%c13_32, %c0_33] : memref<128x64xf32, #tpu.memory_space<vmem>>, vector<1x64xf32>
      %118 = vector.broadcast %116 : vector<24x1xf32> to vector<24x64xf32>
      %119 = vector.broadcast %117 : vector<1x64xf32> to vector<24x64xf32>
      %120 = arith.subf %118, %119 : vector<24x64xf32>
      %121 = math.absf %120 : vector<24x64xf32>
      %122 = arith.addf %106, %121 : vector<24x64xf32>
      %123 = arith.index_cast %8 : i32 to index
      %c14 = arith.constant 14 : index
      %124 = vector.load %arg2[%123, %c14] : memref<48x128xf32, #tpu.memory_space<vmem>>, vector<24x1xf32>
      %c14_34 = arith.constant 14 : index
      %c0_35 = arith.constant 0 : index
      %125 = vector.load %arg3[%c14_34, %c0_35] : memref<128x64xf32, #tpu.memory_space<vmem>>, vector<1x64xf32>
      %126 = vector.broadcast %124 : vector<24x1xf32> to vector<24x64xf32>
      %127 = vector.broadcast %125 : vector<1x64xf32> to vector<24x64xf32>
      %128 = arith.subf %126, %127 : vector<24x64xf32>
      %129 = math.absf %128 : vector<24x64xf32>
      %130 = arith.addf %114, %129 : vector<24x64xf32>
      %131 = arith.index_cast %8 : i32 to index
      %c15 = arith.constant 15 : index
      %132 = vector.load %arg2[%131, %c15] : memref<48x128xf32, #tpu.memory_space<vmem>>, vector<24x1xf32>
      %c15_36 = arith.constant 15 : index
      %c0_37 = arith.constant 0 : index
      %133 = vector.load %arg3[%c15_36, %c0_37] : memref<128x64xf32, #tpu.memory_space<vmem>>, vector<1x64xf32>
      %134 = vector.broadcast %132 : vector<24x1xf32> to vector<24x64xf32>
      %135 = vector.broadcast %133 : vector<1x64xf32> to vector<24x64xf32>
      %136 = arith.subf %134, %135 : vector<24x64xf32>
      %137 = math.absf %136 : vector<24x64xf32>
      %138 = arith.addf %122, %137 : vector<24x64xf32>
      %139 = arith.index_cast %8 : i32 to index
      %c16 = arith.constant 16 : index
      %140 = vector.load %arg2[%139, %c16] : memref<48x128xf32, #tpu.memory_space<vmem>>, vector<24x1xf32>
      %c16_38 = arith.constant 16 : index
      %c0_39 = arith.constant 0 : index
      %141 = vector.load %arg3[%c16_38, %c0_39] : memref<128x64xf32, #tpu.memory_space<vmem>>, vector<1x64xf32>
      %142 = vector.broadcast %140 : vector<24x1xf32> to vector<24x64xf32>
      %143 = vector.broadcast %141 : vector<1x64xf32> to vector<24x64xf32>
      %144 = arith.subf %142, %143 : vector<24x64xf32>
      %145 = math.absf %144 : vector<24x64xf32>
      %146 = arith.addf %130, %145 : vector<24x64xf32>
      %147 = arith.index_cast %8 : i32 to index
      %c17 = arith.constant 17 : index
      %148 = vector.load %arg2[%147, %c17] : memref<48x128xf32, #tpu.memory_space<vmem>>, vector<24x1xf32>
      %c17_40 = arith.constant 17 : index
      %c0_41 = arith.constant 0 : index
      %149 = vector.load %arg3[%c17_40, %c0_41] : memref<128x64xf32, #tpu.memory_space<vmem>>, vector<1x64xf32>
      %150 = vector.broadcast %148 : vector<24x1xf32> to vector<24x64xf32>
      %151 = vector.broadcast %149 : vector<1x64xf32> to vector<24x64xf32>
      %152 = arith.subf %150, %151 : vector<24x64xf32>
      %153 = math.absf %152 : vector<24x64xf32>
      %154 = arith.addf %138, %153 : vector<24x64xf32>
      %155 = arith.index_cast %8 : i32 to index
      %c18 = arith.constant 18 : index
      %156 = vector.load %arg2[%155, %c18] : memref<48x128xf32, #tpu.memory_space<vmem>>, vector<24x1xf32>
      %c18_42 = arith.constant 18 : index
      %c0_43 = arith.constant 0 : index
      %157 = vector.load %arg3[%c18_42, %c0_43] : memref<128x64xf32, #tpu.memory_space<vmem>>, vector<1x64xf32>
      %158 = vector.broadcast %156 : vector<24x1xf32> to vector<24x64xf32>
      %159 = vector.broadcast %157 : vector<1x64xf32> to vector<24x64xf32>
      %160 = arith.subf %158, %159 : vector<24x64xf32>
      %161 = math.absf %160 : vector<24x64xf32>
      %162 = arith.addf %146, %161 : vector<24x64xf32>
      %163 = arith.index_cast %8 : i32 to index
      %c19 = arith.constant 19 : index
      %164 = vector.load %arg2[%163, %c19] : memref<48x128xf32, #tpu.memory_space<vmem>>, vector<24x1xf32>
      %c19_44 = arith.constant 19 : index
      %c0_45 = arith.constant 0 : index
      %165 = vector.load %arg3[%c19_44, %c0_45] : memref<128x64xf32, #tpu.memory_space<vmem>>, vector<1x64xf32>
      %166 = vector.broadcast %164 : vector<24x1xf32> to vector<24x64xf32>
      %167 = vector.broadcast %165 : vector<1x64xf32> to vector<24x64xf32>
      %168 = arith.subf %166, %167 : vector<24x64xf32>
      %169 = math.absf %168 : vector<24x64xf32>
      %170 = arith.addf %154, %169 : vector<24x64xf32>
      %171 = arith.index_cast %8 : i32 to index
      %c20 = arith.constant 20 : index
      %172 = vector.load %arg2[%171, %c20] : memref<48x128xf32, #tpu.memory_space<vmem>>, vector<24x1xf32>
      %c20_46 = arith.constant 20 : index
      %c0_47 = arith.constant 0 : index
      %173 = vector.load %arg3[%c20_46, %c0_47] : memref<128x64xf32, #tpu.memory_space<vmem>>, vector<1x64xf32>
      %174 = vector.broadcast %172 : vector<24x1xf32> to vector<24x64xf32>
      %175 = vector.broadcast %173 : vector<1x64xf32> to vector<24x64xf32>
      %176 = arith.subf %174, %175 : vector<24x64xf32>
      %177 = math.absf %176 : vector<24x64xf32>
      %178 = arith.addf %162, %177 : vector<24x64xf32>
      %179 = arith.index_cast %8 : i32 to index
      %c21 = arith.constant 21 : index
      %180 = vector.load %arg2[%179, %c21] : memref<48x128xf32, #tpu.memory_space<vmem>>, vector<24x1xf32>
      %c21_48 = arith.constant 21 : index
      %c0_49 = arith.constant 0 : index
      %181 = vector.load %arg3[%c21_48, %c0_49] : memref<128x64xf32, #tpu.memory_space<vmem>>, vector<1x64xf32>
      %182 = vector.broadcast %180 : vector<24x1xf32> to vector<24x64xf32>
      %183 = vector.broadcast %181 : vector<1x64xf32> to vector<24x64xf32>
      %184 = arith.subf %182, %183 : vector<24x64xf32>
      %185 = math.absf %184 : vector<24x64xf32>
      %186 = arith.addf %170, %185 : vector<24x64xf32>
      %187 = arith.index_cast %8 : i32 to index
      %c22 = arith.constant 22 : index
      %188 = vector.load %arg2[%187, %c22] : memref<48x128xf32, #tpu.memory_space<vmem>>, vector<24x1xf32>
      %c22_50 = arith.constant 22 : index
      %c0_51 = arith.constant 0 : index
      %189 = vector.load %arg3[%c22_50, %c0_51] : memref<128x64xf32, #tpu.memory_space<vmem>>, vector<1x64xf32>
      %190 = vector.broadcast %188 : vector<24x1xf32> to vector<24x64xf32>
      %191 = vector.broadcast %189 : vector<1x64xf32> to vector<24x64xf32>
      %192 = arith.subf %190, %191 : vector<24x64xf32>
      %193 = math.absf %192 : vector<24x64xf32>
      %194 = arith.addf %178, %193 : vector<24x64xf32>
      %195 = arith.index_cast %8 : i32 to index
      %c23 = arith.constant 23 : index
      %196 = vector.load %arg2[%195, %c23] : memref<48x128xf32, #tpu.memory_space<vmem>>, vector<24x1xf32>
      %c23_52 = arith.constant 23 : index
      %c0_53 = arith.constant 0 : index
      %197 = vector.load %arg3[%c23_52, %c0_53] : memref<128x64xf32, #tpu.memory_space<vmem>>, vector<1x64xf32>
      %198 = vector.broadcast %196 : vector<24x1xf32> to vector<24x64xf32>
      %199 = vector.broadcast %197 : vector<1x64xf32> to vector<24x64xf32>
      %200 = arith.subf %198, %199 : vector<24x64xf32>
      %201 = math.absf %200 : vector<24x64xf32>
      %202 = arith.addf %186, %201 : vector<24x64xf32>
      %203 = arith.index_cast %8 : i32 to index
      %c24 = arith.constant 24 : index
      %204 = vector.load %arg2[%203, %c24] : memref<48x128xf32, #tpu.memory_space<vmem>>, vector<24x1xf32>
      %c24_54 = arith.constant 24 : index
      %c0_55 = arith.constant 0 : index
      %205 = vector.load %arg3[%c24_54, %c0_55] : memref<128x64xf32, #tpu.memory_space<vmem>>, vector<1x64xf32>
      %206 = vector.broadcast %204 : vector<24x1xf32> to vector<24x64xf32>
      %207 = vector.broadcast %205 : vector<1x64xf32> to vector<24x64xf32>
      %208 = arith.subf %206, %207 : vector<24x64xf32>
      %209 = math.absf %208 : vector<24x64xf32>
      %210 = arith.addf %194, %209 : vector<24x64xf32>
      %211 = arith.index_cast %8 : i32 to index
      %c25 = arith.constant 25 : index
      %212 = vector.load %arg2[%211, %c25] : memref<48x128xf32, #tpu.memory_space<vmem>>, vector<24x1xf32>
      %c25_56 = arith.constant 25 : index
      %c0_57 = arith.constant 0 : index
      %213 = vector.load %arg3[%c25_56, %c0_57] : memref<128x64xf32, #tpu.memory_space<vmem>>, vector<1x64xf32>
      %214 = vector.broadcast %212 : vector<24x1xf32> to vector<24x64xf32>
      %215 = vector.broadcast %213 : vector<1x64xf32> to vector<24x64xf32>
      %216 = arith.subf %214, %215 : vector<24x64xf32>
      %217 = math.absf %216 : vector<24x64xf32>
      %218 = arith.addf %202, %217 : vector<24x64xf32>
      %219 = arith.index_cast %8 : i32 to index
      %c26 = arith.constant 26 : index
      %220 = vector.load %arg2[%219, %c26] : memref<48x128xf32, #tpu.memory_space<vmem>>, vector<24x1xf32>
      %c26_58 = arith.constant 26 : index
      %c0_59 = arith.constant 0 : index
      %221 = vector.load %arg3[%c26_58, %c0_59] : memref<128x64xf32, #tpu.memory_space<vmem>>, vector<1x64xf32>
      %222 = vector.broadcast %220 : vector<24x1xf32> to vector<24x64xf32>
      %223 = vector.broadcast %221 : vector<1x64xf32> to vector<24x64xf32>
      %224 = arith.subf %222, %223 : vector<24x64xf32>
      %225 = math.absf %224 : vector<24x64xf32>
      %226 = arith.addf %210, %225 : vector<24x64xf32>
      %227 = arith.index_cast %8 : i32 to index
      %c27 = arith.constant 27 : index
      %228 = vector.load %arg2[%227, %c27] : memref<48x128xf32, #tpu.memory_space<vmem>>, vector<24x1xf32>
      %c27_60 = arith.constant 27 : index
      %c0_61 = arith.constant 0 : index
      %229 = vector.load %arg3[%c27_60, %c0_61] : memref<128x64xf32, #tpu.memory_space<vmem>>, vector<1x64xf32>
      %230 = vector.broadcast %228 : vector<24x1xf32> to vector<24x64xf32>
      %231 = vector.broadcast %229 : vector<1x64xf32> to vector<24x64xf32>
      %232 = arith.subf %230, %231 : vector<24x64xf32>
      %233 = math.absf %232 : vector<24x64xf32>
      %234 = arith.addf %218, %233 : vector<24x64xf32>
      %235 = arith.index_cast %8 : i32 to index
      %c28 = arith.constant 28 : index
      %236 = vector.load %arg2[%235, %c28] : memref<48x128xf32, #tpu.memory_space<vmem>>, vector<24x1xf32>
      %c28_62 = arith.constant 28 : index
      %c0_63 = arith.constant 0 : index
      %237 = vector.load %arg3[%c28_62, %c0_63] : memref<128x64xf32, #tpu.memory_space<vmem>>, vector<1x64xf32>
      %238 = vector.broadcast %236 : vector<24x1xf32> to vector<24x64xf32>
      %239 = vector.broadcast %237 : vector<1x64xf32> to vector<24x64xf32>
      %240 = arith.subf %238, %239 : vector<24x64xf32>
      %241 = math.absf %240 : vector<24x64xf32>
      %242 = arith.addf %226, %241 : vector<24x64xf32>
      %243 = arith.index_cast %8 : i32 to index
      %c29 = arith.constant 29 : index
      %244 = vector.load %arg2[%243, %c29] : memref<48x128xf32, #tpu.memory_space<vmem>>, vector<24x1xf32>
      %c29_64 = arith.constant 29 : index
      %c0_65 = arith.constant 0 : index
      %245 = vector.load %arg3[%c29_64, %c0_65] : memref<128x64xf32, #tpu.memory_space<vmem>>, vector<1x64xf32>
      %246 = vector.broadcast %244 : vector<24x1xf32> to vector<24x64xf32>
      %247 = vector.broadcast %245 : vector<1x64xf32> to vector<24x64xf32>
      %248 = arith.subf %246, %247 : vector<24x64xf32>
      %249 = math.absf %248 : vector<24x64xf32>
      %250 = arith.addf %234, %249 : vector<24x64xf32>
      %251 = arith.index_cast %8 : i32 to index
      %c30 = arith.constant 30 : index
      %252 = vector.load %arg2[%251, %c30] : memref<48x128xf32, #tpu.memory_space<vmem>>, vector<24x1xf32>
      %c30_66 = arith.constant 30 : index
      %c0_67 = arith.constant 0 : index
      %253 = vector.load %arg3[%c30_66, %c0_67] : memref<128x64xf32, #tpu.memory_space<vmem>>, vector<1x64xf32>
      %254 = vector.broadcast %252 : vector<24x1xf32> to vector<24x64xf32>
      %255 = vector.broadcast %253 : vector<1x64xf32> to vector<24x64xf32>
      %256 = arith.subf %254, %255 : vector<24x64xf32>
      %257 = math.absf %256 : vector<24x64xf32>
      %258 = arith.addf %242, %257 : vector<24x64xf32>
      %259 = arith.index_cast %8 : i32 to index
      %c31 = arith.constant 31 : index
      %260 = vector.load %arg2[%259, %c31] : memref<48x128xf32, #tpu.memory_space<vmem>>, vector<24x1xf32>
      %c31_68 = arith.constant 31 : index
      %c0_69 = arith.constant 0 : index
      %261 = vector.load %arg3[%c31_68, %c0_69] : memref<128x64xf32, #tpu.memory_space<vmem>>, vector<1x64xf32>
      %262 = vector.broadcast %260 : vector<24x1xf32> to vector<24x64xf32>
      %263 = vector.broadcast %261 : vector<1x64xf32> to vector<24x64xf32>
      %264 = arith.subf %262, %263 : vector<24x64xf32>
      %265 = math.absf %264 : vector<24x64xf32>
      %266 = arith.addf %250, %265 : vector<24x64xf32>
      %267 = arith.index_cast %8 : i32 to index
      %c32 = arith.constant 32 : index
      %268 = vector.load %arg2[%267, %c32] : memref<48x128xf32, #tpu.memory_space<vmem>>, vector<24x1xf32>
      %c32_70 = arith.constant 32 : index
      %c0_71 = arith.constant 0 : index
      %269 = vector.load %arg3[%c32_70, %c0_71] : memref<128x64xf32, #tpu.memory_space<vmem>>, vector<1x64xf32>
      %270 = vector.broadcast %268 : vector<24x1xf32> to vector<24x64xf32>
      %271 = vector.broadcast %269 : vector<1x64xf32> to vector<24x64xf32>
      %272 = arith.subf %270, %271 : vector<24x64xf32>
      %273 = math.absf %272 : vector<24x64xf32>
      %274 = arith.addf %258, %273 : vector<24x64xf32>
      %275 = arith.index_cast %8 : i32 to index
      %c33 = arith.constant 33 : index
      %276 = vector.load %arg2[%275, %c33] : memref<48x128xf32, #tpu.memory_space<vmem>>, vector<24x1xf32>
      %c33_72 = arith.constant 33 : index
      %c0_73 = arith.constant 0 : index
      %277 = vector.load %arg3[%c33_72, %c0_73] : memref<128x64xf32, #tpu.memory_space<vmem>>, vector<1x64xf32>
      %278 = vector.broadcast %276 : vector<24x1xf32> to vector<24x64xf32>
      %279 = vector.broadcast %277 : vector<1x64xf32> to vector<24x64xf32>
      %280 = arith.subf %278, %279 : vector<24x64xf32>
      %281 = math.absf %280 : vector<24x64xf32>
      %282 = arith.addf %266, %281 : vector<24x64xf32>
      %283 = arith.index_cast %8 : i32 to index
      %c34 = arith.constant 34 : index
      %284 = vector.load %arg2[%283, %c34] : memref<48x128xf32, #tpu.memory_space<vmem>>, vector<24x1xf32>
      %c34_74 = arith.constant 34 : index
      %c0_75 = arith.constant 0 : index
      %285 = vector.load %arg3[%c34_74, %c0_75] : memref<128x64xf32, #tpu.memory_space<vmem>>, vector<1x64xf32>
      %286 = vector.broadcast %284 : vector<24x1xf32> to vector<24x64xf32>
      %287 = vector.broadcast %285 : vector<1x64xf32> to vector<24x64xf32>
      %288 = arith.subf %286, %287 : vector<24x64xf32>
      %289 = math.absf %288 : vector<24x64xf32>
      %290 = arith.addf %274, %289 : vector<24x64xf32>
      %291 = arith.index_cast %8 : i32 to index
      %c35 = arith.constant 35 : index
      %292 = vector.load %arg2[%291, %c35] : memref<48x128xf32, #tpu.memory_space<vmem>>, vector<24x1xf32>
      %c35_76 = arith.constant 35 : index
      %c0_77 = arith.constant 0 : index
      %293 = vector.load %arg3[%c35_76, %c0_77] : memref<128x64xf32, #tpu.memory_space<vmem>>, vector<1x64xf32>
      %294 = vector.broadcast %292 : vector<24x1xf32> to vector<24x64xf32>
      %295 = vector.broadcast %293 : vector<1x64xf32> to vector<24x64xf32>
      %296 = arith.subf %294, %295 : vector<24x64xf32>
      %297 = math.absf %296 : vector<24x64xf32>
      %298 = arith.addf %282, %297 : vector<24x64xf32>
      %299 = arith.index_cast %8 : i32 to index
      %c36 = arith.constant 36 : index
      %300 = vector.load %arg2[%299, %c36] : memref<48x128xf32, #tpu.memory_space<vmem>>, vector<24x1xf32>
      %c36_78 = arith.constant 36 : index
      %c0_79 = arith.constant 0 : index
      %301 = vector.load %arg3[%c36_78, %c0_79] : memref<128x64xf32, #tpu.memory_space<vmem>>, vector<1x64xf32>
      %302 = vector.broadcast %300 : vector<24x1xf32> to vector<24x64xf32>
      %303 = vector.broadcast %301 : vector<1x64xf32> to vector<24x64xf32>
      %304 = arith.subf %302, %303 : vector<24x64xf32>
      %305 = math.absf %304 : vector<24x64xf32>
      %306 = arith.addf %290, %305 : vector<24x64xf32>
      %307 = arith.index_cast %8 : i32 to index
      %c37 = arith.constant 37 : index
      %308 = vector.load %arg2[%307, %c37] : memref<48x128xf32, #tpu.memory_space<vmem>>, vector<24x1xf32>
      %c37_80 = arith.constant 37 : index
      %c0_81 = arith.constant 0 : index
      %309 = vector.load %arg3[%c37_80, %c0_81] : memref<128x64xf32, #tpu.memory_space<vmem>>, vector<1x64xf32>
      %310 = vector.broadcast %308 : vector<24x1xf32> to vector<24x64xf32>
      %311 = vector.broadcast %309 : vector<1x64xf32> to vector<24x64xf32>
      %312 = arith.subf %310, %311 : vector<24x64xf32>
      %313 = math.absf %312 : vector<24x64xf32>
      %314 = arith.addf %298, %313 : vector<24x64xf32>
      %315 = arith.index_cast %8 : i32 to index
      %c38 = arith.constant 38 : index
      %316 = vector.load %arg2[%315, %c38] : memref<48x128xf32, #tpu.memory_space<vmem>>, vector<24x1xf32>
      %c38_82 = arith.constant 38 : index
      %c0_83 = arith.constant 0 : index
      %317 = vector.load %arg3[%c38_82, %c0_83] : memref<128x64xf32, #tpu.memory_space<vmem>>, vector<1x64xf32>
      %318 = vector.broadcast %316 : vector<24x1xf32> to vector<24x64xf32>
      %319 = vector.broadcast %317 : vector<1x64xf32> to vector<24x64xf32>
      %320 = arith.subf %318, %319 : vector<24x64xf32>
      %321 = math.absf %320 : vector<24x64xf32>
      %322 = arith.addf %306, %321 : vector<24x64xf32>
      %323 = arith.index_cast %8 : i32 to index
      %c39 = arith.constant 39 : index
      %324 = vector.load %arg2[%323, %c39] : memref<48x128xf32, #tpu.memory_space<vmem>>, vector<24x1xf32>
      %c39_84 = arith.constant 39 : index
      %c0_85 = arith.constant 0 : index
      %325 = vector.load %arg3[%c39_84, %c0_85] : memref<128x64xf32, #tpu.memory_space<vmem>>, vector<1x64xf32>
      %326 = vector.broadcast %324 : vector<24x1xf32> to vector<24x64xf32>
      %327 = vector.broadcast %325 : vector<1x64xf32> to vector<24x64xf32>
      %328 = arith.subf %326, %327 : vector<24x64xf32>
      %329 = math.absf %328 : vector<24x64xf32>
      %330 = arith.addf %314, %329 : vector<24x64xf32>
      %331 = arith.index_cast %8 : i32 to index
      %c40 = arith.constant 40 : index
      %332 = vector.load %arg2[%331, %c40] : memref<48x128xf32, #tpu.memory_space<vmem>>, vector<24x1xf32>
      %c40_86 = arith.constant 40 : index
      %c0_87 = arith.constant 0 : index
      %333 = vector.load %arg3[%c40_86, %c0_87] : memref<128x64xf32, #tpu.memory_space<vmem>>, vector<1x64xf32>
      %334 = vector.broadcast %332 : vector<24x1xf32> to vector<24x64xf32>
      %335 = vector.broadcast %333 : vector<1x64xf32> to vector<24x64xf32>
      %336 = arith.subf %334, %335 : vector<24x64xf32>
      %337 = math.absf %336 : vector<24x64xf32>
      %338 = arith.addf %322, %337 : vector<24x64xf32>
      %339 = arith.index_cast %8 : i32 to index
      %c41 = arith.constant 41 : index
      %340 = vector.load %arg2[%339, %c41] : memref<48x128xf32, #tpu.memory_space<vmem>>, vector<24x1xf32>
      %c41_88 = arith.constant 41 : index
      %c0_89 = arith.constant 0 : index
      %341 = vector.load %arg3[%c41_88, %c0_89] : memref<128x64xf32, #tpu.memory_space<vmem>>, vector<1x64xf32>
      %342 = vector.broadcast %340 : vector<24x1xf32> to vector<24x64xf32>
      %343 = vector.broadcast %341 : vector<1x64xf32> to vector<24x64xf32>
      %344 = arith.subf %342, %343 : vector<24x64xf32>
      %345 = math.absf %344 : vector<24x64xf32>
      %346 = arith.addf %330, %345 : vector<24x64xf32>
      %347 = arith.index_cast %8 : i32 to index
      %c42 = arith.constant 42 : index
      %348 = vector.load %arg2[%347, %c42] : memref<48x128xf32, #tpu.memory_space<vmem>>, vector<24x1xf32>
      %c42_90 = arith.constant 42 : index
      %c0_91 = arith.constant 0 : index
      %349 = vector.load %arg3[%c42_90, %c0_91] : memref<128x64xf32, #tpu.memory_space<vmem>>, vector<1x64xf32>
      %350 = vector.broadcast %348 : vector<24x1xf32> to vector<24x64xf32>
      %351 = vector.broadcast %349 : vector<1x64xf32> to vector<24x64xf32>
      %352 = arith.subf %350, %351 : vector<24x64xf32>
      %353 = math.absf %352 : vector<24x64xf32>
      %354 = arith.addf %338, %353 : vector<24x64xf32>
      %355 = arith.index_cast %8 : i32 to index
      %c43 = arith.constant 43 : index
      %356 = vector.load %arg2[%355, %c43] : memref<48x128xf32, #tpu.memory_space<vmem>>, vector<24x1xf32>
      %c43_92 = arith.constant 43 : index
      %c0_93 = arith.constant 0 : index
      %357 = vector.load %arg3[%c43_92, %c0_93] : memref<128x64xf32, #tpu.memory_space<vmem>>, vector<1x64xf32>
      %358 = vector.broadcast %356 : vector<24x1xf32> to vector<24x64xf32>
      %359 = vector.broadcast %357 : vector<1x64xf32> to vector<24x64xf32>
      %360 = arith.subf %358, %359 : vector<24x64xf32>
      %361 = math.absf %360 : vector<24x64xf32>
      %362 = arith.addf %346, %361 : vector<24x64xf32>
      %363 = arith.index_cast %8 : i32 to index
      %c44 = arith.constant 44 : index
      %364 = vector.load %arg2[%363, %c44] : memref<48x128xf32, #tpu.memory_space<vmem>>, vector<24x1xf32>
      %c44_94 = arith.constant 44 : index
      %c0_95 = arith.constant 0 : index
      %365 = vector.load %arg3[%c44_94, %c0_95] : memref<128x64xf32, #tpu.memory_space<vmem>>, vector<1x64xf32>
      %366 = vector.broadcast %364 : vector<24x1xf32> to vector<24x64xf32>
      %367 = vector.broadcast %365 : vector<1x64xf32> to vector<24x64xf32>
      %368 = arith.subf %366, %367 : vector<24x64xf32>
      %369 = math.absf %368 : vector<24x64xf32>
      %370 = arith.addf %354, %369 : vector<24x64xf32>
      %371 = arith.index_cast %8 : i32 to index
      %c45 = arith.constant 45 : index
      %372 = vector.load %arg2[%371, %c45] : memref<48x128xf32, #tpu.memory_space<vmem>>, vector<24x1xf32>
      %c45_96 = arith.constant 45 : index
      %c0_97 = arith.constant 0 : index
      %373 = vector.load %arg3[%c45_96, %c0_97] : memref<128x64xf32, #tpu.memory_space<vmem>>, vector<1x64xf32>
      %374 = vector.broadcast %372 : vector<24x1xf32> to vector<24x64xf32>
      %375 = vector.broadcast %373 : vector<1x64xf32> to vector<24x64xf32>
      %376 = arith.subf %374, %375 : vector<24x64xf32>
      %377 = math.absf %376 : vector<24x64xf32>
      %378 = arith.addf %362, %377 : vector<24x64xf32>
      %379 = arith.index_cast %8 : i32 to index
      %c46 = arith.constant 46 : index
      %380 = vector.load %arg2[%379, %c46] : memref<48x128xf32, #tpu.memory_space<vmem>>, vector<24x1xf32>
      %c46_98 = arith.constant 46 : index
      %c0_99 = arith.constant 0 : index
      %381 = vector.load %arg3[%c46_98, %c0_99] : memref<128x64xf32, #tpu.memory_space<vmem>>, vector<1x64xf32>
      %382 = vector.broadcast %380 : vector<24x1xf32> to vector<24x64xf32>
      %383 = vector.broadcast %381 : vector<1x64xf32> to vector<24x64xf32>
      %384 = arith.subf %382, %383 : vector<24x64xf32>
      %385 = math.absf %384 : vector<24x64xf32>
      %386 = arith.addf %370, %385 : vector<24x64xf32>
      %387 = arith.index_cast %8 : i32 to index
      %c47 = arith.constant 47 : index
      %388 = vector.load %arg2[%387, %c47] : memref<48x128xf32, #tpu.memory_space<vmem>>, vector<24x1xf32>
      %c47_100 = arith.constant 47 : index
      %c0_101 = arith.constant 0 : index
      %389 = vector.load %arg3[%c47_100, %c0_101] : memref<128x64xf32, #tpu.memory_space<vmem>>, vector<1x64xf32>
      %390 = vector.broadcast %388 : vector<24x1xf32> to vector<24x64xf32>
      %391 = vector.broadcast %389 : vector<1x64xf32> to vector<24x64xf32>
      %392 = arith.subf %390, %391 : vector<24x64xf32>
      %393 = math.absf %392 : vector<24x64xf32>
      %394 = arith.addf %378, %393 : vector<24x64xf32>
      %395 = arith.index_cast %8 : i32 to index
      %c48 = arith.constant 48 : index
      %396 = vector.load %arg2[%395, %c48] : memref<48x128xf32, #tpu.memory_space<vmem>>, vector<24x1xf32>
      %c48_102 = arith.constant 48 : index
      %c0_103 = arith.constant 0 : index
      %397 = vector.load %arg3[%c48_102, %c0_103] : memref<128x64xf32, #tpu.memory_space<vmem>>, vector<1x64xf32>
      %398 = vector.broadcast %396 : vector<24x1xf32> to vector<24x64xf32>
      %399 = vector.broadcast %397 : vector<1x64xf32> to vector<24x64xf32>
      %400 = arith.subf %398, %399 : vector<24x64xf32>
      %401 = math.absf %400 : vector<24x64xf32>
      %402 = arith.addf %386, %401 : vector<24x64xf32>
      %403 = arith.index_cast %8 : i32 to index
      %c49 = arith.constant 49 : index
      %404 = vector.load %arg2[%403, %c49] : memref<48x128xf32, #tpu.memory_space<vmem>>, vector<24x1xf32>
      %c49_104 = arith.constant 49 : index
      %c0_105 = arith.constant 0 : index
      %405 = vector.load %arg3[%c49_104, %c0_105] : memref<128x64xf32, #tpu.memory_space<vmem>>, vector<1x64xf32>
      %406 = vector.broadcast %404 : vector<24x1xf32> to vector<24x64xf32>
      %407 = vector.broadcast %405 : vector<1x64xf32> to vector<24x64xf32>
      %408 = arith.subf %406, %407 : vector<24x64xf32>
      %409 = math.absf %408 : vector<24x64xf32>
      %410 = arith.addf %394, %409 : vector<24x64xf32>
      %411 = arith.index_cast %8 : i32 to index
      %c50 = arith.constant 50 : index
      %412 = vector.load %arg2[%411, %c50] : memref<48x128xf32, #tpu.memory_space<vmem>>, vector<24x1xf32>
      %c50_106 = arith.constant 50 : index
      %c0_107 = arith.constant 0 : index
      %413 = vector.load %arg3[%c50_106, %c0_107] : memref<128x64xf32, #tpu.memory_space<vmem>>, vector<1x64xf32>
      %414 = vector.broadcast %412 : vector<24x1xf32> to vector<24x64xf32>
      %415 = vector.broadcast %413 : vector<1x64xf32> to vector<24x64xf32>
      %416 = arith.subf %414, %415 : vector<24x64xf32>
      %417 = math.absf %416 : vector<24x64xf32>
      %418 = arith.addf %402, %417 : vector<24x64xf32>
      %419 = arith.index_cast %8 : i32 to index
      %c51 = arith.constant 51 : index
      %420 = vector.load %arg2[%419, %c51] : memref<48x128xf32, #tpu.memory_space<vmem>>, vector<24x1xf32>
      %c51_108 = arith.constant 51 : index
      %c0_109 = arith.constant 0 : index
      %421 = vector.load %arg3[%c51_108, %c0_109] : memref<128x64xf32, #tpu.memory_space<vmem>>, vector<1x64xf32>
      %422 = vector.broadcast %420 : vector<24x1xf32> to vector<24x64xf32>
      %423 = vector.broadcast %421 : vector<1x64xf32> to vector<24x64xf32>
      %424 = arith.subf %422, %423 : vector<24x64xf32>
      %425 = math.absf %424 : vector<24x64xf32>
      %426 = arith.addf %410, %425 : vector<24x64xf32>
      %427 = arith.index_cast %8 : i32 to index
      %c52 = arith.constant 52 : index
      %428 = vector.load %arg2[%427, %c52] : memref<48x128xf32, #tpu.memory_space<vmem>>, vector<24x1xf32>
      %c52_110 = arith.constant 52 : index
      %c0_111 = arith.constant 0 : index
      %429 = vector.load %arg3[%c52_110, %c0_111] : memref<128x64xf32, #tpu.memory_space<vmem>>, vector<1x64xf32>
      %430 = vector.broadcast %428 : vector<24x1xf32> to vector<24x64xf32>
      %431 = vector.broadcast %429 : vector<1x64xf32> to vector<24x64xf32>
      %432 = arith.subf %430, %431 : vector<24x64xf32>
      %433 = math.absf %432 : vector<24x64xf32>
      %434 = arith.addf %418, %433 : vector<24x64xf32>
      %435 = arith.index_cast %8 : i32 to index
      %c53 = arith.constant 53 : index
      %436 = vector.load %arg2[%435, %c53] : memref<48x128xf32, #tpu.memory_space<vmem>>, vector<24x1xf32>
      %c53_112 = arith.constant 53 : index
      %c0_113 = arith.constant 0 : index
      %437 = vector.load %arg3[%c53_112, %c0_113] : memref<128x64xf32, #tpu.memory_space<vmem>>, vector<1x64xf32>
      %438 = vector.broadcast %436 : vector<24x1xf32> to vector<24x64xf32>
      %439 = vector.broadcast %437 : vector<1x64xf32> to vector<24x64xf32>
      %440 = arith.subf %438, %439 : vector<24x64xf32>
      %441 = math.absf %440 : vector<24x64xf32>
      %442 = arith.addf %426, %441 : vector<24x64xf32>
      %443 = arith.index_cast %8 : i32 to index
      %c54 = arith.constant 54 : index
      %444 = vector.load %arg2[%443, %c54] : memref<48x128xf32, #tpu.memory_space<vmem>>, vector<24x1xf32>
      %c54_114 = arith.constant 54 : index
      %c0_115 = arith.constant 0 : index
      %445 = vector.load %arg3[%c54_114, %c0_115] : memref<128x64xf32, #tpu.memory_space<vmem>>, vector<1x64xf32>
      %446 = vector.broadcast %444 : vector<24x1xf32> to vector<24x64xf32>
      %447 = vector.broadcast %445 : vector<1x64xf32> to vector<24x64xf32>
      %448 = arith.subf %446, %447 : vector<24x64xf32>
      %449 = math.absf %448 : vector<24x64xf32>
      %450 = arith.addf %434, %449 : vector<24x64xf32>
      %451 = arith.index_cast %8 : i32 to index
      %c55 = arith.constant 55 : index
      %452 = vector.load %arg2[%451, %c55] : memref<48x128xf32, #tpu.memory_space<vmem>>, vector<24x1xf32>
      %c55_116 = arith.constant 55 : index
      %c0_117 = arith.constant 0 : index
      %453 = vector.load %arg3[%c55_116, %c0_117] : memref<128x64xf32, #tpu.memory_space<vmem>>, vector<1x64xf32>
      %454 = vector.broadcast %452 : vector<24x1xf32> to vector<24x64xf32>
      %455 = vector.broadcast %453 : vector<1x64xf32> to vector<24x64xf32>
      %456 = arith.subf %454, %455 : vector<24x64xf32>
      %457 = math.absf %456 : vector<24x64xf32>
      %458 = arith.addf %442, %457 : vector<24x64xf32>
      %459 = arith.index_cast %8 : i32 to index
      %c56 = arith.constant 56 : index
      %460 = vector.load %arg2[%459, %c56] : memref<48x128xf32, #tpu.memory_space<vmem>>, vector<24x1xf32>
      %c56_118 = arith.constant 56 : index
      %c0_119 = arith.constant 0 : index
      %461 = vector.load %arg3[%c56_118, %c0_119] : memref<128x64xf32, #tpu.memory_space<vmem>>, vector<1x64xf32>
      %462 = vector.broadcast %460 : vector<24x1xf32> to vector<24x64xf32>
      %463 = vector.broadcast %461 : vector<1x64xf32> to vector<24x64xf32>
      %464 = arith.subf %462, %463 : vector<24x64xf32>
      %465 = math.absf %464 : vector<24x64xf32>
      %466 = arith.addf %450, %465 : vector<24x64xf32>
      %467 = arith.index_cast %8 : i32 to index
      %c57 = arith.constant 57 : index
      %468 = vector.load %arg2[%467, %c57] : memref<48x128xf32, #tpu.memory_space<vmem>>, vector<24x1xf32>
      %c57_120 = arith.constant 57 : index
      %c0_121 = arith.constant 0 : index
      %469 = vector.load %arg3[%c57_120, %c0_121] : memref<128x64xf32, #tpu.memory_space<vmem>>, vector<1x64xf32>
      %470 = vector.broadcast %468 : vector<24x1xf32> to vector<24x64xf32>
      %471 = vector.broadcast %469 : vector<1x64xf32> to vector<24x64xf32>
      %472 = arith.subf %470, %471 : vector<24x64xf32>
      %473 = math.absf %472 : vector<24x64xf32>
      %474 = arith.addf %458, %473 : vector<24x64xf32>
      %475 = arith.index_cast %8 : i32 to index
      %c58 = arith.constant 58 : index
      %476 = vector.load %arg2[%475, %c58] : memref<48x128xf32, #tpu.memory_space<vmem>>, vector<24x1xf32>
      %c58_122 = arith.constant 58 : index
      %c0_123 = arith.constant 0 : index
      %477 = vector.load %arg3[%c58_122, %c0_123] : memref<128x64xf32, #tpu.memory_space<vmem>>, vector<1x64xf32>
      %478 = vector.broadcast %476 : vector<24x1xf32> to vector<24x64xf32>
      %479 = vector.broadcast %477 : vector<1x64xf32> to vector<24x64xf32>
      %480 = arith.subf %478, %479 : vector<24x64xf32>
      %481 = math.absf %480 : vector<24x64xf32>
      %482 = arith.addf %466, %481 : vector<24x64xf32>
      %483 = arith.index_cast %8 : i32 to index
      %c59 = arith.constant 59 : index
      %484 = vector.load %arg2[%483, %c59] : memref<48x128xf32, #tpu.memory_space<vmem>>, vector<24x1xf32>
      %c59_124 = arith.constant 59 : index
      %c0_125 = arith.constant 0 : index
      %485 = vector.load %arg3[%c59_124, %c0_125] : memref<128x64xf32, #tpu.memory_space<vmem>>, vector<1x64xf32>
      %486 = vector.broadcast %484 : vector<24x1xf32> to vector<24x64xf32>
      %487 = vector.broadcast %485 : vector<1x64xf32> to vector<24x64xf32>
      %488 = arith.subf %486, %487 : vector<24x64xf32>
      %489 = math.absf %488 : vector<24x64xf32>
      %490 = arith.addf %474, %489 : vector<24x64xf32>
      %491 = arith.index_cast %8 : i32 to index
      %c60 = arith.constant 60 : index
      %492 = vector.load %arg2[%491, %c60] : memref<48x128xf32, #tpu.memory_space<vmem>>, vector<24x1xf32>
      %c60_126 = arith.constant 60 : index
      %c0_127 = arith.constant 0 : index
      %493 = vector.load %arg3[%c60_126, %c0_127] : memref<128x64xf32, #tpu.memory_space<vmem>>, vector<1x64xf32>
      %494 = vector.broadcast %492 : vector<24x1xf32> to vector<24x64xf32>
      %495 = vector.broadcast %493 : vector<1x64xf32> to vector<24x64xf32>
      %496 = arith.subf %494, %495 : vector<24x64xf32>
      %497 = math.absf %496 : vector<24x64xf32>
      %498 = arith.addf %482, %497 : vector<24x64xf32>
      %499 = arith.index_cast %8 : i32 to index
      %c61 = arith.constant 61 : index
      %500 = vector.load %arg2[%499, %c61] : memref<48x128xf32, #tpu.memory_space<vmem>>, vector<24x1xf32>
      %c61_128 = arith.constant 61 : index
      %c0_129 = arith.constant 0 : index
      %501 = vector.load %arg3[%c61_128, %c0_129] : memref<128x64xf32, #tpu.memory_space<vmem>>, vector<1x64xf32>
      %502 = vector.broadcast %500 : vector<24x1xf32> to vector<24x64xf32>
      %503 = vector.broadcast %501 : vector<1x64xf32> to vector<24x64xf32>
      %504 = arith.subf %502, %503 : vector<24x64xf32>
      %505 = math.absf %504 : vector<24x64xf32>
      %506 = arith.addf %490, %505 : vector<24x64xf32>
      %507 = arith.index_cast %8 : i32 to index
      %c62 = arith.constant 62 : index
      %508 = vector.load %arg2[%507, %c62] : memref<48x128xf32, #tpu.memory_space<vmem>>, vector<24x1xf32>
      %c62_130 = arith.constant 62 : index
      %c0_131 = arith.constant 0 : index
      %509 = vector.load %arg3[%c62_130, %c0_131] : memref<128x64xf32, #tpu.memory_space<vmem>>, vector<1x64xf32>
      %510 = vector.broadcast %508 : vector<24x1xf32> to vector<24x64xf32>
      %511 = vector.broadcast %509 : vector<1x64xf32> to vector<24x64xf32>
      %512 = arith.subf %510, %511 : vector<24x64xf32>
      %513 = math.absf %512 : vector<24x64xf32>
      %514 = arith.addf %498, %513 : vector<24x64xf32>
      %515 = arith.index_cast %8 : i32 to index
      %c63 = arith.constant 63 : index
      %516 = vector.load %arg2[%515, %c63] : memref<48x128xf32, #tpu.memory_space<vmem>>, vector<24x1xf32>
      %c63_132 = arith.constant 63 : index
      %c0_133 = arith.constant 0 : index
      %517 = vector.load %arg3[%c63_132, %c0_133] : memref<128x64xf32, #tpu.memory_space<vmem>>, vector<1x64xf32>
      %518 = vector.broadcast %516 : vector<24x1xf32> to vector<24x64xf32>
      %519 = vector.broadcast %517 : vector<1x64xf32> to vector<24x64xf32>
      %520 = arith.subf %518, %519 : vector<24x64xf32>
      %521 = math.absf %520 : vector<24x64xf32>
      %522 = arith.addf %506, %521 : vector<24x64xf32>
      %523 = arith.index_cast %8 : i32 to index
      %c64 = arith.constant 64 : index
      %524 = vector.load %arg2[%523, %c64] : memref<48x128xf32, #tpu.memory_space<vmem>>, vector<24x1xf32>
      %c64_134 = arith.constant 64 : index
      %c0_135 = arith.constant 0 : index
      %525 = vector.load %arg3[%c64_134, %c0_135] : memref<128x64xf32, #tpu.memory_space<vmem>>, vector<1x64xf32>
      %526 = vector.broadcast %524 : vector<24x1xf32> to vector<24x64xf32>
      %527 = vector.broadcast %525 : vector<1x64xf32> to vector<24x64xf32>
      %528 = arith.subf %526, %527 : vector<24x64xf32>
      %529 = math.absf %528 : vector<24x64xf32>
      %530 = arith.addf %514, %529 : vector<24x64xf32>
      %531 = arith.index_cast %8 : i32 to index
      %c65 = arith.constant 65 : index
      %532 = vector.load %arg2[%531, %c65] : memref<48x128xf32, #tpu.memory_space<vmem>>, vector<24x1xf32>
      %c65_136 = arith.constant 65 : index
      %c0_137 = arith.constant 0 : index
      %533 = vector.load %arg3[%c65_136, %c0_137] : memref<128x64xf32, #tpu.memory_space<vmem>>, vector<1x64xf32>
      %534 = vector.broadcast %532 : vector<24x1xf32> to vector<24x64xf32>
      %535 = vector.broadcast %533 : vector<1x64xf32> to vector<24x64xf32>
      %536 = arith.subf %534, %535 : vector<24x64xf32>
      %537 = math.absf %536 : vector<24x64xf32>
      %538 = arith.addf %522, %537 : vector<24x64xf32>
      %539 = arith.index_cast %8 : i32 to index
      %c66 = arith.constant 66 : index
      %540 = vector.load %arg2[%539, %c66] : memref<48x128xf32, #tpu.memory_space<vmem>>, vector<24x1xf32>
      %c66_138 = arith.constant 66 : index
      %c0_139 = arith.constant 0 : index
      %541 = vector.load %arg3[%c66_138, %c0_139] : memref<128x64xf32, #tpu.memory_space<vmem>>, vector<1x64xf32>
      %542 = vector.broadcast %540 : vector<24x1xf32> to vector<24x64xf32>
      %543 = vector.broadcast %541 : vector<1x64xf32> to vector<24x64xf32>
      %544 = arith.subf %542, %543 : vector<24x64xf32>
      %545 = math.absf %544 : vector<24x64xf32>
      %546 = arith.addf %530, %545 : vector<24x64xf32>
      %547 = arith.index_cast %8 : i32 to index
      %c67 = arith.constant 67 : index
      %548 = vector.load %arg2[%547, %c67] : memref<48x128xf32, #tpu.memory_space<vmem>>, vector<24x1xf32>
      %c67_140 = arith.constant 67 : index
      %c0_141 = arith.constant 0 : index
      %549 = vector.load %arg3[%c67_140, %c0_141] : memref<128x64xf32, #tpu.memory_space<vmem>>, vector<1x64xf32>
      %550 = vector.broadcast %548 : vector<24x1xf32> to vector<24x64xf32>
      %551 = vector.broadcast %549 : vector<1x64xf32> to vector<24x64xf32>
      %552 = arith.subf %550, %551 : vector<24x64xf32>
      %553 = math.absf %552 : vector<24x64xf32>
      %554 = arith.addf %538, %553 : vector<24x64xf32>
      %555 = arith.index_cast %8 : i32 to index
      %c68 = arith.constant 68 : index
      %556 = vector.load %arg2[%555, %c68] : memref<48x128xf32, #tpu.memory_space<vmem>>, vector<24x1xf32>
      %c68_142 = arith.constant 68 : index
      %c0_143 = arith.constant 0 : index
      %557 = vector.load %arg3[%c68_142, %c0_143] : memref<128x64xf32, #tpu.memory_space<vmem>>, vector<1x64xf32>
      %558 = vector.broadcast %556 : vector<24x1xf32> to vector<24x64xf32>
      %559 = vector.broadcast %557 : vector<1x64xf32> to vector<24x64xf32>
      %560 = arith.subf %558, %559 : vector<24x64xf32>
      %561 = math.absf %560 : vector<24x64xf32>
      %562 = arith.addf %546, %561 : vector<24x64xf32>
      %563 = arith.index_cast %8 : i32 to index
      %c69 = arith.constant 69 : index
      %564 = vector.load %arg2[%563, %c69] : memref<48x128xf32, #tpu.memory_space<vmem>>, vector<24x1xf32>
      %c69_144 = arith.constant 69 : index
      %c0_145 = arith.constant 0 : index
      %565 = vector.load %arg3[%c69_144, %c0_145] : memref<128x64xf32, #tpu.memory_space<vmem>>, vector<1x64xf32>
      %566 = vector.broadcast %564 : vector<24x1xf32> to vector<24x64xf32>
      %567 = vector.broadcast %565 : vector<1x64xf32> to vector<24x64xf32>
      %568 = arith.subf %566, %567 : vector<24x64xf32>
      %569 = math.absf %568 : vector<24x64xf32>
      %570 = arith.addf %554, %569 : vector<24x64xf32>
      %571 = arith.index_cast %8 : i32 to index
      %c70 = arith.constant 70 : index
      %572 = vector.load %arg2[%571, %c70] : memref<48x128xf32, #tpu.memory_space<vmem>>, vector<24x1xf32>
      %c70_146 = arith.constant 70 : index
      %c0_147 = arith.constant 0 : index
      %573 = vector.load %arg3[%c70_146, %c0_147] : memref<128x64xf32, #tpu.memory_space<vmem>>, vector<1x64xf32>
      %574 = vector.broadcast %572 : vector<24x1xf32> to vector<24x64xf32>
      %575 = vector.broadcast %573 : vector<1x64xf32> to vector<24x64xf32>
      %576 = arith.subf %574, %575 : vector<24x64xf32>
      %577 = math.absf %576 : vector<24x64xf32>
      %578 = arith.addf %562, %577 : vector<24x64xf32>
      %579 = arith.index_cast %8 : i32 to index
      %c71 = arith.constant 71 : index
      %580 = vector.load %arg2[%579, %c71] : memref<48x128xf32, #tpu.memory_space<vmem>>, vector<24x1xf32>
      %c71_148 = arith.constant 71 : index
      %c0_149 = arith.constant 0 : index
      %581 = vector.load %arg3[%c71_148, %c0_149] : memref<128x64xf32, #tpu.memory_space<vmem>>, vector<1x64xf32>
      %582 = vector.broadcast %580 : vector<24x1xf32> to vector<24x64xf32>
      %583 = vector.broadcast %581 : vector<1x64xf32> to vector<24x64xf32>
      %584 = arith.subf %582, %583 : vector<24x64xf32>
      %585 = math.absf %584 : vector<24x64xf32>
      %586 = arith.addf %570, %585 : vector<24x64xf32>
      %587 = arith.index_cast %8 : i32 to index
      %c72 = arith.constant 72 : index
      %588 = vector.load %arg2[%587, %c72] : memref<48x128xf32, #tpu.memory_space<vmem>>, vector<24x1xf32>
      %c72_150 = arith.constant 72 : index
      %c0_151 = arith.constant 0 : index
      %589 = vector.load %arg3[%c72_150, %c0_151] : memref<128x64xf32, #tpu.memory_space<vmem>>, vector<1x64xf32>
      %590 = vector.broadcast %588 : vector<24x1xf32> to vector<24x64xf32>
      %591 = vector.broadcast %589 : vector<1x64xf32> to vector<24x64xf32>
      %592 = arith.subf %590, %591 : vector<24x64xf32>
      %593 = math.absf %592 : vector<24x64xf32>
      %594 = arith.addf %578, %593 : vector<24x64xf32>
      %595 = arith.index_cast %8 : i32 to index
      %c73 = arith.constant 73 : index
      %596 = vector.load %arg2[%595, %c73] : memref<48x128xf32, #tpu.memory_space<vmem>>, vector<24x1xf32>
      %c73_152 = arith.constant 73 : index
      %c0_153 = arith.constant 0 : index
      %597 = vector.load %arg3[%c73_152, %c0_153] : memref<128x64xf32, #tpu.memory_space<vmem>>, vector<1x64xf32>
      %598 = vector.broadcast %596 : vector<24x1xf32> to vector<24x64xf32>
      %599 = vector.broadcast %597 : vector<1x64xf32> to vector<24x64xf32>
      %600 = arith.subf %598, %599 : vector<24x64xf32>
      %601 = math.absf %600 : vector<24x64xf32>
      %602 = arith.addf %586, %601 : vector<24x64xf32>
      %603 = arith.index_cast %8 : i32 to index
      %c74 = arith.constant 74 : index
      %604 = vector.load %arg2[%603, %c74] : memref<48x128xf32, #tpu.memory_space<vmem>>, vector<24x1xf32>
      %c74_154 = arith.constant 74 : index
      %c0_155 = arith.constant 0 : index
      %605 = vector.load %arg3[%c74_154, %c0_155] : memref<128x64xf32, #tpu.memory_space<vmem>>, vector<1x64xf32>
      %606 = vector.broadcast %604 : vector<24x1xf32> to vector<24x64xf32>
      %607 = vector.broadcast %605 : vector<1x64xf32> to vector<24x64xf32>
      %608 = arith.subf %606, %607 : vector<24x64xf32>
      %609 = math.absf %608 : vector<24x64xf32>
      %610 = arith.addf %594, %609 : vector<24x64xf32>
      %611 = arith.index_cast %8 : i32 to index
      %c75 = arith.constant 75 : index
      %612 = vector.load %arg2[%611, %c75] : memref<48x128xf32, #tpu.memory_space<vmem>>, vector<24x1xf32>
      %c75_156 = arith.constant 75 : index
      %c0_157 = arith.constant 0 : index
      %613 = vector.load %arg3[%c75_156, %c0_157] : memref<128x64xf32, #tpu.memory_space<vmem>>, vector<1x64xf32>
      %614 = vector.broadcast %612 : vector<24x1xf32> to vector<24x64xf32>
      %615 = vector.broadcast %613 : vector<1x64xf32> to vector<24x64xf32>
      %616 = arith.subf %614, %615 : vector<24x64xf32>
      %617 = math.absf %616 : vector<24x64xf32>
      %618 = arith.addf %602, %617 : vector<24x64xf32>
      %619 = arith.index_cast %8 : i32 to index
      %c76 = arith.constant 76 : index
      %620 = vector.load %arg2[%619, %c76] : memref<48x128xf32, #tpu.memory_space<vmem>>, vector<24x1xf32>
      %c76_158 = arith.constant 76 : index
      %c0_159 = arith.constant 0 : index
      %621 = vector.load %arg3[%c76_158, %c0_159] : memref<128x64xf32, #tpu.memory_space<vmem>>, vector<1x64xf32>
      %622 = vector.broadcast %620 : vector<24x1xf32> to vector<24x64xf32>
      %623 = vector.broadcast %621 : vector<1x64xf32> to vector<24x64xf32>
      %624 = arith.subf %622, %623 : vector<24x64xf32>
      %625 = math.absf %624 : vector<24x64xf32>
      %626 = arith.addf %610, %625 : vector<24x64xf32>
      %627 = arith.index_cast %8 : i32 to index
      %c77 = arith.constant 77 : index
      %628 = vector.load %arg2[%627, %c77] : memref<48x128xf32, #tpu.memory_space<vmem>>, vector<24x1xf32>
      %c77_160 = arith.constant 77 : index
      %c0_161 = arith.constant 0 : index
      %629 = vector.load %arg3[%c77_160, %c0_161] : memref<128x64xf32, #tpu.memory_space<vmem>>, vector<1x64xf32>
      %630 = vector.broadcast %628 : vector<24x1xf32> to vector<24x64xf32>
      %631 = vector.broadcast %629 : vector<1x64xf32> to vector<24x64xf32>
      %632 = arith.subf %630, %631 : vector<24x64xf32>
      %633 = math.absf %632 : vector<24x64xf32>
      %634 = arith.addf %618, %633 : vector<24x64xf32>
      %635 = arith.index_cast %8 : i32 to index
      %c78 = arith.constant 78 : index
      %636 = vector.load %arg2[%635, %c78] : memref<48x128xf32, #tpu.memory_space<vmem>>, vector<24x1xf32>
      %c78_162 = arith.constant 78 : index
      %c0_163 = arith.constant 0 : index
      %637 = vector.load %arg3[%c78_162, %c0_163] : memref<128x64xf32, #tpu.memory_space<vmem>>, vector<1x64xf32>
      %638 = vector.broadcast %636 : vector<24x1xf32> to vector<24x64xf32>
      %639 = vector.broadcast %637 : vector<1x64xf32> to vector<24x64xf32>
      %640 = arith.subf %638, %639 : vector<24x64xf32>
      %641 = math.absf %640 : vector<24x64xf32>
      %642 = arith.addf %626, %641 : vector<24x64xf32>
      %643 = arith.index_cast %8 : i32 to index
      %c79 = arith.constant 79 : index
      %644 = vector.load %arg2[%643, %c79] : memref<48x128xf32, #tpu.memory_space<vmem>>, vector<24x1xf32>
      %c79_164 = arith.constant 79 : index
      %c0_165 = arith.constant 0 : index
      %645 = vector.load %arg3[%c79_164, %c0_165] : memref<128x64xf32, #tpu.memory_space<vmem>>, vector<1x64xf32>
      %646 = vector.broadcast %644 : vector<24x1xf32> to vector<24x64xf32>
      %647 = vector.broadcast %645 : vector<1x64xf32> to vector<24x64xf32>
      %648 = arith.subf %646, %647 : vector<24x64xf32>
      %649 = math.absf %648 : vector<24x64xf32>
      %650 = arith.addf %634, %649 : vector<24x64xf32>
      %651 = arith.index_cast %8 : i32 to index
      %c80 = arith.constant 80 : index
      %652 = vector.load %arg2[%651, %c80] : memref<48x128xf32, #tpu.memory_space<vmem>>, vector<24x1xf32>
      %c80_166 = arith.constant 80 : index
      %c0_167 = arith.constant 0 : index
      %653 = vector.load %arg3[%c80_166, %c0_167] : memref<128x64xf32, #tpu.memory_space<vmem>>, vector<1x64xf32>
      %654 = vector.broadcast %652 : vector<24x1xf32> to vector<24x64xf32>
      %655 = vector.broadcast %653 : vector<1x64xf32> to vector<24x64xf32>
      %656 = arith.subf %654, %655 : vector<24x64xf32>
      %657 = math.absf %656 : vector<24x64xf32>
      %658 = arith.addf %642, %657 : vector<24x64xf32>
      %659 = arith.index_cast %8 : i32 to index
      %c81 = arith.constant 81 : index
      %660 = vector.load %arg2[%659, %c81] : memref<48x128xf32, #tpu.memory_space<vmem>>, vector<24x1xf32>
      %c81_168 = arith.constant 81 : index
      %c0_169 = arith.constant 0 : index
      %661 = vector.load %arg3[%c81_168, %c0_169] : memref<128x64xf32, #tpu.memory_space<vmem>>, vector<1x64xf32>
      %662 = vector.broadcast %660 : vector<24x1xf32> to vector<24x64xf32>
      %663 = vector.broadcast %661 : vector<1x64xf32> to vector<24x64xf32>
      %664 = arith.subf %662, %663 : vector<24x64xf32>
      %665 = math.absf %664 : vector<24x64xf32>
      %666 = arith.addf %650, %665 : vector<24x64xf32>
      %667 = arith.index_cast %8 : i32 to index
      %c82 = arith.constant 82 : index
      %668 = vector.load %arg2[%667, %c82] : memref<48x128xf32, #tpu.memory_space<vmem>>, vector<24x1xf32>
      %c82_170 = arith.constant 82 : index
      %c0_171 = arith.constant 0 : index
      %669 = vector.load %arg3[%c82_170, %c0_171] : memref<128x64xf32, #tpu.memory_space<vmem>>, vector<1x64xf32>
      %670 = vector.broadcast %668 : vector<24x1xf32> to vector<24x64xf32>
      %671 = vector.broadcast %669 : vector<1x64xf32> to vector<24x64xf32>
      %672 = arith.subf %670, %671 : vector<24x64xf32>
      %673 = math.absf %672 : vector<24x64xf32>
      %674 = arith.addf %658, %673 : vector<24x64xf32>
      %675 = arith.index_cast %8 : i32 to index
      %c83 = arith.constant 83 : index
      %676 = vector.load %arg2[%675, %c83] : memref<48x128xf32, #tpu.memory_space<vmem>>, vector<24x1xf32>
      %c83_172 = arith.constant 83 : index
      %c0_173 = arith.constant 0 : index
      %677 = vector.load %arg3[%c83_172, %c0_173] : memref<128x64xf32, #tpu.memory_space<vmem>>, vector<1x64xf32>
      %678 = vector.broadcast %676 : vector<24x1xf32> to vector<24x64xf32>
      %679 = vector.broadcast %677 : vector<1x64xf32> to vector<24x64xf32>
      %680 = arith.subf %678, %679 : vector<24x64xf32>
      %681 = math.absf %680 : vector<24x64xf32>
      %682 = arith.addf %666, %681 : vector<24x64xf32>
      %683 = arith.index_cast %8 : i32 to index
      %c84 = arith.constant 84 : index
      %684 = vector.load %arg2[%683, %c84] : memref<48x128xf32, #tpu.memory_space<vmem>>, vector<24x1xf32>
      %c84_174 = arith.constant 84 : index
      %c0_175 = arith.constant 0 : index
      %685 = vector.load %arg3[%c84_174, %c0_175] : memref<128x64xf32, #tpu.memory_space<vmem>>, vector<1x64xf32>
      %686 = vector.broadcast %684 : vector<24x1xf32> to vector<24x64xf32>
      %687 = vector.broadcast %685 : vector<1x64xf32> to vector<24x64xf32>
      %688 = arith.subf %686, %687 : vector<24x64xf32>
      %689 = math.absf %688 : vector<24x64xf32>
      %690 = arith.addf %674, %689 : vector<24x64xf32>
      %691 = arith.index_cast %8 : i32 to index
      %c85 = arith.constant 85 : index
      %692 = vector.load %arg2[%691, %c85] : memref<48x128xf32, #tpu.memory_space<vmem>>, vector<24x1xf32>
      %c85_176 = arith.constant 85 : index
      %c0_177 = arith.constant 0 : index
      %693 = vector.load %arg3[%c85_176, %c0_177] : memref<128x64xf32, #tpu.memory_space<vmem>>, vector<1x64xf32>
      %694 = vector.broadcast %692 : vector<24x1xf32> to vector<24x64xf32>
      %695 = vector.broadcast %693 : vector<1x64xf32> to vector<24x64xf32>
      %696 = arith.subf %694, %695 : vector<24x64xf32>
      %697 = math.absf %696 : vector<24x64xf32>
      %698 = arith.addf %682, %697 : vector<24x64xf32>
      %699 = arith.index_cast %8 : i32 to index
      %c86 = arith.constant 86 : index
      %700 = vector.load %arg2[%699, %c86] : memref<48x128xf32, #tpu.memory_space<vmem>>, vector<24x1xf32>
      %c86_178 = arith.constant 86 : index
      %c0_179 = arith.constant 0 : index
      %701 = vector.load %arg3[%c86_178, %c0_179] : memref<128x64xf32, #tpu.memory_space<vmem>>, vector<1x64xf32>
      %702 = vector.broadcast %700 : vector<24x1xf32> to vector<24x64xf32>
      %703 = vector.broadcast %701 : vector<1x64xf32> to vector<24x64xf32>
      %704 = arith.subf %702, %703 : vector<24x64xf32>
      %705 = math.absf %704 : vector<24x64xf32>
      %706 = arith.addf %690, %705 : vector<24x64xf32>
      %707 = arith.index_cast %8 : i32 to index
      %c87 = arith.constant 87 : index
      %708 = vector.load %arg2[%707, %c87] : memref<48x128xf32, #tpu.memory_space<vmem>>, vector<24x1xf32>
      %c87_180 = arith.constant 87 : index
      %c0_181 = arith.constant 0 : index
      %709 = vector.load %arg3[%c87_180, %c0_181] : memref<128x64xf32, #tpu.memory_space<vmem>>, vector<1x64xf32>
      %710 = vector.broadcast %708 : vector<24x1xf32> to vector<24x64xf32>
      %711 = vector.broadcast %709 : vector<1x64xf32> to vector<24x64xf32>
      %712 = arith.subf %710, %711 : vector<24x64xf32>
      %713 = math.absf %712 : vector<24x64xf32>
      %714 = arith.addf %698, %713 : vector<24x64xf32>
      %715 = arith.index_cast %8 : i32 to index
      %c88 = arith.constant 88 : index
      %716 = vector.load %arg2[%715, %c88] : memref<48x128xf32, #tpu.memory_space<vmem>>, vector<24x1xf32>
      %c88_182 = arith.constant 88 : index
      %c0_183 = arith.constant 0 : index
      %717 = vector.load %arg3[%c88_182, %c0_183] : memref<128x64xf32, #tpu.memory_space<vmem>>, vector<1x64xf32>
      %718 = vector.broadcast %716 : vector<24x1xf32> to vector<24x64xf32>
      %719 = vector.broadcast %717 : vector<1x64xf32> to vector<24x64xf32>
      %720 = arith.subf %718, %719 : vector<24x64xf32>
      %721 = math.absf %720 : vector<24x64xf32>
      %722 = arith.addf %706, %721 : vector<24x64xf32>
      %723 = arith.index_cast %8 : i32 to index
      %c89 = arith.constant 89 : index
      %724 = vector.load %arg2[%723, %c89] : memref<48x128xf32, #tpu.memory_space<vmem>>, vector<24x1xf32>
      %c89_184 = arith.constant 89 : index
      %c0_185 = arith.constant 0 : index
      %725 = vector.load %arg3[%c89_184, %c0_185] : memref<128x64xf32, #tpu.memory_space<vmem>>, vector<1x64xf32>
      %726 = vector.broadcast %724 : vector<24x1xf32> to vector<24x64xf32>
      %727 = vector.broadcast %725 : vector<1x64xf32> to vector<24x64xf32>
      %728 = arith.subf %726, %727 : vector<24x64xf32>
      %729 = math.absf %728 : vector<24x64xf32>
      %730 = arith.addf %714, %729 : vector<24x64xf32>
      %731 = arith.index_cast %8 : i32 to index
      %c90 = arith.constant 90 : index
      %732 = vector.load %arg2[%731, %c90] : memref<48x128xf32, #tpu.memory_space<vmem>>, vector<24x1xf32>
      %c90_186 = arith.constant 90 : index
      %c0_187 = arith.constant 0 : index
      %733 = vector.load %arg3[%c90_186, %c0_187] : memref<128x64xf32, #tpu.memory_space<vmem>>, vector<1x64xf32>
      %734 = vector.broadcast %732 : vector<24x1xf32> to vector<24x64xf32>
      %735 = vector.broadcast %733 : vector<1x64xf32> to vector<24x64xf32>
      %736 = arith.subf %734, %735 : vector<24x64xf32>
      %737 = math.absf %736 : vector<24x64xf32>
      %738 = arith.addf %722, %737 : vector<24x64xf32>
      %739 = arith.index_cast %8 : i32 to index
      %c91 = arith.constant 91 : index
      %740 = vector.load %arg2[%739, %c91] : memref<48x128xf32, #tpu.memory_space<vmem>>, vector<24x1xf32>
      %c91_188 = arith.constant 91 : index
      %c0_189 = arith.constant 0 : index
      %741 = vector.load %arg3[%c91_188, %c0_189] : memref<128x64xf32, #tpu.memory_space<vmem>>, vector<1x64xf32>
      %742 = vector.broadcast %740 : vector<24x1xf32> to vector<24x64xf32>
      %743 = vector.broadcast %741 : vector<1x64xf32> to vector<24x64xf32>
      %744 = arith.subf %742, %743 : vector<24x64xf32>
      %745 = math.absf %744 : vector<24x64xf32>
      %746 = arith.addf %730, %745 : vector<24x64xf32>
      %747 = arith.index_cast %8 : i32 to index
      %c92 = arith.constant 92 : index
      %748 = vector.load %arg2[%747, %c92] : memref<48x128xf32, #tpu.memory_space<vmem>>, vector<24x1xf32>
      %c92_190 = arith.constant 92 : index
      %c0_191 = arith.constant 0 : index
      %749 = vector.load %arg3[%c92_190, %c0_191] : memref<128x64xf32, #tpu.memory_space<vmem>>, vector<1x64xf32>
      %750 = vector.broadcast %748 : vector<24x1xf32> to vector<24x64xf32>
      %751 = vector.broadcast %749 : vector<1x64xf32> to vector<24x64xf32>
      %752 = arith.subf %750, %751 : vector<24x64xf32>
      %753 = math.absf %752 : vector<24x64xf32>
      %754 = arith.addf %738, %753 : vector<24x64xf32>
      %755 = arith.index_cast %8 : i32 to index
      %c93 = arith.constant 93 : index
      %756 = vector.load %arg2[%755, %c93] : memref<48x128xf32, #tpu.memory_space<vmem>>, vector<24x1xf32>
      %c93_192 = arith.constant 93 : index
      %c0_193 = arith.constant 0 : index
      %757 = vector.load %arg3[%c93_192, %c0_193] : memref<128x64xf32, #tpu.memory_space<vmem>>, vector<1x64xf32>
      %758 = vector.broadcast %756 : vector<24x1xf32> to vector<24x64xf32>
      %759 = vector.broadcast %757 : vector<1x64xf32> to vector<24x64xf32>
      %760 = arith.subf %758, %759 : vector<24x64xf32>
      %761 = math.absf %760 : vector<24x64xf32>
      %762 = arith.addf %746, %761 : vector<24x64xf32>
      %763 = arith.index_cast %8 : i32 to index
      %c94 = arith.constant 94 : index
      %764 = vector.load %arg2[%763, %c94] : memref<48x128xf32, #tpu.memory_space<vmem>>, vector<24x1xf32>
      %c94_194 = arith.constant 94 : index
      %c0_195 = arith.constant 0 : index
      %765 = vector.load %arg3[%c94_194, %c0_195] : memref<128x64xf32, #tpu.memory_space<vmem>>, vector<1x64xf32>
      %766 = vector.broadcast %764 : vector<24x1xf32> to vector<24x64xf32>
      %767 = vector.broadcast %765 : vector<1x64xf32> to vector<24x64xf32>
      %768 = arith.subf %766, %767 : vector<24x64xf32>
      %769 = math.absf %768 : vector<24x64xf32>
      %770 = arith.addf %754, %769 : vector<24x64xf32>
      %771 = arith.index_cast %8 : i32 to index
      %c95 = arith.constant 95 : index
      %772 = vector.load %arg2[%771, %c95] : memref<48x128xf32, #tpu.memory_space<vmem>>, vector<24x1xf32>
      %c95_196 = arith.constant 95 : index
      %c0_197 = arith.constant 0 : index
      %773 = vector.load %arg3[%c95_196, %c0_197] : memref<128x64xf32, #tpu.memory_space<vmem>>, vector<1x64xf32>
      %774 = vector.broadcast %772 : vector<24x1xf32> to vector<24x64xf32>
      %775 = vector.broadcast %773 : vector<1x64xf32> to vector<24x64xf32>
      %776 = arith.subf %774, %775 : vector<24x64xf32>
      %777 = math.absf %776 : vector<24x64xf32>
      %778 = arith.addf %762, %777 : vector<24x64xf32>
      %779 = arith.index_cast %8 : i32 to index
      %c96 = arith.constant 96 : index
      %780 = vector.load %arg2[%779, %c96] : memref<48x128xf32, #tpu.memory_space<vmem>>, vector<24x1xf32>
      %c96_198 = arith.constant 96 : index
      %c0_199 = arith.constant 0 : index
      %781 = vector.load %arg3[%c96_198, %c0_199] : memref<128x64xf32, #tpu.memory_space<vmem>>, vector<1x64xf32>
      %782 = vector.broadcast %780 : vector<24x1xf32> to vector<24x64xf32>
      %783 = vector.broadcast %781 : vector<1x64xf32> to vector<24x64xf32>
      %784 = arith.subf %782, %783 : vector<24x64xf32>
      %785 = math.absf %784 : vector<24x64xf32>
      %786 = arith.addf %770, %785 : vector<24x64xf32>
      %787 = arith.index_cast %8 : i32 to index
      %c97 = arith.constant 97 : index
      %788 = vector.load %arg2[%787, %c97] : memref<48x128xf32, #tpu.memory_space<vmem>>, vector<24x1xf32>
      %c97_200 = arith.constant 97 : index
      %c0_201 = arith.constant 0 : index
      %789 = vector.load %arg3[%c97_200, %c0_201] : memref<128x64xf32, #tpu.memory_space<vmem>>, vector<1x64xf32>
      %790 = vector.broadcast %788 : vector<24x1xf32> to vector<24x64xf32>
      %791 = vector.broadcast %789 : vector<1x64xf32> to vector<24x64xf32>
      %792 = arith.subf %790, %791 : vector<24x64xf32>
      %793 = math.absf %792 : vector<24x64xf32>
      %794 = arith.addf %778, %793 : vector<24x64xf32>
      %795 = arith.index_cast %8 : i32 to index
      %c98 = arith.constant 98 : index
      %796 = vector.load %arg2[%795, %c98] : memref<48x128xf32, #tpu.memory_space<vmem>>, vector<24x1xf32>
      %c98_202 = arith.constant 98 : index
      %c0_203 = arith.constant 0 : index
      %797 = vector.load %arg3[%c98_202, %c0_203] : memref<128x64xf32, #tpu.memory_space<vmem>>, vector<1x64xf32>
      %798 = vector.broadcast %796 : vector<24x1xf32> to vector<24x64xf32>
      %799 = vector.broadcast %797 : vector<1x64xf32> to vector<24x64xf32>
      %800 = arith.subf %798, %799 : vector<24x64xf32>
      %801 = math.absf %800 : vector<24x64xf32>
      %802 = arith.addf %786, %801 : vector<24x64xf32>
      %803 = arith.index_cast %8 : i32 to index
      %c99 = arith.constant 99 : index
      %804 = vector.load %arg2[%803, %c99] : memref<48x128xf32, #tpu.memory_space<vmem>>, vector<24x1xf32>
      %c99_204 = arith.constant 99 : index
      %c0_205 = arith.constant 0 : index
      %805 = vector.load %arg3[%c99_204, %c0_205] : memref<128x64xf32, #tpu.memory_space<vmem>>, vector<1x64xf32>
      %806 = vector.broadcast %804 : vector<24x1xf32> to vector<24x64xf32>
      %807 = vector.broadcast %805 : vector<1x64xf32> to vector<24x64xf32>
      %808 = arith.subf %806, %807 : vector<24x64xf32>
      %809 = math.absf %808 : vector<24x64xf32>
      %810 = arith.addf %794, %809 : vector<24x64xf32>
      %811 = arith.index_cast %8 : i32 to index
      %c100 = arith.constant 100 : index
      %812 = vector.load %arg2[%811, %c100] : memref<48x128xf32, #tpu.memory_space<vmem>>, vector<24x1xf32>
      %c100_206 = arith.constant 100 : index
      %c0_207 = arith.constant 0 : index
      %813 = vector.load %arg3[%c100_206, %c0_207] : memref<128x64xf32, #tpu.memory_space<vmem>>, vector<1x64xf32>
      %814 = vector.broadcast %812 : vector<24x1xf32> to vector<24x64xf32>
      %815 = vector.broadcast %813 : vector<1x64xf32> to vector<24x64xf32>
      %816 = arith.subf %814, %815 : vector<24x64xf32>
      %817 = math.absf %816 : vector<24x64xf32>
      %818 = arith.addf %802, %817 : vector<24x64xf32>
      %819 = arith.index_cast %8 : i32 to index
      %c101 = arith.constant 101 : index
      %820 = vector.load %arg2[%819, %c101] : memref<48x128xf32, #tpu.memory_space<vmem>>, vector<24x1xf32>
      %c101_208 = arith.constant 101 : index
      %c0_209 = arith.constant 0 : index
      %821 = vector.load %arg3[%c101_208, %c0_209] : memref<128x64xf32, #tpu.memory_space<vmem>>, vector<1x64xf32>
      %822 = vector.broadcast %820 : vector<24x1xf32> to vector<24x64xf32>
      %823 = vector.broadcast %821 : vector<1x64xf32> to vector<24x64xf32>
      %824 = arith.subf %822, %823 : vector<24x64xf32>
      %825 = math.absf %824 : vector<24x64xf32>
      %826 = arith.addf %810, %825 : vector<24x64xf32>
      %827 = arith.index_cast %8 : i32 to index
      %c102 = arith.constant 102 : index
      %828 = vector.load %arg2[%827, %c102] : memref<48x128xf32, #tpu.memory_space<vmem>>, vector<24x1xf32>
      %c102_210 = arith.constant 102 : index
      %c0_211 = arith.constant 0 : index
      %829 = vector.load %arg3[%c102_210, %c0_211] : memref<128x64xf32, #tpu.memory_space<vmem>>, vector<1x64xf32>
      %830 = vector.broadcast %828 : vector<24x1xf32> to vector<24x64xf32>
      %831 = vector.broadcast %829 : vector<1x64xf32> to vector<24x64xf32>
      %832 = arith.subf %830, %831 : vector<24x64xf32>
      %833 = math.absf %832 : vector<24x64xf32>
      %834 = arith.addf %818, %833 : vector<24x64xf32>
      %835 = arith.index_cast %8 : i32 to index
      %c103 = arith.constant 103 : index
      %836 = vector.load %arg2[%835, %c103] : memref<48x128xf32, #tpu.memory_space<vmem>>, vector<24x1xf32>
      %c103_212 = arith.constant 103 : index
      %c0_213 = arith.constant 0 : index
      %837 = vector.load %arg3[%c103_212, %c0_213] : memref<128x64xf32, #tpu.memory_space<vmem>>, vector<1x64xf32>
      %838 = vector.broadcast %836 : vector<24x1xf32> to vector<24x64xf32>
      %839 = vector.broadcast %837 : vector<1x64xf32> to vector<24x64xf32>
      %840 = arith.subf %838, %839 : vector<24x64xf32>
      %841 = math.absf %840 : vector<24x64xf32>
      %842 = arith.addf %826, %841 : vector<24x64xf32>
      %843 = arith.index_cast %8 : i32 to index
      %c104 = arith.constant 104 : index
      %844 = vector.load %arg2[%843, %c104] : memref<48x128xf32, #tpu.memory_space<vmem>>, vector<24x1xf32>
      %c104_214 = arith.constant 104 : index
      %c0_215 = arith.constant 0 : index
      %845 = vector.load %arg3[%c104_214, %c0_215] : memref<128x64xf32, #tpu.memory_space<vmem>>, vector<1x64xf32>
      %846 = vector.broadcast %844 : vector<24x1xf32> to vector<24x64xf32>
      %847 = vector.broadcast %845 : vector<1x64xf32> to vector<24x64xf32>
      %848 = arith.subf %846, %847 : vector<24x64xf32>
      %849 = math.absf %848 : vector<24x64xf32>
      %850 = arith.addf %834, %849 : vector<24x64xf32>
      %851 = arith.index_cast %8 : i32 to index
      %c105 = arith.constant 105 : index
      %852 = vector.load %arg2[%851, %c105] : memref<48x128xf32, #tpu.memory_space<vmem>>, vector<24x1xf32>
      %c105_216 = arith.constant 105 : index
      %c0_217 = arith.constant 0 : index
      %853 = vector.load %arg3[%c105_216, %c0_217] : memref<128x64xf32, #tpu.memory_space<vmem>>, vector<1x64xf32>
      %854 = vector.broadcast %852 : vector<24x1xf32> to vector<24x64xf32>
      %855 = vector.broadcast %853 : vector<1x64xf32> to vector<24x64xf32>
      %856 = arith.subf %854, %855 : vector<24x64xf32>
      %857 = math.absf %856 : vector<24x64xf32>
      %858 = arith.addf %842, %857 : vector<24x64xf32>
      %859 = arith.index_cast %8 : i32 to index
      %c106 = arith.constant 106 : index
      %860 = vector.load %arg2[%859, %c106] : memref<48x128xf32, #tpu.memory_space<vmem>>, vector<24x1xf32>
      %c106_218 = arith.constant 106 : index
      %c0_219 = arith.constant 0 : index
      %861 = vector.load %arg3[%c106_218, %c0_219] : memref<128x64xf32, #tpu.memory_space<vmem>>, vector<1x64xf32>
      %862 = vector.broadcast %860 : vector<24x1xf32> to vector<24x64xf32>
      %863 = vector.broadcast %861 : vector<1x64xf32> to vector<24x64xf32>
      %864 = arith.subf %862, %863 : vector<24x64xf32>
      %865 = math.absf %864 : vector<24x64xf32>
      %866 = arith.addf %850, %865 : vector<24x64xf32>
      %867 = arith.index_cast %8 : i32 to index
      %c107 = arith.constant 107 : index
      %868 = vector.load %arg2[%867, %c107] : memref<48x128xf32, #tpu.memory_space<vmem>>, vector<24x1xf32>
      %c107_220 = arith.constant 107 : index
      %c0_221 = arith.constant 0 : index
      %869 = vector.load %arg3[%c107_220, %c0_221] : memref<128x64xf32, #tpu.memory_space<vmem>>, vector<1x64xf32>
      %870 = vector.broadcast %868 : vector<24x1xf32> to vector<24x64xf32>
      %871 = vector.broadcast %869 : vector<1x64xf32> to vector<24x64xf32>
      %872 = arith.subf %870, %871 : vector<24x64xf32>
      %873 = math.absf %872 : vector<24x64xf32>
      %874 = arith.addf %858, %873 : vector<24x64xf32>
      %875 = arith.index_cast %8 : i32 to index
      %c108 = arith.constant 108 : index
      %876 = vector.load %arg2[%875, %c108] : memref<48x128xf32, #tpu.memory_space<vmem>>, vector<24x1xf32>
      %c108_222 = arith.constant 108 : index
      %c0_223 = arith.constant 0 : index
      %877 = vector.load %arg3[%c108_222, %c0_223] : memref<128x64xf32, #tpu.memory_space<vmem>>, vector<1x64xf32>
      %878 = vector.broadcast %876 : vector<24x1xf32> to vector<24x64xf32>
      %879 = vector.broadcast %877 : vector<1x64xf32> to vector<24x64xf32>
      %880 = arith.subf %878, %879 : vector<24x64xf32>
      %881 = math.absf %880 : vector<24x64xf32>
      %882 = arith.addf %866, %881 : vector<24x64xf32>
      %883 = arith.index_cast %8 : i32 to index
      %c109 = arith.constant 109 : index
      %884 = vector.load %arg2[%883, %c109] : memref<48x128xf32, #tpu.memory_space<vmem>>, vector<24x1xf32>
      %c109_224 = arith.constant 109 : index
      %c0_225 = arith.constant 0 : index
      %885 = vector.load %arg3[%c109_224, %c0_225] : memref<128x64xf32, #tpu.memory_space<vmem>>, vector<1x64xf32>
      %886 = vector.broadcast %884 : vector<24x1xf32> to vector<24x64xf32>
      %887 = vector.broadcast %885 : vector<1x64xf32> to vector<24x64xf32>
      %888 = arith.subf %886, %887 : vector<24x64xf32>
      %889 = math.absf %888 : vector<24x64xf32>
      %890 = arith.addf %874, %889 : vector<24x64xf32>
      %891 = arith.index_cast %8 : i32 to index
      %c110 = arith.constant 110 : index
      %892 = vector.load %arg2[%891, %c110] : memref<48x128xf32, #tpu.memory_space<vmem>>, vector<24x1xf32>
      %c110_226 = arith.constant 110 : index
      %c0_227 = arith.constant 0 : index
      %893 = vector.load %arg3[%c110_226, %c0_227] : memref<128x64xf32, #tpu.memory_space<vmem>>, vector<1x64xf32>
      %894 = vector.broadcast %892 : vector<24x1xf32> to vector<24x64xf32>
      %895 = vector.broadcast %893 : vector<1x64xf32> to vector<24x64xf32>
      %896 = arith.subf %894, %895 : vector<24x64xf32>
      %897 = math.absf %896 : vector<24x64xf32>
      %898 = arith.addf %882, %897 : vector<24x64xf32>
      %899 = arith.index_cast %8 : i32 to index
      %c111 = arith.constant 111 : index
      %900 = vector.load %arg2[%899, %c111] : memref<48x128xf32, #tpu.memory_space<vmem>>, vector<24x1xf32>
      %c111_228 = arith.constant 111 : index
      %c0_229 = arith.constant 0 : index
      %901 = vector.load %arg3[%c111_228, %c0_229] : memref<128x64xf32, #tpu.memory_space<vmem>>, vector<1x64xf32>
      %902 = vector.broadcast %900 : vector<24x1xf32> to vector<24x64xf32>
      %903 = vector.broadcast %901 : vector<1x64xf32> to vector<24x64xf32>
      %904 = arith.subf %902, %903 : vector<24x64xf32>
      %905 = math.absf %904 : vector<24x64xf32>
      %906 = arith.addf %890, %905 : vector<24x64xf32>
      %907 = arith.index_cast %8 : i32 to index
      %c112 = arith.constant 112 : index
      %908 = vector.load %arg2[%907, %c112] : memref<48x128xf32, #tpu.memory_space<vmem>>, vector<24x1xf32>
      %c112_230 = arith.constant 112 : index
      %c0_231 = arith.constant 0 : index
      %909 = vector.load %arg3[%c112_230, %c0_231] : memref<128x64xf32, #tpu.memory_space<vmem>>, vector<1x64xf32>
      %910 = vector.broadcast %908 : vector<24x1xf32> to vector<24x64xf32>
      %911 = vector.broadcast %909 : vector<1x64xf32> to vector<24x64xf32>
      %912 = arith.subf %910, %911 : vector<24x64xf32>
      %913 = math.absf %912 : vector<24x64xf32>
      %914 = arith.addf %898, %913 : vector<24x64xf32>
      %915 = arith.index_cast %8 : i32 to index
      %c113 = arith.constant 113 : index
      %916 = vector.load %arg2[%915, %c113] : memref<48x128xf32, #tpu.memory_space<vmem>>, vector<24x1xf32>
      %c113_232 = arith.constant 113 : index
      %c0_233 = arith.constant 0 : index
      %917 = vector.load %arg3[%c113_232, %c0_233] : memref<128x64xf32, #tpu.memory_space<vmem>>, vector<1x64xf32>
      %918 = vector.broadcast %916 : vector<24x1xf32> to vector<24x64xf32>
      %919 = vector.broadcast %917 : vector<1x64xf32> to vector<24x64xf32>
      %920 = arith.subf %918, %919 : vector<24x64xf32>
      %921 = math.absf %920 : vector<24x64xf32>
      %922 = arith.addf %906, %921 : vector<24x64xf32>
      %923 = arith.index_cast %8 : i32 to index
      %c114 = arith.constant 114 : index
      %924 = vector.load %arg2[%923, %c114] : memref<48x128xf32, #tpu.memory_space<vmem>>, vector<24x1xf32>
      %c114_234 = arith.constant 114 : index
      %c0_235 = arith.constant 0 : index
      %925 = vector.load %arg3[%c114_234, %c0_235] : memref<128x64xf32, #tpu.memory_space<vmem>>, vector<1x64xf32>
      %926 = vector.broadcast %924 : vector<24x1xf32> to vector<24x64xf32>
      %927 = vector.broadcast %925 : vector<1x64xf32> to vector<24x64xf32>
      %928 = arith.subf %926, %927 : vector<24x64xf32>
      %929 = math.absf %928 : vector<24x64xf32>
      %930 = arith.addf %914, %929 : vector<24x64xf32>
      %931 = arith.index_cast %8 : i32 to index
      %c115 = arith.constant 115 : index
      %932 = vector.load %arg2[%931, %c115] : memref<48x128xf32, #tpu.memory_space<vmem>>, vector<24x1xf32>
      %c115_236 = arith.constant 115 : index
      %c0_237 = arith.constant 0 : index
      %933 = vector.load %arg3[%c115_236, %c0_237] : memref<128x64xf32, #tpu.memory_space<vmem>>, vector<1x64xf32>
      %934 = vector.broadcast %932 : vector<24x1xf32> to vector<24x64xf32>
      %935 = vector.broadcast %933 : vector<1x64xf32> to vector<24x64xf32>
      %936 = arith.subf %934, %935 : vector<24x64xf32>
      %937 = math.absf %936 : vector<24x64xf32>
      %938 = arith.addf %922, %937 : vector<24x64xf32>
      %939 = arith.index_cast %8 : i32 to index
      %c116 = arith.constant 116 : index
      %940 = vector.load %arg2[%939, %c116] : memref<48x128xf32, #tpu.memory_space<vmem>>, vector<24x1xf32>
      %c116_238 = arith.constant 116 : index
      %c0_239 = arith.constant 0 : index
      %941 = vector.load %arg3[%c116_238, %c0_239] : memref<128x64xf32, #tpu.memory_space<vmem>>, vector<1x64xf32>
      %942 = vector.broadcast %940 : vector<24x1xf32> to vector<24x64xf32>
      %943 = vector.broadcast %941 : vector<1x64xf32> to vector<24x64xf32>
      %944 = arith.subf %942, %943 : vector<24x64xf32>
      %945 = math.absf %944 : vector<24x64xf32>
      %946 = arith.addf %930, %945 : vector<24x64xf32>
      %947 = arith.index_cast %8 : i32 to index
      %c117 = arith.constant 117 : index
      %948 = vector.load %arg2[%947, %c117] : memref<48x128xf32, #tpu.memory_space<vmem>>, vector<24x1xf32>
      %c117_240 = arith.constant 117 : index
      %c0_241 = arith.constant 0 : index
      %949 = vector.load %arg3[%c117_240, %c0_241] : memref<128x64xf32, #tpu.memory_space<vmem>>, vector<1x64xf32>
      %950 = vector.broadcast %948 : vector<24x1xf32> to vector<24x64xf32>
      %951 = vector.broadcast %949 : vector<1x64xf32> to vector<24x64xf32>
      %952 = arith.subf %950, %951 : vector<24x64xf32>
      %953 = math.absf %952 : vector<24x64xf32>
      %954 = arith.addf %938, %953 : vector<24x64xf32>
      %955 = arith.index_cast %8 : i32 to index
      %c118 = arith.constant 118 : index
      %956 = vector.load %arg2[%955, %c118] : memref<48x128xf32, #tpu.memory_space<vmem>>, vector<24x1xf32>
      %c118_242 = arith.constant 118 : index
      %c0_243 = arith.constant 0 : index
      %957 = vector.load %arg3[%c118_242, %c0_243] : memref<128x64xf32, #tpu.memory_space<vmem>>, vector<1x64xf32>
      %958 = vector.broadcast %956 : vector<24x1xf32> to vector<24x64xf32>
      %959 = vector.broadcast %957 : vector<1x64xf32> to vector<24x64xf32>
      %960 = arith.subf %958, %959 : vector<24x64xf32>
      %961 = math.absf %960 : vector<24x64xf32>
      %962 = arith.addf %946, %961 : vector<24x64xf32>
      %963 = arith.index_cast %8 : i32 to index
      %c119 = arith.constant 119 : index
      %964 = vector.load %arg2[%963, %c119] : memref<48x128xf32, #tpu.memory_space<vmem>>, vector<24x1xf32>
      %c119_244 = arith.constant 119 : index
      %c0_245 = arith.constant 0 : index
      %965 = vector.load %arg3[%c119_244, %c0_245] : memref<128x64xf32, #tpu.memory_space<vmem>>, vector<1x64xf32>
      %966 = vector.broadcast %964 : vector<24x1xf32> to vector<24x64xf32>
      %967 = vector.broadcast %965 : vector<1x64xf32> to vector<24x64xf32>
      %968 = arith.subf %966, %967 : vector<24x64xf32>
      %969 = math.absf %968 : vector<24x64xf32>
      %970 = arith.addf %954, %969 : vector<24x64xf32>
      %971 = arith.index_cast %8 : i32 to index
      %c120 = arith.constant 120 : index
      %972 = vector.load %arg2[%971, %c120] : memref<48x128xf32, #tpu.memory_space<vmem>>, vector<24x1xf32>
      %c120_246 = arith.constant 120 : index
      %c0_247 = arith.constant 0 : index
      %973 = vector.load %arg3[%c120_246, %c0_247] : memref<128x64xf32, #tpu.memory_space<vmem>>, vector<1x64xf32>
      %974 = vector.broadcast %972 : vector<24x1xf32> to vector<24x64xf32>
      %975 = vector.broadcast %973 : vector<1x64xf32> to vector<24x64xf32>
      %976 = arith.subf %974, %975 : vector<24x64xf32>
      %977 = math.absf %976 : vector<24x64xf32>
      %978 = arith.addf %962, %977 : vector<24x64xf32>
      %979 = arith.index_cast %8 : i32 to index
      %c121 = arith.constant 121 : index
      %980 = vector.load %arg2[%979, %c121] : memref<48x128xf32, #tpu.memory_space<vmem>>, vector<24x1xf32>
      %c121_248 = arith.constant 121 : index
      %c0_249 = arith.constant 0 : index
      %981 = vector.load %arg3[%c121_248, %c0_249] : memref<128x64xf32, #tpu.memory_space<vmem>>, vector<1x64xf32>
      %982 = vector.broadcast %980 : vector<24x1xf32> to vector<24x64xf32>
      %983 = vector.broadcast %981 : vector<1x64xf32> to vector<24x64xf32>
      %984 = arith.subf %982, %983 : vector<24x64xf32>
      %985 = math.absf %984 : vector<24x64xf32>
      %986 = arith.addf %970, %985 : vector<24x64xf32>
      %987 = arith.index_cast %8 : i32 to index
      %c122 = arith.constant 122 : index
      %988 = vector.load %arg2[%987, %c122] : memref<48x128xf32, #tpu.memory_space<vmem>>, vector<24x1xf32>
      %c122_250 = arith.constant 122 : index
      %c0_251 = arith.constant 0 : index
      %989 = vector.load %arg3[%c122_250, %c0_251] : memref<128x64xf32, #tpu.memory_space<vmem>>, vector<1x64xf32>
      %990 = vector.broadcast %988 : vector<24x1xf32> to vector<24x64xf32>
      %991 = vector.broadcast %989 : vector<1x64xf32> to vector<24x64xf32>
      %992 = arith.subf %990, %991 : vector<24x64xf32>
      %993 = math.absf %992 : vector<24x64xf32>
      %994 = arith.addf %978, %993 : vector<24x64xf32>
      %995 = arith.index_cast %8 : i32 to index
      %c123 = arith.constant 123 : index
      %996 = vector.load %arg2[%995, %c123] : memref<48x128xf32, #tpu.memory_space<vmem>>, vector<24x1xf32>
      %c123_252 = arith.constant 123 : index
      %c0_253 = arith.constant 0 : index
      %997 = vector.load %arg3[%c123_252, %c0_253] : memref<128x64xf32, #tpu.memory_space<vmem>>, vector<1x64xf32>
      %998 = vector.broadcast %996 : vector<24x1xf32> to vector<24x64xf32>
      %999 = vector.broadcast %997 : vector<1x64xf32> to vector<24x64xf32>
      %1000 = arith.subf %998, %999 : vector<24x64xf32>
      %1001 = math.absf %1000 : vector<24x64xf32>
      %1002 = arith.addf %986, %1001 : vector<24x64xf32>
      %1003 = arith.index_cast %8 : i32 to index
      %c124 = arith.constant 124 : index
      %1004 = vector.load %arg2[%1003, %c124] : memref<48x128xf32, #tpu.memory_space<vmem>>, vector<24x1xf32>
      %c124_254 = arith.constant 124 : index
      %c0_255 = arith.constant 0 : index
      %1005 = vector.load %arg3[%c124_254, %c0_255] : memref<128x64xf32, #tpu.memory_space<vmem>>, vector<1x64xf32>
      %1006 = vector.broadcast %1004 : vector<24x1xf32> to vector<24x64xf32>
      %1007 = vector.broadcast %1005 : vector<1x64xf32> to vector<24x64xf32>
      %1008 = arith.subf %1006, %1007 : vector<24x64xf32>
      %1009 = math.absf %1008 : vector<24x64xf32>
      %1010 = arith.addf %994, %1009 : vector<24x64xf32>
      %1011 = arith.index_cast %8 : i32 to index
      %c125 = arith.constant 125 : index
      %1012 = vector.load %arg2[%1011, %c125] : memref<48x128xf32, #tpu.memory_space<vmem>>, vector<24x1xf32>
      %c125_256 = arith.constant 125 : index
      %c0_257 = arith.constant 0 : index
      %1013 = vector.load %arg3[%c125_256, %c0_257] : memref<128x64xf32, #tpu.memory_space<vmem>>, vector<1x64xf32>
      %1014 = vector.broadcast %1012 : vector<24x1xf32> to vector<24x64xf32>
      %1015 = vector.broadcast %1013 : vector<1x64xf32> to vector<24x64xf32>
      %1016 = arith.subf %1014, %1015 : vector<24x64xf32>
      %1017 = math.absf %1016 : vector<24x64xf32>
      %1018 = arith.addf %1002, %1017 : vector<24x64xf32>
      %1019 = arith.index_cast %8 : i32 to index
      %c126 = arith.constant 126 : index
      %1020 = vector.load %arg2[%1019, %c126] : memref<48x128xf32, #tpu.memory_space<vmem>>, vector<24x1xf32>
      %c126_258 = arith.constant 126 : index
      %c0_259 = arith.constant 0 : index
      %1021 = vector.load %arg3[%c126_258, %c0_259] : memref<128x64xf32, #tpu.memory_space<vmem>>, vector<1x64xf32>
      %1022 = vector.broadcast %1020 : vector<24x1xf32> to vector<24x64xf32>
      %1023 = vector.broadcast %1021 : vector<1x64xf32> to vector<24x64xf32>
      %1024 = arith.subf %1022, %1023 : vector<24x64xf32>
      %1025 = math.absf %1024 : vector<24x64xf32>
      %1026 = arith.addf %1010, %1025 : vector<24x64xf32>
      %1027 = arith.index_cast %8 : i32 to index
      %c127 = arith.constant 127 : index
      %1028 = vector.load %arg2[%1027, %c127] : memref<48x128xf32, #tpu.memory_space<vmem>>, vector<24x1xf32>
      %c127_260 = arith.constant 127 : index
      %c0_261 = arith.constant 0 : index
      %1029 = vector.load %arg3[%c127_260, %c0_261] : memref<128x64xf32, #tpu.memory_space<vmem>>, vector<1x64xf32>
      %1030 = vector.broadcast %1028 : vector<24x1xf32> to vector<24x64xf32>
      %1031 = vector.broadcast %1029 : vector<1x64xf32> to vector<24x64xf32>
      %1032 = arith.subf %1030, %1031 : vector<24x64xf32>
      %1033 = math.absf %1032 : vector<24x64xf32>
      %1034 = arith.addf %1018, %1033 : vector<24x64xf32>
      %1035 = arith.addf %1026, %1034 : vector<24x64xf32>
      %1036 = arith.index_cast %8 : i32 to index
      %c0_262 = arith.constant 0 : index
      %1037 = vector.load %arg6[%1036, %c0_262] : memref<48x64xf32, #tpu.memory_space<vmem>>, vector<24x64xf32>
      %1038 = arith.addf %1037, %1035 : vector<24x64xf32>
      %1039 = arith.index_cast %8 : i32 to index
      %c0_263 = arith.constant 0 : index
      %1040 = vector.load %arg6[%1039, %c0_263] : memref<48x64xf32, #tpu.memory_space<vmem>>, vector<24x64xf32>
      tpu.vector_store %arg6[%1039, %c0_263], %1038 {strides = array<i32>} : memref<48x64xf32, #tpu.memory_space<vmem>>, vector<24x64xf32>,
    }
    %c2_i32_2 = arith.constant 2 : i32
    %c0_i32_3 = arith.constant 0 : i32
    %4 = arith.cmpi eq, %arg1, %c0_i32_3 : i32
    %5 = arith.extui %4 : i1 to i32
    %c0_i32_4 = arith.constant 0 : i32
    %6 = arith.cmpi ne, %5, %c0_i32_4 : i32
    scf.if %6 {
      %c0 = arith.constant 0 : index
      %c0_5 = arith.constant 0 : index
      %7 = vector.load %arg6[%c0, %c0_5] : memref<48x64xf32, #tpu.memory_space<vmem>>, vector<48x64xf32>
      %cst = arith.constant 0.000000e+00 : f32
      %8 = vector.broadcast %cst : f32 to vector<48x64xf32>
      %9 = arith.subf %8, %7 : vector<48x64xf32>
      %c0_6 = arith.constant 0 : index
      %c0_7 = arith.constant 0 : index
      %10 = vector.load %arg6[%c0_6, %c0_7] : memref<48x64xf32, #tpu.memory_space<vmem>>, vector<48x64xf32>
      tpu.vector_store %arg6[%c0_6, %c0_7], %9 {strides = array<i32>} : memref<48x64xf32, #tpu.memory_space<vmem>>, vector<48x64xf32>,
    } else {
    }
    return
  }
  func.func @transform_0(%arg0: i32, %arg1: i32) -> (i32, i32) {
    %c0_i32 = arith.constant 0 : i32
    %c0_i32_0 = arith.constant 0 : i32
    return %c0_i32, %arg1 : i32, i32
  }
  func.func @transform_1(%arg0: i32, %arg1: i32) -> (i32, i32) {
    %c0_i32 = arith.constant 0 : i32
    return %arg1, %arg0 : i32, i32
  }
  func.func @transform_2(%arg0: i32, %arg1: i32) -> (i32, i32) {
    %c0_i32 = arith.constant 0 : i32
    %c0_i32_0 = arith.constant 0 : i32
    return %c0_i32, %arg0 : i32, i32
  }
  func.func @transform_3(%arg0: i32, %arg1: i32) -> (i32, i32) {
    %c0_i32 = arith.constant 0 : i32
    %c0_i32_0 = arith.constant 0 : i32
    return %c0_i32, %arg0 : i32, i32
  }
  func.func @transform_4(%arg0: i32, %arg1: i32) -> (i32, i32) {
    %c0_i32 = arith.constant 0 : i32
    %c0_i32_0 = arith.constant 0 : i32
    return %c0_i32, %arg0 : i32, i32
  }
}

</mosaic_0001>

<llo_original>
// kernel: tpu_custom_call.1
$region0: #{tpu_custom_call.1}
  #allocation0 [shape = 'u32[]', space=smem, size = 0x4, offset = 0x4, fixed_abs, tag = 'smem constant byte address 0x4 - core index']
  #allocation1 [shape = 'u32[72,128]{1,0:T(1,128)}', space=vmem, size = 0x9000, scoped, tag = 'internal scratch']
  %s0 = inlined_call_operand.vmem [shape: f32[48,128], index: 0, kind: input, shape index: {}]
  %s1 = inlined_call_operand.vmem [shape: f32[128,64], index: 1, kind: input, shape index: {}]
  %s2 = inlined_call_operand.vmem [shape: f32[1,64], index: 2, kind: input, shape index: {}]
  %s3 = inlined_call_operand.vmem [shape: f32[1,64], index: 3, kind: input, shape index: {}]
  %s4 = inlined_call_operand.hbm [shape: f32[48,64], index: 4, kind: output, shape index: {}]
  %s5 = sld [smem:[#allocation0]]
  $region41: #{tpu_custom_call.1} parent=0
    _
  %s7 = ssub.s32 1, %s5
  %s8 = scalar_select 0, %s7, %s5
  $region1: #{tpu_custom_call.1} parent=0
    #allocation2 [shape = 'u8[24576]{0}', space=vmem, size = 0x6000, scoped, tag = 'output window, operand 0, single buffered']
    #allocation3 [shape = 's32[1]{0}', space=sflag, size = 0x4, scoped, tag = 'scoped memory for tpu_custom_call.1']
    %9 = vsyncpa [#allocation3], 0
    // Predicated region
    $region2: #{tpu_custom_call.1} parent=1 // pred_check
      _
    $region3: #{tpu_custom_call.1} parent=1 // pred_check_branch
      %11 = sbr.rel (0) target = $region5
    $region4: #{tpu_custom_call.1} parent=1 // pred_region
      _
    $region5: #{tpu_custom_call.1} parent=1 // pred_fallthru
      _
    // Predicated region
    $region6: #{tpu_custom_call.1} parent=1 // pred_check
      _
    $region7: #{tpu_custom_call.1} parent=1 // pred_check_branch
      %13 = sbr.rel (0) target = $region9
    $region8: #{tpu_custom_call.1} parent=1 // pred_region
      _
    $region9: #{tpu_custom_call.1} parent=1 // pred_fallthru
      _
    // Predicated region
    $region10: #{tpu_custom_call.1} parent=1 // pred_check
      _
    $region11: #{tpu_custom_call.1} parent=1 // pred_check_branch
      %15 = sbr.rel (0) target = $region13
    $region12: #{tpu_custom_call.1} parent=1 // pred_region
      _
    $region13: #{tpu_custom_call.1} parent=1 // pred_fallthru
      _
    // Predicated region
    $region14: #{tpu_custom_call.1} parent=1 // pred_check
      _
    $region15: #{tpu_custom_call.1} parent=1 // pred_check_branch
      %17 = sbr.rel (0) target = $region17
    $region16: #{tpu_custom_call.1} parent=1 // pred_region
      _
    $region17: #{tpu_custom_call.1} parent=1 // pred_fallthru
      _
    %p18 = scmp.eq.s32.totalorder 0, 0
    // Predicated region
    $region18: #{tpu_custom_call.1} parent=1 // pred_check
      %p19 = pneg %p18
    $region19: #{tpu_custom_call.1} parent=1 // pred_check_branch
      %21 = sbr.rel (%p19) target = $region21
    $region20: #{tpu_custom_call.1} parent=1 // pred_region
      %vm22 = vcmask 523264
      %23 = vst.msk [vmem:[#allocation2] sm:$0xff] %vm22, 0.0
      %24 = vst.msk [vmem:[#allocation2 + $0x8] sm:$0xff] %vm22, 0.0
      %25 = vst.msk [vmem:[#allocation2 + $0x10] sm:$0xff] %vm22, 0.0
      %26 = vst.msk [vmem:[#allocation2 + $0x18] sm:$0xff] %vm22, 0.0
      %27 = vst.msk [vmem:[#allocation2 + $0x20] sm:$0xff] %vm22, 0.0
      %28 = vst.msk [vmem:[#allocation2 + $0x28] sm:$0xff] %vm22, 0.0
    $region21: #{tpu_custom_call.1} parent=1 // pred_fallthru
      _
    loop: start=0, step=1, limit=2
    $region22: #{tpu_custom_call.1} parent=1 // loop_pre_header
      _
    $region23: #{tpu_custom_call.1} parent=1 // loop_header
      %s30 = sphi 0, %s34
      %p31 = scmp.ge.s32.totalorder %s30, 2
    $region24: #{tpu_custom_call.1} parent=1 // loop_header_branch
      %33 = sbr.rel (%p31) target = $region28
    $region25: #{tpu_custom_call.1} parent=1 // loop_body
      %s35 = smul.u32 %s30, 24
      %s36 = scalar_lea.vmem %s0, %s35
      %v37 = vld [vmem:[%s36] sm:$0xff]
      %v38 = vld [vmem:[%s36 + $0x8] sm:$0xff]
      %v39 = vld [vmem:[%s36 + $0x10] sm:$0xff]
      %v40 = vld [vmem:[%s1] sm:$0x1]
      %42 = vset.pattern.permute.xlu0 0
      %43 = vperm.xlu0 %42, %v37
      %v44 = vpop.permute.xlu0 %43
      %47 = vset.pattern.permute.xlu0 0
      %48 = vperm.xlu0 %47, %v38
      %v49 = vpop.permute.xlu0 %48
      %52 = vset.pattern.permute.xlu0 0
      %53 = vperm.xlu0 %52, %v39
      %v54 = vpop.permute.xlu0 %53
      %v56 = vperm.slane %v40, 0
      %v57 = vsub.f32 %v44, %v56
      %v58 = vsub.f32 %v49, %v56
      %v59 = vsub.f32 %v54, %v56
      %v60 = vand.u32 2147483647, %v57
      %v61 = vand.u32 2147483647, %v58
      %v62 = vand.u32 2147483647, %v59
      %v63 = vadd.f32 %v60, 0.0
      %v64 = vadd.f32 %v61, 0.0
      %v65 = vadd.f32 %v62, 0.0
      %v66 = vld [vmem:[%s1 + $0x1] sm:$0x1]
      %67 = vset.pattern.permute.xlu0 1
      %68 = vperm.xlu0 %67, %v37
      %v69 = vpop.permute.xlu0 %68
      %71 = vset.pattern.permute.xlu0 1
      %72 = vperm.xlu0 %71, %v38
      %v73 = vpop.permute.xlu0 %72
      %75 = vset.pattern.permute.xlu0 1
      %76 = vperm.xlu0 %75, %v39
      %v77 = vpop.permute.xlu0 %76
      %v79 = vperm.slane %v66, 0
      %v80 = vsub.f32 %v69, %v79
      %v81 = vsub.f32 %v73, %v79
      %v82 = vsub.f32 %v77, %v79
      %v83 = vand.u32 2147483647, %v80
      %v84 = vand.u32 2147483647, %v81
      %v85 = vand.u32 2147483647, %v82
      %v86 = vadd.f32 %v83, 0.0
      %v87 = vadd.f32 %v84, 0.0
      %v88 = vadd.f32 %v85, 0.0
      %v89 = vld [vmem:[%s1 + $0x2] sm:$0x1]
      %90 = vset.pattern.permute.xlu0 2
      %91 = vperm.xlu0 %90, %v37
      %v92 = vpop.permute.xlu0 %91
      %94 = vset.pattern.permute.xlu0 2
      %95 = vperm.xlu0 %94, %v38
      %v96 = vpop.permute.xlu0 %95
      %98 = vset.pattern.permute.xlu0 2
      %99 = vperm.xlu0 %98, %v39
      %v100 = vpop.permute.xlu0 %99
      %v102 = vperm.slane %v89, 0
      %v103 = vsub.f32 %v92, %v102
      %v104 = vsub.f32 %v96, %v102
      %v105 = vsub.f32 %v100, %v102
      %v106 = vand.u32 2147483647, %v103
      %v107 = vand.u32 2147483647, %v104
      %v108 = vand.u32 2147483647, %v105
      %v109 = vadd.f32 %v63, %v106
      %v110 = vadd.f32 %v64, %v107
      %v111 = vadd.f32 %v65, %v108
      %v112 = vld [vmem:[%s1 + $0x3] sm:$0x1]
      %113 = vset.pattern.permute.xlu0 3
      %114 = vperm.xlu0 %113, %v37
      %v115 = vpop.permute.xlu0 %114
      %117 = vset.pattern.permute.xlu0 3
      %118 = vperm.xlu0 %117, %v38
      %v119 = vpop.permute.xlu0 %118
      %121 = vset.pattern.permute.xlu0 3
      %122 = vperm.xlu0 %121, %v39
      %v123 = vpop.permute.xlu0 %122
      %v125 = vperm.slane %v112, 0
      %v126 = vsub.f32 %v115, %v125
      %v127 = vsub.f32 %v119, %v125
      %v128 = vsub.f32 %v123, %v125
      %v129 = vand.u32 2147483647, %v126
      %v130 = vand.u32 2147483647, %v127
      %v131 = vand.u32 2147483647, %v128
      %v132 = vadd.f32 %v86, %v129
      %v133 = vadd.f32 %v87, %v130
      %v134 = vadd.f32 %v88, %v131
      %v135 = vld [vmem:[%s1 + $0x4] sm:$0x1]
      %136 = vset.pattern.permute.xlu0 4
      %137 = vperm.xlu0 %136, %v37
      %v138 = vpop.permute.xlu0 %137
      %140 = vset.pattern.permute.xlu0 4
      %141 = vperm.xlu0 %140, %v38
      %v142 = vpop.permute.xlu0 %141
      %144 = vset.pattern.permute.xlu0 4
      %145 = vperm.xlu0 %144, %v39
      %v146 = vpop.permute.xlu0 %145
      %v148 = vperm.slane %v135, 0
      %v149 = vsub.f32 %v138, %v148
      %v150 = vsub.f32 %v142, %v148
      %v151 = vsub.f32 %v146, %v148
      %v152 = vand.u32 2147483647, %v149
      %v153 = vand.u32 2147483647, %v150
      %v154 = vand.u32 2147483647, %v151
      %v155 = vadd.f32 %v109, %v152
      %v156 = vadd.f32 %v110, %v153
      %v157 = vadd.f32 %v111, %v154
      %v158 = vld [vmem:[%s1 + $0x5] sm:$0x1]
      %159 = vset.pattern.permute.xlu0 5
      %160 = vperm.xlu0 %159, %v37
      %v161 = vpop.permute.xlu0 %160
      %163 = vset.pattern.permute.xlu0 5
      %164 = vperm.xlu0 %163, %v38
      %v165 = vpop.permute.xlu0 %164
      %167 = vset.pattern.permute.xlu0 5
      %168 = vperm.xlu0 %167, %v39
      %v169 = vpop.permute.xlu0 %168
      %v171 = vperm.slane %v158, 0
      %v172 = vsub.f32 %v161, %v171
      %v173 = vsub.f32 %v165, %v171
      %v174 = vsub.f32 %v169, %v171
      %v175 = vand.u32 2147483647, %v172
      %v176 = vand.u32 2147483647, %v173
      %v177 = vand.u32 2147483647, %v174
      %v178 = vadd.f32 %v132, %v175
      %v179 = vadd.f32 %v133, %v176
      %v180 = vadd.f32 %v134, %v177
      %v181 = vld [vmem:[%s1 + $0x6] sm:$0x1]
      %182 = vset.pattern.permute.xlu0 6
      %183 = vperm.xlu0 %182, %v37
      %v184 = vpop.permute.xlu0 %183
      %186 = vset.pattern.permute.xlu0 6
      %187 = vperm.xlu0 %186, %v38
      %v188 = vpop.permute.xlu0 %187
      %190 = vset.pattern.permute.xlu0 6
      %191 = vperm.xlu0 %190, %v39
      %v192 = vpop.permute.xlu0 %191
      %v194 = vperm.slane %v181, 0
      %v195 = vsub.f32 %v184, %v194
      %v196 = vsub.f32 %v188, %v194
      %v197 = vsub.f32 %v192, %v194
      %v198 = vand.u32 2147483647, %v195
      %v199 = vand.u32 2147483647, %v196
      %v200 = vand.u32 2147483647, %v197
      %v201 = vadd.f32 %v155, %v198
      %v202 = vadd.f32 %v156, %v199
      %v203 = vadd.f32 %v157, %v200
      %v204 = vld [vmem:[%s1 + $0x7] sm:$0x1]
      %205 = vset.pattern.permute.xlu0 7
      %206 = vperm.xlu0 %205, %v37
      %v207 = vpop.permute.xlu0 %206
      %209 = vset.pattern.permute.xlu0 7
      %210 = vperm.xlu0 %209, %v38
      %v211 = vpop.permute.xlu0 %210
      %213 = vset.pattern.permute.xlu0 7
      %214 = vperm.xlu0 %213, %v39
      %v215 = vpop.permute.xlu0 %214
      %v217 = vperm.slane %v204, 0
      %v218 = vsub.f32 %v207, %v217
      %v219 = vsub.f32 %v211, %v217
      %v220 = vsub.f32 %v215, %v217
      %v221 = vand.u32 2147483647, %v218
      %v222 = vand.u32 2147483647, %v219
      %v223 = vand.u32 2147483647, %v220
      %v224 = vadd.f32 %v178, %v221
      %v225 = vadd.f32 %v179, %v222
      %v226 = vadd.f32 %v180, %v223
      %v227 = vld [vmem:[%s1 + $0x8] sm:$0x1]
      %228 = vset.pattern.permute.xlu0 8
      %229 = vperm.xlu0 %228, %v37
      %v230 = vpop.permute.xlu0 %229
      %232 = vset.pattern.permute.xlu0 8
      %233 = vperm.xlu0 %232, %v38
      %v234 = vpop.permute.xlu0 %233
      %236 = vset.pattern.permute.xlu0 8
      %237 = vperm.xlu0 %236, %v39
      %v238 = vpop.permute.xlu0 %237
      %v240 = vperm.slane %v227, 0
      %v241 = vsub.f32 %v230, %v240
      %v242 = vsub.f32 %v234, %v240
      %v243 = vsub.f32 %v238, %v240
      %v244 = vand.u32 2147483647, %v241
      %v245 = vand.u32 2147483647, %v242
      %v246 = vand.u32 2147483647, %v243
      %v247 = vadd.f32 %v201, %v244
      %v248 = vadd.f32 %v202, %v245
      %v249 = vadd.f32 %v203, %v246
      %v250 = vld [vmem:[%s1 + $0x9] sm:$0x1]
      %251 = vset.pattern.permute.xlu0 9
      %252 = vperm.xlu0 %251, %v37
      %v253 = vpop.permute.xlu0 %252
      %255 = vset.pattern.permute.xlu0 9
      %256 = vperm.xlu0 %255, %v38
      %v257 = vpop.permute.xlu0 %256
      %259 = vset.pattern.permute.xlu0 9
      %260 = vperm.xlu0 %259, %v39
      %v261 = vpop.permute.xlu0 %260
      %v263 = vperm.slane %v250, 0
      %v264 = vsub.f32 %v253, %v263
      %v265 = vsub.f32 %v257, %v263
      %v266 = vsub.f32 %v261, %v263
      %v267 = vand.u32 2147483647, %v264
      %v268 = vand.u32 2147483647, %v265
      %v269 = vand.u32 2147483647, %v266
      %v270 = vadd.f32 %v224, %v267
      %v271 = vadd.f32 %v225, %v268
      %v272 = vadd.f32 %v226, %v269
      %v273 = vld [vmem:[%s1 + $0xa] sm:$0x1]
      %274 = vset.pattern.permute.xlu0 10
      %275 = vperm.xlu0 %274, %v37
      %v276 = vpop.permute.xlu0 %275
      %278 = vset.pattern.permute.xlu0 10
      %279 = vperm.xlu0 %278, %v38
      %v280 = vpop.permute.xlu0 %279
      %282 = vset.pattern.permute.xlu0 10
      %283 = vperm.xlu0 %282, %v39
      %v284 = vpop.permute.xlu0 %283
      %v286 = vperm.slane %v273, 0
      %v287 = vsub.f32 %v276, %v286
      %v288 = vsub.f32 %v280, %v286
      %v289 = vsub.f32 %v284, %v286
      %v290 = vand.u32 2147483647, %v287
      %v291 = vand.u32 2147483647, %v288
      %v292 = vand.u32 2147483647, %v289
      %v293 = vadd.f32 %v247, %v290
      %v294 = vadd.f32 %v248, %v291
      %v295 = vadd.f32 %v249, %v292
      %v296 = vld [vmem:[%s1 + $0xb] sm:$0x1]
      %297 = vset.pattern.permute.xlu0 11
      %298 = vperm.xlu0 %297, %v37
      %v299 = vpop.permute.xlu0 %298
      %301 = vset.pattern.permute.xlu0 11
      %302 = vperm.xlu0 %301, %v38
      %v303 = vpop.permute.xlu0 %302
      %305 = vset.pattern.permute.xlu0 11
      %306 = vperm.xlu0 %305, %v39
      %v307 = vpop.permute.xlu0 %306
      %v309 = vperm.slane %v296, 0
      %v310 = vsub.f32 %v299, %v309
      %v311 = vsub.f32 %v303, %v309
      %v312 = vsub.f32 %v307, %v309
      %v313 = vand.u32 2147483647, %v310
      %v314 = vand.u32 2147483647, %v311
      %v315 = vand.u32 2147483647, %v312
      %v316 = vadd.f32 %v270, %v313
      %v317 = vadd.f32 %v271, %v314
      %v318 = vadd.f32 %v272, %v315
      %v319 = vld [vmem:[%s1 + $0xc] sm:$0x1]
      %320 = vset.pattern.permute.xlu0 12
      %321 = vperm.xlu0 %320, %v37
      %v322 = vpop.permute.xlu0 %321
      %324 = vset.pattern.permute.xlu0 12
      %325 = vperm.xlu0 %324, %v38
      %v326 = vpop.permute.xlu0 %325
      %328 = vset.pattern.permute.xlu0 12
      %329 = vperm.xlu0 %328, %v39
      %v330 = vpop.permute.xlu0 %329
      %v332 = vperm.slane %v319, 0
      %v333 = vsub.f32 %v322, %v332
      %v334 = vsub.f32 %v326, %v332
      %v335 = vsub.f32 %v330, %v332
      %v336 = vand.u32 2147483647, %v333
      %v337 = vand.u32 2147483647, %v334
      %v338 = vand.u32 2147483647, %v335
      %v339 = vadd.f32 %v293, %v336
      %v340 = vadd.f32 %v294, %v337
      %v341 = vadd.f32 %v295, %v338
      %v342 = vld [vmem:[%s1 + $0xd] sm:$0x1]
      %343 = vset.pattern.permute.xlu0 13
      %344 = vperm.xlu0 %343, %v37
      %v345 = vpop.permute.xlu0 %344
      %347 = vset.pattern.permute.xlu0 13
      %348 = vperm.xlu0 %347, %v38
      %v349 = vpop.permute.xlu0 %348
      %351 = vset.pattern.permute.xlu0 13
      %352 = vperm.xlu0 %351, %v39
      %v353 = vpop.permute.xlu0 %352
      %v355 = vperm.slane %v342, 0
      %v356 = vsub.f32 %v345, %v355
      %v357 = vsub.f32 %v349, %v355
      %v358 = vsub.f32 %v353, %v355
      %v359 = vand.u32 2147483647, %v356
      %v360 = vand.u32 2147483647, %v357
      %v361 = vand.u32 2147483647, %v358
      %v362 = vadd.f32 %v316, %v359
      %v363 = vadd.f32 %v317, %v360
      %v364 = vadd.f32 %v318, %v361
      %v365 = vld [vmem:[%s1 + $0xe] sm:$0x1]
      %366 = vset.pattern.permute.xlu0 14
      %367 = vperm.xlu0 %366, %v37
      %v368 = vpop.permute.xlu0 %367
      %370 = vset.pattern.permute.xlu0 14
      %371 = vperm.xlu0 %370, %v38
      %v372 = vpop.permute.xlu0 %371
      %374 = vset.pattern.permute.xlu0 14
      %375 = vperm.xlu0 %374, %v39
      %v376 = vpop.permute.xlu0 %375
      %v378 = vperm.slane %v365, 0
      %v379 = vsub.f32 %v368, %v378
      %v380 = vsub.f32 %v372, %v378
      %v381 = vsub.f32 %v376, %v378
      %v382 = vand.u32 2147483647, %v379
      %v383 = vand.u32 2147483647, %v380
      %v384 = vand.u32 2147483647, %v381
      %v385 = vadd.f32 %v339, %v382
      %v386 = vadd.f32 %v340, %v383
      %v387 = vadd.f32 %v341, %v384
      %v388 = vld [vmem:[%s1 + $0xf] sm:$0x1]
      %389 = vset.pattern.permute.xlu0 15
      %390 = vperm.xlu0 %389, %v37
      %v391 = vpop.permute.xlu0 %390
      %393 = vset.pattern.permute.xlu0 15
      %394 = vperm.xlu0 %393, %v38
      %v395 = vpop.permute.xlu0 %394
      %397 = vset.pattern.permute.xlu0 15
      %398 = vperm.xlu0 %397, %v39
      %v399 = vpop.permute.xlu0 %398
      %v401 = vperm.slane %v388, 0
      %v402 = vsub.f32 %v391, %v401
      %v403 = vsub.f32 %v395, %v401
      %v404 = vsub.f32 %v399, %v401
      %v405 = vand.u32 2147483647, %v402
      %v406 = vand.u32 2147483647, %v403
      %v407 = vand.u32 2147483647, %v404
      %v408 = vadd.f32 %v362, %v405
      %v409 = vadd.f32 %v363, %v406
      %v410 = vadd.f32 %v364, %v407
      %v411 = vld [vmem:[%s1 + $0x10] sm:$0x1]
      %412 = vset.pattern.permute.xlu0 16
      %413 = vperm.xlu0 %412, %v37
      %v414 = vpop.permute.xlu0 %413
      %416 = vset.pattern.permute.xlu0 16
      %417 = vperm.xlu0 %416, %v38
      %v418 = vpop.permute.xlu0 %417
      %420 = vset.pattern.permute.xlu0 16
      %421 = vperm.xlu0 %420, %v39
      %v422 = vpop.permute.xlu0 %421
      %v424 = vperm.slane %v411, 0
      %v425 = vsub.f32 %v414, %v424
      %v426 = vsub.f32 %v418, %v424
      %v427 = vsub.f32 %v422, %v424
      %v428 = vand.u32 2147483647, %v425
      %v429 = vand.u32 2147483647, %v426
      %v430 = vand.u32 2147483647, %v427
      %v431 = vadd.f32 %v385, %v428
      %v432 = vadd.f32 %v386, %v429
      %v433 = vadd.f32 %v387, %v430
      %v434 = vld [vmem:[%s1 + $0x11] sm:$0x1]
      %435 = vset.pattern.permute.xlu0 17
      %436 = vperm.xlu0 %435, %v37
      %v437 = vpop.permute.xlu0 %436
      %439 = vset.pattern.permute.xlu0 17
      %440 = vperm.xlu0 %439, %v38
      %v441 = vpop.permute.xlu0 %440
      %443 = vset.pattern.permute.xlu0 17
      %444 = vperm.xlu0 %443, %v39
      %v445 = vpop.permute.xlu0 %444
      %v447 = vperm.slane %v434, 0
      %v448 = vsub.f32 %v437, %v447
      %v449 = vsub.f32 %v441, %v447
      %v450 = vsub.f32 %v445, %v447
      %v451 = vand.u32 2147483647, %v448
      %v452 = vand.u32 2147483647, %v449
      %v453 = vand.u32 2147483647, %v450
      %v454 = vadd.f32 %v408, %v451
      %v455 = vadd.f32 %v409, %v452
      %v456 = vadd.f32 %v410, %v453
      %v457 = vld [vmem:[%s1 + $0x12] sm:$0x1]
      %458 = vset.pattern.permute.xlu0 18
      %459 = vperm.xlu0 %458, %v37
      %v460 = vpop.permute.xlu0 %459
      %462 = vset.pattern.permute.xlu0 18
      %463 = vperm.xlu0 %462, %v38
      %v464 = vpop.permute.xlu0 %463
      %466 = vset.pattern.permute.xlu0 18
      %467 = vperm.xlu0 %466, %v39
      %v468 = vpop.permute.xlu0 %467
      %v470 = vperm.slane %v457, 0
      %v471 = vsub.f32 %v460, %v470
      %v472 = vsub.f32 %v464, %v470
      %v473 = vsub.f32 %v468, %v470
      %v474 = vand.u32 2147483647, %v471
      %v475 = vand.u32 2147483647, %v472
      %v476 = vand.u32 2147483647, %v473
      %v477 = vadd.f32 %v431, %v474
      %v478 = vadd.f32 %v432, %v475
      %v479 = vadd.f32 %v433, %v476
      %v480 = vld [vmem:[%s1 + $0x13] sm:$0x1]
      %481 = vset.pattern.permute.xlu0 19
      %482 = vperm.xlu0 %481, %v37
      %v483 = vpop.permute.xlu0 %482
      %485 = vset.pattern.permute.xlu0 19
      %486 = vperm.xlu0 %485, %v38
      %v487 = vpop.permute.xlu0 %486
      %489 = vset.pattern.permute.xlu0 19
      %490 = vperm.xlu0 %489, %v39
      %v491 = vpop.permute.xlu0 %490
      %v493 = vperm.slane %v480, 0
      %v494 = vsub.f32 %v483, %v493
      %v495 = vsub.f32 %v487, %v493
      %v496 = vsub.f32 %v491, %v493
      %v497 = vand.u32 2147483647, %v494
      %v498 = vand.u32 2147483647, %v495
      %v499 = vand.u32 2147483647, %v496
      %v500 = vadd.f32 %v454, %v497
      %v501 = vadd.f32 %v455, %v498
      %v502 = vadd.f32 %v456, %v499
      %v503 = vld [vmem:[%s1 + $0x14] sm:$0x1]
      %504 = vset.pattern.permute.xlu0 20
      %505 = vperm.xlu0 %504, %v37
      %v506 = vpop.permute.xlu0 %505
      %508 = vset.pattern.permute.xlu0 20
      %509 = vperm.xlu0 %508, %v38
      %v510 = vpop.permute.xlu0 %509
      %512 = vset.pattern.permute.xlu0 20
      %513 = vperm.xlu0 %512, %v39
      %v514 = vpop.permute.xlu0 %513
      %v516 = vperm.slane %v503, 0
      %v517 = vsub.f32 %v506, %v516
      %v518 = vsub.f32 %v510, %v516
      %v519 = vsub.f32 %v514, %v516
      %v520 = vand.u32 2147483647, %v517
      %v521 = vand.u32 2147483647, %v518
      %v522 = vand.u32 2147483647, %v519
      %v523 = vadd.f32 %v477, %v520
      %v524 = vadd.f32 %v478, %v521
      %v525 = vadd.f32 %v479, %v522
      %v526 = vld [vmem:[%s1 + $0x15] sm:$0x1]
      %527 = vset.pattern.permute.xlu0 21
      %528 = vperm.xlu0 %527, %v37
      %v529 = vpop.permute.xlu0 %528
      %531 = vset.pattern.permute.xlu0 21
      %532 = vperm.xlu0 %531, %v38
      %v533 = vpop.permute.xlu0 %532
      %535 = vset.pattern.permute.xlu0 21
      %536 = vperm.xlu0 %535, %v39
      %v537 = vpop.permute.xlu0 %536
      %v539 = vperm.slane %v526, 0
      %v540 = vsub.f32 %v529, %v539
      %v541 = vsub.f32 %v533, %v539
      %v542 = vsub.f32 %v537, %v539
      %v543 = vand.u32 2147483647, %v540
      %v544 = vand.u32 2147483647, %v541
      %v545 = vand.u32 2147483647, %v542
      %v546 = vadd.f32 %v500, %v543
      %v547 = vadd.f32 %v501, %v544
      %v548 = vadd.f32 %v502, %v545
      %v549 = vld [vmem:[%s1 + $0x16] sm:$0x1]
      %550 = vset.pattern.permute.xlu0 22
      %551 = vperm.xlu0 %550, %v37
      %v552 = vpop.permute.xlu0 %551
      %554 = vset.pattern.permute.xlu0 22
      %555 = vperm.xlu0 %554, %v38
      %v556 = vpop.permute.xlu0 %555
      %558 = vset.pattern.permute.xlu0 22
      %559 = vperm.xlu0 %558, %v39
      %v560 = vpop.permute.xlu0 %559
      %v562 = vperm.slane %v549, 0
      %v563 = vsub.f32 %v552, %v562
      %v564 = vsub.f32 %v556, %v562
      %v565 = vsub.f32 %v560, %v562
      %v566 = vand.u32 2147483647, %v563
      %v567 = vand.u32 2147483647, %v564
      %v568 = vand.u32 2147483647, %v565
      %v569 = vadd.f32 %v523, %v566
      %v570 = vadd.f32 %v524, %v567
      %v571 = vadd.f32 %v525, %v568
      %v572 = vld [vmem:[%s1 + $0x17] sm:$0x1]
      %573 = vset.pattern.permute.xlu0 23
      %574 = vperm.xlu0 %573, %v37
      %v575 = vpop.permute.xlu0 %574
      %577 = vset.pattern.permute.xlu0 23
      %578 = vperm.xlu0 %577, %v38
      %v579 = vpop.permute.xlu0 %578
      %581 = vset.pattern.permute.xlu0 23
      %582 = vperm.xlu0 %581, %v39
      %v583 = vpop.permute.xlu0 %582
      %v585 = vperm.slane %v572, 0
      %v586 = vsub.f32 %v575, %v585
      %v587 = vsub.f32 %v579, %v585
      %v588 = vsub.f32 %v583, %v585
      %v589 = vand.u32 2147483647, %v586
      %v590 = vand.u32 2147483647, %v587
      %v591 = vand.u32 2147483647, %v588
      %v592 = vadd.f32 %v546, %v589
      %v593 = vadd.f32 %v547, %v590
      %v594 = vadd.f32 %v548, %v591
      %v595 = vld [vmem:[%s1 + $0x18] sm:$0x1]
      %596 = vset.pattern.permute.xlu0 24
      %597 = vperm.xlu0 %596, %v37
      %v598 = vpop.permute.xlu0 %597
      %600 = vset.pattern.permute.xlu0 24
      %601 = vperm.xlu0 %600, %v38
      %v602 = vpop.permute.xlu0 %601
      %604 = vset.pattern.permute.xlu0 24
      %605 = vperm.xlu0 %604, %v39
      %v606 = vpop.permute.xlu0 %605
      %v608 = vperm.slane %v595, 0
      %v609 = vsub.f32 %v598, %v608
      %v610 = vsub.f32 %v602, %v608
      %v611 = vsub.f32 %v606, %v608
      %v612 = vand.u32 2147483647, %v609
      %v613 = vand.u32 2147483647, %v610
      %v614 = vand.u32 2147483647, %v611
      %v615 = vadd.f32 %v569, %v612
      %v616 = vadd.f32 %v570, %v613
      %v617 = vadd.f32 %v571, %v614
      %v618 = vld [vmem:[%s1 + $0x19] sm:$0x1]
      %619 = vset.pattern.permute.xlu0 25
      %620 = vperm.xlu0 %619, %v37
      %v621 = vpop.permute.xlu0 %620
      %623 = vset.pattern.permute.xlu0 25
      %624 = vperm.xlu0 %623, %v38
      %v625 = vpop.permute.xlu0 %624
      %627 = vset.pattern.permute.xlu0 25
      %628 = vperm.xlu0 %627, %v39
      %v629 = vpop.permute.xlu0 %628
      %v631 = vperm.slane %v618, 0
      %v632 = vsub.f32 %v621, %v631
      %v633 = vsub.f32 %v625, %v631
      %v634 = vsub.f32 %v629, %v631
      %v635 = vand.u32 2147483647, %v632
      %v636 = vand.u32 2147483647, %v633
      %v637 = vand.u32 2147483647, %v634
      %v638 = vadd.f32 %v592, %v635
      %v639 = vadd.f32 %v593, %v636
      %v640 = vadd.f32 %v594, %v637
      %v641 = vld [vmem:[%s1 + $0x1a] sm:$0x1]
      %642 = vset.pattern.permute.xlu0 26
      %643 = vperm.xlu0 %642, %v37
      %v644 = vpop.permute.xlu0 %643
      %646 = vset.pattern.permute.xlu0 26
      %647 = vperm.xlu0 %646, %v38
      %v648 = vpop.permute.xlu0 %647
      %650 = vset.pattern.permute.xlu0 26
      %651 = vperm.xlu0 %650, %v39
      %v652 = vpop.permute.xlu0 %651
      %v654 = vperm.slane %v641, 0
      %v655 = vsub.f32 %v644, %v654
      %v656 = vsub.f32 %v648, %v654
      %v657 = vsub.f32 %v652, %v654
      %v658 = vand.u32 2147483647, %v655
      %v659 = vand.u32 2147483647, %v656
      %v660 = vand.u32 2147483647, %v657
      %v661 = vadd.f32 %v615, %v658
      %v662 = vadd.f32 %v616, %v659
      %v663 = vadd.f32 %v617, %v660
      %v664 = vld [vmem:[%s1 + $0x1b] sm:$0x1]
      %665 = vset.pattern.permute.xlu0 27
      %666 = vperm.xlu0 %665, %v37
      %v667 = vpop.permute.xlu0 %666
      %669 = vset.pattern.permute.xlu0 27
      %670 = vperm.xlu0 %669, %v38
      %v671 = vpop.permute.xlu0 %670
      %673 = vset.pattern.permute.xlu0 27
      %674 = vperm.xlu0 %673, %v39
      %v675 = vpop.permute.xlu0 %674
      %v677 = vperm.slane %v664, 0
      %v678 = vsub.f32 %v667, %v677
      %v679 = vsub.f32 %v671, %v677
      %v680 = vsub.f32 %v675, %v677
      %v681 = vand.u32 2147483647, %v678
      %v682 = vand.u32 2147483647, %v679
      %v683 = vand.u32 2147483647, %v680
      %v684 = vadd.f32 %v638, %v681
      %v685 = vadd.f32 %v639, %v682
      %v686 = vadd.f32 %v640, %v683
      %v687 = vld [vmem:[%s1 + $0x1c] sm:$0x1]
      %688 = vset.pattern.permute.xlu0 28
      %689 = vperm.xlu0 %688, %v37
      %v690 = vpop.permute.xlu0 %689
      %692 = vset.pattern.permute.xlu0 28
      %693 = vperm.xlu0 %692, %v38
      %v694 = vpop.permute.xlu0 %693
      %696 = vset.pattern.permute.xlu0 28
      %697 = vperm.xlu0 %696, %v39
      %v698 = vpop.permute.xlu0 %697
      %v700 = vperm.slane %v687, 0
      %v701 = vsub.f32 %v690, %v700
      %v702 = vsub.f32 %v694, %v700
      %v703 = vsub.f32 %v698, %v700
      %v704 = vand.u32 2147483647, %v701
      %v705 = vand.u32 2147483647, %v702
      %v706 = vand.u32 2147483647, %v703
      %v707 = vadd.f32 %v661, %v704
      %v708 = vadd.f32 %v662, %v705
      %v709 = vadd.f32 %v663, %v706
      %v710 = vld [vmem:[%s1 + $0x1d] sm:$0x1]
      %711 = vset.pattern.permute.xlu0 29
      %712 = vperm.xlu0 %711, %v37
      %v713 = vpop.permute.xlu0 %712
      %715 = vset.pattern.permute.xlu0 29
      %716 = vperm.xlu0 %715, %v38
      %v717 = vpop.permute.xlu0 %716
      %719 = vset.pattern.permute.xlu0 29
      %720 = vperm.xlu0 %719, %v39
      %v721 = vpop.permute.xlu0 %720
      %v723 = vperm.slane %v710, 0
      %v724 = vsub.f32 %v713, %v723
      %v725 = vsub.f32 %v717, %v723
      %v726 = vsub.f32 %v721, %v723
      %v727 = vand.u32 2147483647, %v724
      %v728 = vand.u32 2147483647, %v725
      %v729 = vand.u32 2147483647, %v726
      %v730 = vadd.f32 %v684, %v727
      %v731 = vadd.f32 %v685, %v728
      %v732 = vadd.f32 %v686, %v729
      %v733 = vld [vmem:[%s1 + $0x1e] sm:$0x1]
      %734 = vset.pattern.permute.xlu0 30
      %735 = vperm.xlu0 %734, %v37
      %v736 = vpop.permute.xlu0 %735
      %738 = vset.pattern.permute.xlu0 30
      %739 = vperm.xlu0 %738, %v38
      %v740 = vpop.permute.xlu0 %739
      %742 = vset.pattern.permute.xlu0 30
      %743 = vperm.xlu0 %742, %v39
      %v744 = vpop.permute.xlu0 %743
      %v746 = vperm.slane %v733, 0
      %v747 = vsub.f32 %v736, %v746
      %v748 = vsub.f32 %v740, %v746
      %v749 = vsub.f32 %v744, %v746
      %v750 = vand.u32 2147483647, %v747
      %v751 = vand.u32 2147483647, %v748
      %v752 = vand.u32 2147483647, %v749
      %v753 = vadd.f32 %v707, %v750
      %v754 = vadd.f32 %v708, %v751
      %v755 = vadd.f32 %v709, %v752
      %v756 = vld [vmem:[%s1 + $0x1f] sm:$0x1]
      %757 = vset.pattern.permute.xlu0 31
      %758 = vperm.xlu0 %757, %v37
      %v759 = vpop.permute.xlu0 %758
      %761 = vset.pattern.permute.xlu0 31
      %762 = vperm.xlu0 %761, %v38
      %v763 = vpop.permute.xlu0 %762
      %765 = vset.pattern.permute.xlu0 31
      %766 = vperm.xlu0 %765, %v39
      %v767 = vpop.permute.xlu0 %766
      %v769 = vperm.slane %v756, 0
      %v770 = vsub.f32 %v759, %v769
      %v771 = vsub.f32 %v763, %v769
      %v772 = vsub.f32 %v767, %v769
      %v773 = vand.u32 2147483647, %v770
      %v774 = vand.u32 2147483647, %v771
      %v775 = vand.u32 2147483647, %v772
      %v776 = vadd.f32 %v730, %v773
      %v777 = vadd.f32 %v731, %v774
      %v778 = vadd.f32 %v732, %v775
      %v779 = vld [vmem:[%s1 + $0x20] sm:$0x1]
      %780 = vset.pattern.permute.xlu0 32
      %781 = vperm.xlu0 %780, %v37
      %v782 = vpop.permute.xlu0 %781
      %784 = vset.pattern.permute.xlu0 32
      %785 = vperm.xlu0 %784, %v38
      %v786 = vpop.permute.xlu0 %785
      %788 = vset.pattern.permute.xlu0 32
      %789 = vperm.xlu0 %788, %v39
      %v790 = vpop.permute.xlu0 %789
      %v792 = vperm.slane %v779, 0
      %v793 = vsub.f32 %v782, %v792
      %v794 = vsub.f32 %v786, %v792
      %v795 = vsub.f32 %v790, %v792
      %v796 = vand.u32 2147483647, %v793
      %v797 = vand.u32 2147483647, %v794
      %v798 = vand.u32 2147483647, %v795
      %v799 = vadd.f32 %v753, %v796
      %v800 = vadd.f32 %v754, %v797
      %v801 = vadd.f32 %v755, %v798
      %v802 = vld [vmem:[%s1 + $0x21] sm:$0x1]
      %803 = vset.pattern.permute.xlu0 33
      %804 = vperm.xlu0 %803, %v37
      %v805 = vpop.permute.xlu0 %804
      %807 = vset.pattern.permute.xlu0 33
      %808 = vperm.xlu0 %807, %v38
      %v809 = vpop.permute.xlu0 %808
      %811 = vset.pattern.permute.xlu0 33
      %812 = vperm.xlu0 %811, %v39
      %v813 = vpop.permute.xlu0 %812
      %v815 = vperm.slane %v802, 0
      %v816 = vsub.f32 %v805, %v815
      %v817 = vsub.f32 %v809, %v815
      %v818 = vsub.f32 %v813, %v815
      %v819 = vand.u32 2147483647, %v816
      %v820 = vand.u32 2147483647, %v817
      %v821 = vand.u32 2147483647, %v818
      %v822 = vadd.f32 %v776, %v819
      %v823 = vadd.f32 %v777, %v820
      %v824 = vadd.f32 %v778, %v821
      %v825 = vld [vmem:[%s1 + $0x22] sm:$0x1]
      %826 = vset.pattern.permute.xlu0 34
      %827 = vperm.xlu0 %826, %v37
      %v828 = vpop.permute.xlu0 %827
      %830 = vset.pattern.permute.xlu0 34
      %831 = vperm.xlu0 %830, %v38
      %v832 = vpop.permute.xlu0 %831
      %834 = vset.pattern.permute.xlu0 34
      %835 = vperm.xlu0 %834, %v39
      %v836 = vpop.permute.xlu0 %835
      %v838 = vperm.slane %v825, 0
      %v839 = vsub.f32 %v828, %v838
      %v840 = vsub.f32 %v832, %v838
      %v841 = vsub.f32 %v836, %v838
      %v842 = vand.u32 2147483647, %v839
      %v843 = vand.u32 2147483647, %v840
      %v844 = vand.u32 2147483647, %v841
      %v845 = vadd.f32 %v799, %v842
      %v846 = vadd.f32 %v800, %v843
      %v847 = vadd.f32 %v801, %v844
      %v848 = vld [vmem:[%s1 + $0x23] sm:$0x1]
      %849 = vset.pattern.permute.xlu0 35
      %850 = vperm.xlu0 %849, %v37
      %v851 = vpop.permute.xlu0 %850
      %853 = vset.pattern.permute.xlu0 35
      %854 = vperm.xlu0 %853, %v38
      %v855 = vpop.permute.xlu0 %854
      %857 = vset.pattern.permute.xlu0 35
      %858 = vperm.xlu0 %857, %v39
      %v859 = vpop.permute.xlu0 %858
      %v861 = vperm.slane %v848, 0
      %v862 = vsub.f32 %v851, %v861
      %v863 = vsub.f32 %v855, %v861
      %v864 = vsub.f32 %v859, %v861
      %v865 = vand.u32 2147483647, %v862
      %v866 = vand.u32 2147483647, %v863
      %v867 = vand.u32 2147483647, %v864
      %v868 = vadd.f32 %v822, %v865
      %v869 = vadd.f32 %v823, %v866
      %v870 = vadd.f32 %v824, %v867
      %v871 = vld [vmem:[%s1 + $0x24] sm:$0x1]
      %872 = vset.pattern.permute.xlu0 36
      %873 = vperm.xlu0 %872, %v37
      %v874 = vpop.permute.xlu0 %873
      %876 = vset.pattern.permute.xlu0 36
      %877 = vperm.xlu0 %876, %v38
      %v878 = vpop.permute.xlu0 %877
      %880 = vset.pattern.permute.xlu0 36
      %881 = vperm.xlu0 %880, %v39
      %v882 = vpop.permute.xlu0 %881
      %v884 = vperm.slane %v871, 0
      %v885 = vsub.f32 %v874, %v884
      %v886 = vsub.f32 %v878, %v884
      %v887 = vsub.f32 %v882, %v884
      %v888 = vand.u32 2147483647, %v885
      %v889 = vand.u32 2147483647, %v886
      %v890 = vand.u32 2147483647, %v887
      %v891 = vadd.f32 %v845, %v888
      %v892 = vadd.f32 %v846, %v889
      %v893 = vadd.f32 %v847, %v890
      %v894 = vld [vmem:[%s1 + $0x25] sm:$0x1]
      %895 = vset.pattern.permute.xlu0 37
      %896 = vperm.xlu0 %895, %v37
      %v897 = vpop.permute.xlu0 %896
      %899 = vset.pattern.permute.xlu0 37
      %900 = vperm.xlu0 %899, %v38
      %v901 = vpop.permute.xlu0 %900
      %903 = vset.pattern.permute.xlu0 37
      %904 = vperm.xlu0 %903, %v39
      %v905 = vpop.permute.xlu0 %904
      %v907 = vperm.slane %v894, 0
      %v908 = vsub.f32 %v897, %v907
      %v909 = vsub.f32 %v901, %v907
      %v910 = vsub.f32 %v905, %v907
      %v911 = vand.u32 2147483647, %v908
      %v912 = vand.u32 2147483647, %v909
      %v913 = vand.u32 2147483647, %v910
      %v914 = vadd.f32 %v868, %v911
      %v915 = vadd.f32 %v869, %v912
      %v916 = vadd.f32 %v870, %v913
      %v917 = vld [vmem:[%s1 + $0x26] sm:$0x1]
      %918 = vset.pattern.permute.xlu0 38
      %919 = vperm.xlu0 %918, %v37
      %v920 = vpop.permute.xlu0 %919
      %922 = vset.pattern.permute.xlu0 38
      %923 = vperm.xlu0 %922, %v38
      %v924 = vpop.permute.xlu0 %923
      %926 = vset.pattern.permute.xlu0 38
      %927 = vperm.xlu0 %926, %v39
      %v928 = vpop.permute.xlu0 %927
      %v930 = vperm.slane %v917, 0
      %v931 = vsub.f32 %v920, %v930
      %v932 = vsub.f32 %v924, %v930
      %v933 = vsub.f32 %v928, %v930
      %v934 = vand.u32 2147483647, %v931
      %v935 = vand.u32 2147483647, %v932
      %v936 = vand.u32 2147483647, %v933
      %v937 = vadd.f32 %v891, %v934
      %v938 = vadd.f32 %v892, %v935
      %v939 = vadd.f32 %v893, %v936
      %v940 = vld [vmem:[%s1 + $0x27] sm:$0x1]
      %941 = vset.pattern.permute.xlu0 39
      %942 = vperm.xlu0 %941, %v37
      %v943 = vpop.permute.xlu0 %942
      %945 = vset.pattern.permute.xlu0 39
      %946 = vperm.xlu0 %945, %v38
      %v947 = vpop.permute.xlu0 %946
      %949 = vset.pattern.permute.xlu0 39
      %950 = vperm.xlu0 %949, %v39
      %v951 = vpop.permute.xlu0 %950
      %v953 = vperm.slane %v940, 0
      %v954 = vsub.f32 %v943, %v953
      %v955 = vsub.f32 %v947, %v953
      %v956 = vsub.f32 %v951, %v953
      %v957 = vand.u32 2147483647, %v954
      %v958 = vand.u32 2147483647, %v955
      %v959 = vand.u32 2147483647, %v956
      %v960 = vadd.f32 %v914, %v957
      %v961 = vadd.f32 %v915, %v958
      %v962 = vadd.f32 %v916, %v959
      %v963 = vld [vmem:[%s1 + $0x28] sm:$0x1]
      %964 = vset.pattern.permute.xlu0 40
      %965 = vperm.xlu0 %964, %v37
      %v966 = vpop.permute.xlu0 %965
      %968 = vset.pattern.permute.xlu0 40
      %969 = vperm.xlu0 %968, %v38
      %v970 = vpop.permute.xlu0 %969
      %972 = vset.pattern.permute.xlu0 40
      %973 = vperm.xlu0 %972, %v39
      %v974 = vpop.permute.xlu0 %973
      %v976 = vperm.slane %v963, 0
      %v977 = vsub.f32 %v966, %v976
      %v978 = vsub.f32 %v970, %v976
      %v979 = vsub.f32 %v974, %v976
      %v980 = vand.u32 2147483647, %v977
      %v981 = vand.u32 2147483647, %v978
      %v982 = vand.u32 2147483647, %v979
      %v983 = vadd.f32 %v937, %v980
      %v984 = vadd.f32 %v938, %v981
      %v985 = vadd.f32 %v939, %v982
      %v986 = vld [vmem:[%s1 + $0x29] sm:$0x1]
      %987 = vset.pattern.permute.xlu0 41
      %988 = vperm.xlu0 %987, %v37
      %v989 = vpop.permute.xlu0 %988
      %991 = vset.pattern.permute.xlu0 41
      %992 = vperm.xlu0 %991, %v38
      %v993 = vpop.permute.xlu0 %992
      %995 = vset.pattern.permute.xlu0 41
      %996 = vperm.xlu0 %995, %v39
      %v997 = vpop.permute.xlu0 %996
      %v999 = vperm.slane %v986, 0
      %v1000 = vsub.f32 %v989, %v999
      %v1001 = vsub.f32 %v993, %v999
      %v1002 = vsub.f32 %v997, %v999
      %v1003 = vand.u32 2147483647, %v1000
      %v1004 = vand.u32 2147483647, %v1001
      %v1005 = vand.u32 2147483647, %v1002
      %v1006 = vadd.f32 %v960, %v1003
      %v1007 = vadd.f32 %v961, %v1004
      %v1008 = vadd.f32 %v962, %v1005
      %v1009 = vld [vmem:[%s1 + $0x2a] sm:$0x1]
      %1010 = vset.pattern.permute.xlu0 42
      %1011 = vperm.xlu0 %1010, %v37
      %v1012 = vpop.permute.xlu0 %1011
      %1014 = vset.pattern.permute.xlu0 42
      %1015 = vperm.xlu0 %1014, %v38
      %v1016 = vpop.permute.xlu0 %1015
      %1018 = vset.pattern.permute.xlu0 42
      %1019 = vperm.xlu0 %1018, %v39
      %v1020 = vpop.permute.xlu0 %1019
      %v1022 = vperm.slane %v1009, 0
      %v1023 = vsub.f32 %v1012, %v1022
      %v1024 = vsub.f32 %v1016, %v1022
      %v1025 = vsub.f32 %v1020, %v1022
      %v1026 = vand.u32 2147483647, %v1023
      %v1027 = vand.u32 2147483647, %v1024
      %v1028 = vand.u32 2147483647, %v1025
      %v1029 = vadd.f32 %v983, %v1026
      %v1030 = vadd.f32 %v984, %v1027
      %v1031 = vadd.f32 %v985, %v1028
      %v1032 = vld [vmem:[%s1 + $0x2b] sm:$0x1]
      %1033 = vset.pattern.permute.xlu0 43
      %1034 = vperm.xlu0 %1033, %v37
      %v1035 = vpop.permute.xlu0 %1034
      %1037 = vset.pattern.permute.xlu0 43
      %1038 = vperm.xlu0 %1037, %v38
      %v1039 = vpop.permute.xlu0 %1038
      %1041 = vset.pattern.permute.xlu0 43
      %1042 = vperm.xlu0 %1041, %v39
      %v1043 = vpop.permute.xlu0 %1042
      %v1045 = vperm.slane %v1032, 0
      %v1046 = vsub.f32 %v1035, %v1045
      %v1047 = vsub.f32 %v1039, %v1045
      %v1048 = vsub.f32 %v1043, %v1045
      %v1049 = vand.u32 2147483647, %v1046
      %v1050 = vand.u32 2147483647, %v1047
      %v1051 = vand.u32 2147483647, %v1048
      %v1052 = vadd.f32 %v1006, %v1049
      %v1053 = vadd.f32 %v1007, %v1050
      %v1054 = vadd.f32 %v1008, %v1051
      %v1055 = vld [vmem:[%s1 + $0x2c] sm:$0x1]
      %1056 = vset.pattern.permute.xlu0 44
      %1057 = vperm.xlu0 %1056, %v37
      %v1058 = vpop.permute.xlu0 %1057
      %1060 = vset.pattern.permute.xlu0 44
      %1061 = vperm.xlu0 %1060, %v38
      %v1062 = vpop.permute.xlu0 %1061
      %1064 = vset.pattern.permute.xlu0 44
      %1065 = vperm.xlu0 %1064, %v39
      %v1066 = vpop.permute.xlu0 %1065
      %v1068 = vperm.slane %v1055, 0
      %v1069 = vsub.f32 %v1058, %v1068
      %v1070 = vsub.f32 %v1062, %v1068
      %v1071 = vsub.f32 %v1066, %v1068
      %v1072 = vand.u32 2147483647, %v1069
      %v1073 = vand.u32 2147483647, %v1070
      %v1074 = vand.u32 2147483647, %v1071
      %v1075 = vadd.f32 %v1029, %v1072
      %v1076 = vadd.f32 %v1030, %v1073
      %v1077 = vadd.f32 %v1031, %v1074
      %v1078 = vld [vmem:[%s1 + $0x2d] sm:$0x1]
      %1079 = vset.pattern.permute.xlu0 45
      %1080 = vperm.xlu0 %1079, %v37
      %v1081 = vpop.permute.xlu0 %1080
      %1083 = vset.pattern.permute.xlu0 45
      %1084 = vperm.xlu0 %1083, %v38
      %v1085 = vpop.permute.xlu0 %1084
      %1087 = vset.pattern.permute.xlu0 45
      %1088 = vperm.xlu0 %1087, %v39
      %v1089 = vpop.permute.xlu0 %1088
      %v1091 = vperm.slane %v1078, 0
      %v1092 = vsub.f32 %v1081, %v1091
      %v1093 = vsub.f32 %v1085, %v1091
      %v1094 = vsub.f32 %v1089, %v1091
      %v1095 = vand.u32 2147483647, %v1092
      %v1096 = vand.u32 2147483647, %v1093
      %v1097 = vand.u32 2147483647, %v1094
      %v1098 = vadd.f32 %v1052, %v1095
      %v1099 = vadd.f32 %v1053, %v1096
      %v1100 = vadd.f32 %v1054, %v1097
      %v1101 = vld [vmem:[%s1 + $0x2e] sm:$0x1]
      %1102 = vset.pattern.permute.xlu0 46
      %1103 = vperm.xlu0 %1102, %v37
      %v1104 = vpop.permute.xlu0 %1103
      %1106 = vset.pattern.permute.xlu0 46
      %1107 = vperm.xlu0 %1106, %v38
      %v1108 = vpop.permute.xlu0 %1107
      %1110 = vset.pattern.permute.xlu0 46
      %1111 = vperm.xlu0 %1110, %v39
      %v1112 = vpop.permute.xlu0 %1111
      %v1114 = vperm.slane %v1101, 0
      %v1115 = vsub.f32 %v1104, %v1114
      %v1116 = vsub.f32 %v1108, %v1114
      %v1117 = vsub.f32 %v1112, %v1114
      %v1118 = vand.u32 2147483647, %v1115
      %v1119 = vand.u32 2147483647, %v1116
      %v1120 = vand.u32 2147483647, %v1117
      %v1121 = vadd.f32 %v1075, %v1118
      %v1122 = vadd.f32 %v1076, %v1119
      %v1123 = vadd.f32 %v1077, %v1120
      %v1124 = vld [vmem:[%s1 + $0x2f] sm:$0x1]
      %1125 = vset.pattern.permute.xlu0 47
      %1126 = vperm.xlu0 %1125, %v37
      %v1127 = vpop.permute.xlu0 %1126
      %1129 = vset.pattern.permute.xlu0 47
      %1130 = vperm.xlu0 %1129, %v38
      %v1131 = vpop.permute.xlu0 %1130
      %1133 = vset.pattern.permute.xlu0 47
      %1134 = vperm.xlu0 %1133, %v39
      %v1135 = vpop.permute.xlu0 %1134
      %v1137 = vperm.slane %v1124, 0
      %v1138 = vsub.f32 %v1127, %v1137
      %v1139 = vsub.f32 %v1131, %v1137
      %v1140 = vsub.f32 %v1135, %v1137
      %v1141 = vand.u32 2147483647, %v1138
      %v1142 = vand.u32 2147483647, %v1139
      %v1143 = vand.u32 2147483647, %v1140
      %v1144 = vadd.f32 %v1098, %v1141
      %v1145 = vadd.f32 %v1099, %v1142
      %v1146 = vadd.f32 %v1100, %v1143
      %v1147 = vld [vmem:[%s1 + $0x30] sm:$0x1]
      %1148 = vset.pattern.permute.xlu0 48
      %1149 = vperm.xlu0 %1148, %v37
      %v1150 = vpop.permute.xlu0 %1149
      %1152 = vset.pattern.permute.xlu0 48
      %1153 = vperm.xlu0 %1152, %v38
      %v1154 = vpop.permute.xlu0 %1153
      %1156 = vset.pattern.permute.xlu0 48
      %1157 = vperm.xlu0 %1156, %v39
      %v1158 = vpop.permute.xlu0 %1157
      %v1160 = vperm.slane %v1147, 0
      %v1161 = vsub.f32 %v1150, %v1160
      %v1162 = vsub.f32 %v1154, %v1160
      %v1163 = vsub.f32 %v1158, %v1160
      %v1164 = vand.u32 2147483647, %v1161
      %v1165 = vand.u32 2147483647, %v1162
      %v1166 = vand.u32 2147483647, %v1163
      %v1167 = vadd.f32 %v1121, %v1164
      %v1168 = vadd.f32 %v1122, %v1165
      %v1169 = vadd.f32 %v1123, %v1166
      %v1170 = vld [vmem:[%s1 + $0x31] sm:$0x1]
      %1171 = vset.pattern.permute.xlu0 49
      %1172 = vperm.xlu0 %1171, %v37
      %v1173 = vpop.permute.xlu0 %1172
      %1175 = vset.pattern.permute.xlu0 49
      %1176 = vperm.xlu0 %1175, %v38
      %v1177 = vpop.permute.xlu0 %1176
      %1179 = vset.pattern.permute.xlu0 49
      %1180 = vperm.xlu0 %1179, %v39
      %v1181 = vpop.permute.xlu0 %1180
      %v1183 = vperm.slane %v1170, 0
      %v1184 = vsub.f32 %v1173, %v1183
      %v1185 = vsub.f32 %v1177, %v1183
      %v1186 = vsub.f32 %v1181, %v1183
      %v1187 = vand.u32 2147483647, %v1184
      %v1188 = vand.u32 2147483647, %v1185
      %v1189 = vand.u32 2147483647, %v1186
      %v1190 = vadd.f32 %v1144, %v1187
      %v1191 = vadd.f32 %v1145, %v1188
      %v1192 = vadd.f32 %v1146, %v1189
      %v1193 = vld [vmem:[%s1 + $0x32] sm:$0x1]
      %1194 = vset.pattern.permute.xlu0 50
      %1195 = vperm.xlu0 %1194, %v37
      %v1196 = vpop.permute.xlu0 %1195
      %1198 = vset.pattern.permute.xlu0 50
      %1199 = vperm.xlu0 %1198, %v38
      %v1200 = vpop.permute.xlu0 %1199
      %1202 = vset.pattern.permute.xlu0 50
      %1203 = vperm.xlu0 %1202, %v39
      %v1204 = vpop.permute.xlu0 %1203
      %v1206 = vperm.slane %v1193, 0
      %v1207 = vsub.f32 %v1196, %v1206
      %v1208 = vsub.f32 %v1200, %v1206
      %v1209 = vsub.f32 %v1204, %v1206
      %v1210 = vand.u32 2147483647, %v1207
      %v1211 = vand.u32 2147483647, %v1208
      %v1212 = vand.u32 2147483647, %v1209
      %v1213 = vadd.f32 %v1167, %v1210
      %v1214 = vadd.f32 %v1168, %v1211
      %v1215 = vadd.f32 %v1169, %v1212
      %v1216 = vld [vmem:[%s1 + $0x33] sm:$0x1]
      %1217 = vset.pattern.permute.xlu0 51
      %1218 = vperm.xlu0 %1217, %v37
      %v1219 = vpop.permute.xlu0 %1218
      %1221 = vset.pattern.permute.xlu0 51
      %1222 = vperm.xlu0 %1221, %v38
      %v1223 = vpop.permute.xlu0 %1222
      %1225 = vset.pattern.permute.xlu0 51
      %1226 = vperm.xlu0 %1225, %v39
      %v1227 = vpop.permute.xlu0 %1226
      %v1229 = vperm.slane %v1216, 0
      %v1230 = vsub.f32 %v1219, %v1229
      %v1231 = vsub.f32 %v1223, %v1229
      %v1232 = vsub.f32 %v1227, %v1229
      %v1233 = vand.u32 2147483647, %v1230
      %v1234 = vand.u32 2147483647, %v1231
      %v1235 = vand.u32 2147483647, %v1232
      %v1236 = vadd.f32 %v1190, %v1233
      %v1237 = vadd.f32 %v1191, %v1234
      %v1238 = vadd.f32 %v1192, %v1235
      %v1239 = vld [vmem:[%s1 + $0x34] sm:$0x1]
      %1240 = vset.pattern.permute.xlu0 52
      %1241 = vperm.xlu0 %1240, %v37
      %v1242 = vpop.permute.xlu0 %1241
      %1244 = vset.pattern.permute.xlu0 52
      %1245 = vperm.xlu0 %1244, %v38
      %v1246 = vpop.permute.xlu0 %1245
      %1248 = vset.pattern.permute.xlu0 52
      %1249 = vperm.xlu0 %1248, %v39
      %v1250 = vpop.permute.xlu0 %1249
      %v1252 = vperm.slane %v1239, 0
      %v1253 = vsub.f32 %v1242, %v1252
      %v1254 = vsub.f32 %v1246, %v1252
      %v1255 = vsub.f32 %v1250, %v1252
      %v1256 = vand.u32 2147483647, %v1253
      %v1257 = vand.u32 2147483647, %v1254
      %v1258 = vand.u32 2147483647, %v1255
      %v1259 = vadd.f32 %v1213, %v1256
      %v1260 = vadd.f32 %v1214, %v1257
      %v1261 = vadd.f32 %v1215, %v1258
      %v1262 = vld [vmem:[%s1 + $0x35] sm:$0x1]
      %1263 = vset.pattern.permute.xlu0 53
      %1264 = vperm.xlu0 %1263, %v37
      %v1265 = vpop.permute.xlu0 %1264
      %1267 = vset.pattern.permute.xlu0 53
      %1268 = vperm.xlu0 %1267, %v38
      %v1269 = vpop.permute.xlu0 %1268
      %1271 = vset.pattern.permute.xlu0 53
      %1272 = vperm.xlu0 %1271, %v39
      %v1273 = vpop.permute.xlu0 %1272
      %v1275 = vperm.slane %v1262, 0
      %v1276 = vsub.f32 %v1265, %v1275
      %v1277 = vsub.f32 %v1269, %v1275
      %v1278 = vsub.f32 %v1273, %v1275
      %v1279 = vand.u32 2147483647, %v1276
      %v1280 = vand.u32 2147483647, %v1277
      %v1281 = vand.u32 2147483647, %v1278
      %v1282 = vadd.f32 %v1236, %v1279
      %v1283 = vadd.f32 %v1237, %v1280
      %v1284 = vadd.f32 %v1238, %v1281
      %v1285 = vld [vmem:[%s1 + $0x36] sm:$0x1]
      %1286 = vset.pattern.permute.xlu0 54
      %1287 = vperm.xlu0 %1286, %v37
      %v1288 = vpop.permute.xlu0 %1287
      %1290 = vset.pattern.permute.xlu0 54
      %1291 = vperm.xlu0 %1290, %v38
      %v1292 = vpop.permute.xlu0 %1291
      %1294 = vset.pattern.permute.xlu0 54
      %1295 = vperm.xlu0 %1294, %v39
      %v1296 = vpop.permute.xlu0 %1295
      %v1298 = vperm.slane %v1285, 0
      %v1299 = vsub.f32 %v1288, %v1298
      %v1300 = vsub.f32 %v1292, %v1298
      %v1301 = vsub.f32 %v1296, %v1298
      %v1302 = vand.u32 2147483647, %v1299
      %v1303 = vand.u32 2147483647, %v1300
      %v1304 = vand.u32 2147483647, %v1301
      %v1305 = vadd.f32 %v1259, %v1302
      %v1306 = vadd.f32 %v1260, %v1303
      %v1307 = vadd.f32 %v1261, %v1304
      %v1308 = vld [vmem:[%s1 + $0x37] sm:$0x1]
      %1309 = vset.pattern.permute.xlu0 55
      %1310 = vperm.xlu0 %1309, %v37
      %v1311 = vpop.permute.xlu0 %1310
      %1313 = vset.pattern.permute.xlu0 55
      %1314 = vperm.xlu0 %1313, %v38
      %v1315 = vpop.permute.xlu0 %1314
      %1317 = vset.pattern.permute.xlu0 55
      %1318 = vperm.xlu0 %1317, %v39
      %v1319 = vpop.permute.xlu0 %1318
      %v1321 = vperm.slane %v1308, 0
      %v1322 = vsub.f32 %v1311, %v1321
      %v1323 = vsub.f32 %v1315, %v1321
      %v1324 = vsub.f32 %v1319, %v1321
      %v1325 = vand.u32 2147483647, %v1322
      %v1326 = vand.u32 2147483647, %v1323
      %v1327 = vand.u32 2147483647, %v1324
      %v1328 = vadd.f32 %v1282, %v1325
      %v1329 = vadd.f32 %v1283, %v1326
      %v1330 = vadd.f32 %v1284, %v1327
      %v1331 = vld [vmem:[%s1 + $0x38] sm:$0x1]
      %1332 = vset.pattern.permute.xlu0 56
      %1333 = vperm.xlu0 %1332, %v37
      %v1334 = vpop.permute.xlu0 %1333
      %1336 = vset.pattern.permute.xlu0 56
      %1337 = vperm.xlu0 %1336, %v38
      %v1338 = vpop.permute.xlu0 %1337
      %1340 = vset.pattern.permute.xlu0 56
      %1341 = vperm.xlu0 %1340, %v39
      %v1342 = vpop.permute.xlu0 %1341
      %v1344 = vperm.slane %v1331, 0
      %v1345 = vsub.f32 %v1334, %v1344
      %v1346 = vsub.f32 %v1338, %v1344
      %v1347 = vsub.f32 %v1342, %v1344
      %v1348 = vand.u32 2147483647, %v1345
      %v1349 = vand.u32 2147483647, %v1346
      %v1350 = vand.u32 2147483647, %v1347
      %v1351 = vadd.f32 %v1305, %v1348
      %v1352 = vadd.f32 %v1306, %v1349
      %v1353 = vadd.f32 %v1307, %v1350
      %v1354 = vld [vmem:[%s1 + $0x39] sm:$0x1]
      %1355 = vset.pattern.permute.xlu0 57
      %1356 = vperm.xlu0 %1355, %v37
      %v1357 = vpop.permute.xlu0 %1356
      %1359 = vset.pattern.permute.xlu0 57
      %1360 = vperm.xlu0 %1359, %v38
      %v1361 = vpop.permute.xlu0 %1360
      %1363 = vset.pattern.permute.xlu0 57
      %1364 = vperm.xlu0 %1363, %v39
      %v1365 = vpop.permute.xlu0 %1364
      %v1367 = vperm.slane %v1354, 0
      %v1368 = vsub.f32 %v1357, %v1367
      %v1369 = vsub.f32 %v1361, %v1367
      %v1370 = vsub.f32 %v1365, %v1367
      %v1371 = vand.u32 2147483647, %v1368
      %v1372 = vand.u32 2147483647, %v1369
      %v1373 = vand.u32 2147483647, %v1370
      %v1374 = vadd.f32 %v1328, %v1371
      %v1375 = vadd.f32 %v1329, %v1372
      %v1376 = vadd.f32 %v1330, %v1373
      %v1377 = vld [vmem:[%s1 + $0x3a] sm:$0x1]
      %1378 = vset.pattern.permute.xlu0 58
      %1379 = vperm.xlu0 %1378, %v37
      %v1380 = vpop.permute.xlu0 %1379
      %1382 = vset.pattern.permute.xlu0 58
      %1383 = vperm.xlu0 %1382, %v38
      %v1384 = vpop.permute.xlu0 %1383
      %1386 = vset.pattern.permute.xlu0 58
      %1387 = vperm.xlu0 %1386, %v39
      %v1388 = vpop.permute.xlu0 %1387
      %v1390 = vperm.slane %v1377, 0
      %v1391 = vsub.f32 %v1380, %v1390
      %v1392 = vsub.f32 %v1384, %v1390
      %v1393 = vsub.f32 %v1388, %v1390
      %v1394 = vand.u32 2147483647, %v1391
      %v1395 = vand.u32 2147483647, %v1392
      %v1396 = vand.u32 2147483647, %v1393
      %v1397 = vadd.f32 %v1351, %v1394
      %v1398 = vadd.f32 %v1352, %v1395
      %v1399 = vadd.f32 %v1353, %v1396
      %v1400 = vld [vmem:[%s1 + $0x3b] sm:$0x1]
      %1401 = vset.pattern.permute.xlu0 59
      %1402 = vperm.xlu0 %1401, %v37
      %v1403 = vpop.permute.xlu0 %1402
      %1405 = vset.pattern.permute.xlu0 59
      %1406 = vperm.xlu0 %1405, %v38
      %v1407 = vpop.permute.xlu0 %1406
      %1409 = vset.pattern.permute.xlu0 59
      %1410 = vperm.xlu0 %1409, %v39
      %v1411 = vpop.permute.xlu0 %1410
      %v1413 = vperm.slane %v1400, 0
      %v1414 = vsub.f32 %v1403, %v1413
      %v1415 = vsub.f32 %v1407, %v1413
      %v1416 = vsub.f32 %v1411, %v1413
      %v1417 = vand.u32 2147483647, %v1414
      %v1418 = vand.u32 2147483647, %v1415
      %v1419 = vand.u32 2147483647, %v1416
      %v1420 = vadd.f32 %v1374, %v1417
      %v1421 = vadd.f32 %v1375, %v1418
      %v1422 = vadd.f32 %v1376, %v1419
      %v1423 = vld [vmem:[%s1 + $0x3c] sm:$0x1]
      %1424 = vset.pattern.permute.xlu0 60
      %1425 = vperm.xlu0 %1424, %v37
      %v1426 = vpop.permute.xlu0 %1425
      %1428 = vset.pattern.permute.xlu0 60
      %1429 = vperm.xlu0 %1428, %v38
      %v1430 = vpop.permute.xlu0 %1429
      %1432 = vset.pattern.permute.xlu0 60
      %1433 = vperm.xlu0 %1432, %v39
      %v1434 = vpop.permute.xlu0 %1433
      %v1436 = vperm.slane %v1423, 0
      %v1437 = vsub.f32 %v1426, %v1436
      %v1438 = vsub.f32 %v1430, %v1436
      %v1439 = vsub.f32 %v1434, %v1436
      %v1440 = vand.u32 2147483647, %v1437
      %v1441 = vand.u32 2147483647, %v1438
      %v1442 = vand.u32 2147483647, %v1439
      %v1443 = vadd.f32 %v1397, %v1440
      %v1444 = vadd.f32 %v1398, %v1441
      %v1445 = vadd.f32 %v1399, %v1442
      %v1446 = vld [vmem:[%s1 + $0x3d] sm:$0x1]
      %1447 = vset.pattern.permute.xlu0 61
      %1448 = vperm.xlu0 %1447, %v37
      %v1449 = vpop.permute.xlu0 %1448
      %1451 = vset.pattern.permute.xlu0 61
      %1452 = vperm.xlu0 %1451, %v38
      %v1453 = vpop.permute.xlu0 %1452
      %1455 = vset.pattern.permute.xlu0 61
      %1456 = vperm.xlu0 %1455, %v39
      %v1457 = vpop.permute.xlu0 %1456
      %v1459 = vperm.slane %v1446, 0
      %v1460 = vsub.f32 %v1449, %v1459
      %v1461 = vsub.f32 %v1453, %v1459
      %v1462 = vsub.f32 %v1457, %v1459
      %v1463 = vand.u32 2147483647, %v1460
      %v1464 = vand.u32 2147483647, %v1461
      %v1465 = vand.u32 2147483647, %v1462
      %v1466 = vadd.f32 %v1420, %v1463
      %v1467 = vadd.f32 %v1421, %v1464
      %v1468 = vadd.f32 %v1422, %v1465
      %v1469 = vld [vmem:[%s1 + $0x3e] sm:$0x1]
      %1470 = vset.pattern.permute.xlu0 62
      %1471 = vperm.xlu0 %1470, %v37
      %v1472 = vpop.permute.xlu0 %1471
      %1474 = vset.pattern.permute.xlu0 62
      %1475 = vperm.xlu0 %1474, %v38
      %v1476 = vpop.permute.xlu0 %1475
      %1478 = vset.pattern.permute.xlu0 62
      %1479 = vperm.xlu0 %1478, %v39
      %v1480 = vpop.permute.xlu0 %1479
      %v1482 = vperm.slane %v1469, 0
      %v1483 = vsub.f32 %v1472, %v1482
      %v1484 = vsub.f32 %v1476, %v1482
      %v1485 = vsub.f32 %v1480, %v1482
      %v1486 = vand.u32 2147483647, %v1483
      %v1487 = vand.u32 2147483647, %v1484
      %v1488 = vand.u32 2147483647, %v1485
      %v1489 = vadd.f32 %v1443, %v1486
      %v1490 = vadd.f32 %v1444, %v1487
      %v1491 = vadd.f32 %v1445, %v1488
      %v1492 = vld [vmem:[%s1 + $0x3f] sm:$0x1]
      %1493 = vset.pattern.permute.xlu0 63
      %1494 = vperm.xlu0 %1493, %v37
      %v1495 = vpop.permute.xlu0 %1494
      %1497 = vset.pattern.permute.xlu0 63
      %1498 = vperm.xlu0 %1497, %v38
      %v1499 = vpop.permute.xlu0 %1498
      %1501 = vset.pattern.permute.xlu0 63
      %1502 = vperm.xlu0 %1501, %v39
      %v1503 = vpop.permute.xlu0 %1502
      %v1505 = vperm.slane %v1492, 0
      %v1506 = vsub.f32 %v1495, %v1505
      %v1507 = vsub.f32 %v1499, %v1505
      %v1508 = vsub.f32 %v1503, %v1505
      %v1509 = vand.u32 2147483647, %v1506
      %v1510 = vand.u32 2147483647, %v1507
      %v1511 = vand.u32 2147483647, %v1508
      %v1512 = vadd.f32 %v1466, %v1509
      %v1513 = vadd.f32 %v1467, %v1510
      %v1514 = vadd.f32 %v1468, %v1511
      %v1515 = vld [vmem:[%s1 + $0x40] sm:$0x1]
      %1516 = vset.pattern.permute.xlu0 64
      %1517 = vperm.xlu0 %1516, %v37
      %v1518 = vpop.permute.xlu0 %1517
      %1520 = vset.pattern.permute.xlu0 64
      %1521 = vperm.xlu0 %1520, %v38
      %v1522 = vpop.permute.xlu0 %1521
      %1524 = vset.pattern.permute.xlu0 64
      %1525 = vperm.xlu0 %1524, %v39
      %v1526 = vpop.permute.xlu0 %1525
      %v1528 = vperm.slane %v1515, 0
      %v1529 = vsub.f32 %v1518, %v1528
      %v1530 = vsub.f32 %v1522, %v1528
      %v1531 = vsub.f32 %v1526, %v1528
      %v1532 = vand.u32 2147483647, %v1529
      %v1533 = vand.u32 2147483647, %v1530
      %v1534 = vand.u32 2147483647, %v1531
      %v1535 = vadd.f32 %v1489, %v1532
      %v1536 = vadd.f32 %v1490, %v1533
      %v1537 = vadd.f32 %v1491, %v1534
      %v1538 = vld [vmem:[%s1 + $0x41] sm:$0x1]
      %1539 = vset.pattern.permute.xlu0 65
      %1540 = vperm.xlu0 %1539, %v37
      %v1541 = vpop.permute.xlu0 %1540
      %1543 = vset.pattern.permute.xlu0 65
      %1544 = vperm.xlu0 %1543, %v38
      %v1545 = vpop.permute.xlu0 %1544
      %1547 = vset.pattern.permute.xlu0 65
      %1548 = vperm.xlu0 %1547, %v39
      %v1549 = vpop.permute.xlu0 %1548
      %v1551 = vperm.slane %v1538, 0
      %v1552 = vsub.f32 %v1541, %v1551
      %v1553 = vsub.f32 %v1545, %v1551
      %v1554 = vsub.f32 %v1549, %v1551
      %v1555 = vand.u32 2147483647, %v1552
      %v1556 = vand.u32 2147483647, %v1553
      %v1557 = vand.u32 2147483647, %v1554
      %v1558 = vadd.f32 %v1512, %v1555
      %v1559 = vadd.f32 %v1513, %v1556
      %v1560 = vadd.f32 %v1514, %v1557
      %v1561 = vld [vmem:[%s1 + $0x42] sm:$0x1]
      %1562 = vset.pattern.permute.xlu0 66
      %1563 = vperm.xlu0 %1562, %v37
      %v1564 = vpop.permute.xlu0 %1563
      %1566 = vset.pattern.permute.xlu0 66
      %1567 = vperm.xlu0 %1566, %v38
      %v1568 = vpop.permute.xlu0 %1567
      %1570 = vset.pattern.permute.xlu0 66
      %1571 = vperm.xlu0 %1570, %v39
      %v1572 = vpop.permute.xlu0 %1571
      %v1574 = vperm.slane %v1561, 0
      %v1575 = vsub.f32 %v1564, %v1574
      %v1576 = vsub.f32 %v1568, %v1574
      %v1577 = vsub.f32 %v1572, %v1574
      %v1578 = vand.u32 2147483647, %v1575
      %v1579 = vand.u32 2147483647, %v1576
      %v1580 = vand.u32 2147483647, %v1577
      %v1581 = vadd.f32 %v1535, %v1578
      %v1582 = vadd.f32 %v1536, %v1579
      %v1583 = vadd.f32 %v1537, %v1580
      %v1584 = vld [vmem:[%s1 + $0x43] sm:$0x1]
      %1585 = vset.pattern.permute.xlu0 67
      %1586 = vperm.xlu0 %1585, %v37
      %v1587 = vpop.permute.xlu0 %1586
      %1589 = vset.pattern.permute.xlu0 67
      %1590 = vperm.xlu0 %1589, %v38
      %v1591 = vpop.permute.xlu0 %1590
      %1593 = vset.pattern.permute.xlu0 67
      %1594 = vperm.xlu0 %1593, %v39
      %v1595 = vpop.permute.xlu0 %1594
      %v1597 = vperm.slane %v1584, 0
      %v1598 = vsub.f32 %v1587, %v1597
      %v1599 = vsub.f32 %v1591, %v1597
      %v1600 = vsub.f32 %v1595, %v1597
      %v1601 = vand.u32 2147483647, %v1598
      %v1602 = vand.u32 2147483647, %v1599
      %v1603 = vand.u32 2147483647, %v1600
      %v1604 = vadd.f32 %v1558, %v1601
      %v1605 = vadd.f32 %v1559, %v1602
      %v1606 = vadd.f32 %v1560, %v1603
      %v1607 = vld [vmem:[%s1 + $0x44] sm:$0x1]
      %1608 = vset.pattern.permute.xlu0 68
      %1609 = vperm.xlu0 %1608, %v37
      %v1610 = vpop.permute.xlu0 %1609
      %1612 = vset.pattern.permute.xlu0 68
      %1613 = vperm.xlu0 %1612, %v38
      %v1614 = vpop.permute.xlu0 %1613
      %1616 = vset.pattern.permute.xlu0 68
      %1617 = vperm.xlu0 %1616, %v39
      %v1618 = vpop.permute.xlu0 %1617
      %v1620 = vperm.slane %v1607, 0
      %v1621 = vsub.f32 %v1610, %v1620
      %v1622 = vsub.f32 %v1614, %v1620
      %v1623 = vsub.f32 %v1618, %v1620
      %v1624 = vand.u32 2147483647, %v1621
      %v1625 = vand.u32 2147483647, %v1622
      %v1626 = vand.u32 2147483647, %v1623
      %v1627 = vadd.f32 %v1581, %v1624
      %v1628 = vadd.f32 %v1582, %v1625
      %v1629 = vadd.f32 %v1583, %v1626
      %v1630 = vld [vmem:[%s1 + $0x45] sm:$0x1]
      %1631 = vset.pattern.permute.xlu0 69
      %1632 = vperm.xlu0 %1631, %v37
      %v1633 = vpop.permute.xlu0 %1632
      %1635 = vset.pattern.permute.xlu0 69
      %1636 = vperm.xlu0 %1635, %v38
      %v1637 = vpop.permute.xlu0 %1636
      %1639 = vset.pattern.permute.xlu0 69
      %1640 = vperm.xlu0 %1639, %v39
      %v1641 = vpop.permute.xlu0 %1640
      %v1643 = vperm.slane %v1630, 0
      %v1644 = vsub.f32 %v1633, %v1643
      %v1645 = vsub.f32 %v1637, %v1643
      %v1646 = vsub.f32 %v1641, %v1643
      %v1647 = vand.u32 2147483647, %v1644
      %v1648 = vand.u32 2147483647, %v1645
      %v1649 = vand.u32 2147483647, %v1646
      %v1650 = vadd.f32 %v1604, %v1647
      %v1651 = vadd.f32 %v1605, %v1648
      %v1652 = vadd.f32 %v1606, %v1649
      %v1653 = vld [vmem:[%s1 + $0x46] sm:$0x1]
      %1654 = vset.pattern.permute.xlu0 70
      %1655 = vperm.xlu0 %1654, %v37
      %v1656 = vpop.permute.xlu0 %1655
      %1658 = vset.pattern.permute.xlu0 70
      %1659 = vperm.xlu0 %1658, %v38
      %v1660 = vpop.permute.xlu0 %1659
      %1662 = vset.pattern.permute.xlu0 70
      %1663 = vperm.xlu0 %1662, %v39
      %v1664 = vpop.permute.xlu0 %1663
      %v1666 = vperm.slane %v1653, 0
      %v1667 = vsub.f32 %v1656, %v1666
      %v1668 = vsub.f32 %v1660, %v1666
      %v1669 = vsub.f32 %v1664, %v1666
      %v1670 = vand.u32 2147483647, %v1667
      %v1671 = vand.u32 2147483647, %v1668
      %v1672 = vand.u32 2147483647, %v1669
      %v1673 = vadd.f32 %v1627, %v1670
      %v1674 = vadd.f32 %v1628, %v1671
      %v1675 = vadd.f32 %v1629, %v1672
      %v1676 = vld [vmem:[%s1 + $0x47] sm:$0x1]
      %1677 = vset.pattern.permute.xlu0 71
      %1678 = vperm.xlu0 %1677, %v37
      %v1679 = vpop.permute.xlu0 %1678
      %1681 = vset.pattern.permute.xlu0 71
      %1682 = vperm.xlu0 %1681, %v38
      %v1683 = vpop.permute.xlu0 %1682
      %1685 = vset.pattern.permute.xlu0 71
      %1686 = vperm.xlu0 %1685, %v39
      %v1687 = vpop.permute.xlu0 %1686
      %v1689 = vperm.slane %v1676, 0
      %v1690 = vsub.f32 %v1679, %v1689
      %v1691 = vsub.f32 %v1683, %v1689
      %v1692 = vsub.f32 %v1687, %v1689
      %v1693 = vand.u32 2147483647, %v1690
      %v1694 = vand.u32 2147483647, %v1691
      %v1695 = vand.u32 2147483647, %v1692
      %v1696 = vadd.f32 %v1650, %v1693
      %v1697 = vadd.f32 %v1651, %v1694
      %v1698 = vadd.f32 %v1652, %v1695
      %v1699 = vld [vmem:[%s1 + $0x48] sm:$0x1]
      %1700 = vset.pattern.permute.xlu0 72
      %1701 = vperm.xlu0 %1700, %v37
      %v1702 = vpop.permute.xlu0 %1701
      %1704 = vset.pattern.permute.xlu0 72
      %1705 = vperm.xlu0 %1704, %v38
      %v1706 = vpop.permute.xlu0 %1705
      %1708 = vset.pattern.permute.xlu0 72
      %1709 = vperm.xlu0 %1708, %v39
      %v1710 = vpop.permute.xlu0 %1709
      %v1712 = vperm.slane %v1699, 0
      %v1713 = vsub.f32 %v1702, %v1712
      %v1714 = vsub.f32 %v1706, %v1712
      %v1715 = vsub.f32 %v1710, %v1712
      %v1716 = vand.u32 2147483647, %v1713
      %v1717 = vand.u32 2147483647, %v1714
      %v1718 = vand.u32 2147483647, %v1715
      %v1719 = vadd.f32 %v1673, %v1716
      %v1720 = vadd.f32 %v1674, %v1717
      %v1721 = vadd.f32 %v1675, %v1718
      %v1722 = vld [vmem:[%s1 + $0x49] sm:$0x1]
      %1723 = vset.pattern.permute.xlu0 73
      %1724 = vperm.xlu0 %1723, %v37
      %v1725 = vpop.permute.xlu0 %1724
      %1727 = vset.pattern.permute.xlu0 73
      %1728 = vperm.xlu0 %1727, %v38
      %v1729 = vpop.permute.xlu0 %1728
      %1731 = vset.pattern.permute.xlu0 73
      %1732 = vperm.xlu0 %1731, %v39
      %v1733 = vpop.permute.xlu0 %1732
      %v1735 = vperm.slane %v1722, 0
      %v1736 = vsub.f32 %v1725, %v1735
      %v1737 = vsub.f32 %v1729, %v1735
      %v1738 = vsub.f32 %v1733, %v1735
      %v1739 = vand.u32 2147483647, %v1736
      %v1740 = vand.u32 2147483647, %v1737
      %v1741 = vand.u32 2147483647, %v1738
      %v1742 = vadd.f32 %v1696, %v1739
      %v1743 = vadd.f32 %v1697, %v1740
      %v1744 = vadd.f32 %v1698, %v1741
      %v1745 = vld [vmem:[%s1 + $0x4a] sm:$0x1]
      %1746 = vset.pattern.permute.xlu0 74
      %1747 = vperm.xlu0 %1746, %v37
      %v1748 = vpop.permute.xlu0 %1747
      %1750 = vset.pattern.permute.xlu0 74
      %1751 = vperm.xlu0 %1750, %v38
      %v1752 = vpop.permute.xlu0 %1751
      %1754 = vset.pattern.permute.xlu0 74
      %1755 = vperm.xlu0 %1754, %v39
      %v1756 = vpop.permute.xlu0 %1755
      %v1758 = vperm.slane %v1745, 0
      %v1759 = vsub.f32 %v1748, %v1758
      %v1760 = vsub.f32 %v1752, %v1758
      %v1761 = vsub.f32 %v1756, %v1758
      %v1762 = vand.u32 2147483647, %v1759
      %v1763 = vand.u32 2147483647, %v1760
      %v1764 = vand.u32 2147483647, %v1761
      %v1765 = vadd.f32 %v1719, %v1762
      %v1766 = vadd.f32 %v1720, %v1763
      %v1767 = vadd.f32 %v1721, %v1764
      %v1768 = vld [vmem:[%s1 + $0x4b] sm:$0x1]
      %1769 = vset.pattern.permute.xlu0 75
      %1770 = vperm.xlu0 %1769, %v37
      %v1771 = vpop.permute.xlu0 %1770
      %1773 = vset.pattern.permute.xlu0 75
      %1774 = vperm.xlu0 %1773, %v38
      %v1775 = vpop.permute.xlu0 %1774
      %1777 = vset.pattern.permute.xlu0 75
      %1778 = vperm.xlu0 %1777, %v39
      %v1779 = vpop.permute.xlu0 %1778
      %v1781 = vperm.slane %v1768, 0
      %v1782 = vsub.f32 %v1771, %v1781
      %v1783 = vsub.f32 %v1775, %v1781
      %v1784 = vsub.f32 %v1779, %v1781
      %v1785 = vand.u32 2147483647, %v1782
      %v1786 = vand.u32 2147483647, %v1783
      %v1787 = vand.u32 2147483647, %v1784
      %v1788 = vadd.f32 %v1742, %v1785
      %v1789 = vadd.f32 %v1743, %v1786
      %v1790 = vadd.f32 %v1744, %v1787
      %v1791 = vld [vmem:[%s1 + $0x4c] sm:$0x1]
      %1792 = vset.pattern.permute.xlu0 76
      %1793 = vperm.xlu0 %1792, %v37
      %v1794 = vpop.permute.xlu0 %1793
      %1796 = vset.pattern.permute.xlu0 76
      %1797 = vperm.xlu0 %1796, %v38
      %v1798 = vpop.permute.xlu0 %1797
      %1800 = vset.pattern.permute.xlu0 76
      %1801 = vperm.xlu0 %1800, %v39
      %v1802 = vpop.permute.xlu0 %1801
      %v1804 = vperm.slane %v1791, 0
      %v1805 = vsub.f32 %v1794, %v1804
      %v1806 = vsub.f32 %v1798, %v1804
      %v1807 = vsub.f32 %v1802, %v1804
      %v1808 = vand.u32 2147483647, %v1805
      %v1809 = vand.u32 2147483647, %v1806
      %v1810 = vand.u32 2147483647, %v1807
      %v1811 = vadd.f32 %v1765, %v1808
      %v1812 = vadd.f32 %v1766, %v1809
      %v1813 = vadd.f32 %v1767, %v1810
      %v1814 = vld [vmem:[%s1 + $0x4d] sm:$0x1]
      %1815 = vset.pattern.permute.xlu0 77
      %1816 = vperm.xlu0 %1815, %v37
      %v1817 = vpop.permute.xlu0 %1816
      %1819 = vset.pattern.permute.xlu0 77
      %1820 = vperm.xlu0 %1819, %v38
      %v1821 = vpop.permute.xlu0 %1820
      %1823 = vset.pattern.permute.xlu0 77
      %1824 = vperm.xlu0 %1823, %v39
      %v1825 = vpop.permute.xlu0 %1824
      %v1827 = vperm.slane %v1814, 0
      %v1828 = vsub.f32 %v1817, %v1827
      %v1829 = vsub.f32 %v1821, %v1827
      %v1830 = vsub.f32 %v1825, %v1827
      %v1831 = vand.u32 2147483647, %v1828
      %v1832 = vand.u32 2147483647, %v1829
      %v1833 = vand.u32 2147483647, %v1830
      %v1834 = vadd.f32 %v1788, %v1831
      %v1835 = vadd.f32 %v1789, %v1832
      %v1836 = vadd.f32 %v1790, %v1833
      %v1837 = vld [vmem:[%s1 + $0x4e] sm:$0x1]
      %1838 = vset.pattern.permute.xlu0 78
      %1839 = vperm.xlu0 %1838, %v37
      %v1840 = vpop.permute.xlu0 %1839
      %1842 = vset.pattern.permute.xlu0 78
      %1843 = vperm.xlu0 %1842, %v38
      %v1844 = vpop.permute.xlu0 %1843
      %1846 = vset.pattern.permute.xlu0 78
      %1847 = vperm.xlu0 %1846, %v39
      %v1848 = vpop.permute.xlu0 %1847
      %v1850 = vperm.slane %v1837, 0
      %v1851 = vsub.f32 %v1840, %v1850
      %v1852 = vsub.f32 %v1844, %v1850
      %v1853 = vsub.f32 %v1848, %v1850
      %v1854 = vand.u32 2147483647, %v1851
      %v1855 = vand.u32 2147483647, %v1852
      %v1856 = vand.u32 2147483647, %v1853
      %v1857 = vadd.f32 %v1811, %v1854
      %v1858 = vadd.f32 %v1812, %v1855
      %v1859 = vadd.f32 %v1813, %v1856
      %v1860 = vld [vmem:[%s1 + $0x4f] sm:$0x1]
      %1861 = vset.pattern.permute.xlu0 79
      %1862 = vperm.xlu0 %1861, %v37
      %v1863 = vpop.permute.xlu0 %1862
      %1865 = vset.pattern.permute.xlu0 79
      %1866 = vperm.xlu0 %1865, %v38
      %v1867 = vpop.permute.xlu0 %1866
      %1869 = vset.pattern.permute.xlu0 79
      %1870 = vperm.xlu0 %1869, %v39
      %v1871 = vpop.permute.xlu0 %1870
      %v1873 = vperm.slane %v1860, 0
      %v1874 = vsub.f32 %v1863, %v1873
      %v1875 = vsub.f32 %v1867, %v1873
      %v1876 = vsub.f32 %v1871, %v1873
      %v1877 = vand.u32 2147483647, %v1874
      %v1878 = vand.u32 2147483647, %v1875
      %v1879 = vand.u32 2147483647, %v1876
      %v1880 = vadd.f32 %v1834, %v1877
      %v1881 = vadd.f32 %v1835, %v1878
      %v1882 = vadd.f32 %v1836, %v1879
      %v1883 = vld [vmem:[%s1 + $0x50] sm:$0x1]
      %1884 = vset.pattern.permute.xlu0 80
      %1885 = vperm.xlu0 %1884, %v37
      %v1886 = vpop.permute.xlu0 %1885
      %1888 = vset.pattern.permute.xlu0 80
      %1889 = vperm.xlu0 %1888, %v38
      %v1890 = vpop.permute.xlu0 %1889
      %1892 = vset.pattern.permute.xlu0 80
      %1893 = vperm.xlu0 %1892, %v39
      %v1894 = vpop.permute.xlu0 %1893
      %v1896 = vperm.slane %v1883, 0
      %v1897 = vsub.f32 %v1886, %v1896
      %v1898 = vsub.f32 %v1890, %v1896
      %v1899 = vsub.f32 %v1894, %v1896
      %v1900 = vand.u32 2147483647, %v1897
      %v1901 = vand.u32 2147483647, %v1898
      %v1902 = vand.u32 2147483647, %v1899
      %v1903 = vadd.f32 %v1857, %v1900
      %v1904 = vadd.f32 %v1858, %v1901
      %v1905 = vadd.f32 %v1859, %v1902
      %v1906 = vld [vmem:[%s1 + $0x51] sm:$0x1]
      %1907 = vset.pattern.permute.xlu0 81
      %1908 = vperm.xlu0 %1907, %v37
      %v1909 = vpop.permute.xlu0 %1908
      %1911 = vset.pattern.permute.xlu0 81
      %1912 = vperm.xlu0 %1911, %v38
      %v1913 = vpop.permute.xlu0 %1912
      %1915 = vset.pattern.permute.xlu0 81
      %1916 = vperm.xlu0 %1915, %v39
      %v1917 = vpop.permute.xlu0 %1916
      %v1919 = vperm.slane %v1906, 0
      %v1920 = vsub.f32 %v1909, %v1919
      %v1921 = vsub.f32 %v1913, %v1919
      %v1922 = vsub.f32 %v1917, %v1919
      %v1923 = vand.u32 2147483647, %v1920
      %v1924 = vand.u32 2147483647, %v1921
      %v1925 = vand.u32 2147483647, %v1922
      %v1926 = vadd.f32 %v1880, %v1923
      %v1927 = vadd.f32 %v1881, %v1924
      %v1928 = vadd.f32 %v1882, %v1925
      %v1929 = vld [vmem:[%s1 + $0x52] sm:$0x1]
      %1930 = vset.pattern.permute.xlu0 82
      %1931 = vperm.xlu0 %1930, %v37
      %v1932 = vpop.permute.xlu0 %1931
      %1934 = vset.pattern.permute.xlu0 82
      %1935 = vperm.xlu0 %1934, %v38
      %v1936 = vpop.permute.xlu0 %1935
      %1938 = vset.pattern.permute.xlu0 82
      %1939 = vperm.xlu0 %1938, %v39
      %v1940 = vpop.permute.xlu0 %1939
      %v1942 = vperm.slane %v1929, 0
      %v1943 = vsub.f32 %v1932, %v1942
      %v1944 = vsub.f32 %v1936, %v1942
      %v1945 = vsub.f32 %v1940, %v1942
      %v1946 = vand.u32 2147483647, %v1943
      %v1947 = vand.u32 2147483647, %v1944
      %v1948 = vand.u32 2147483647, %v1945
      %v1949 = vadd.f32 %v1903, %v1946
      %v1950 = vadd.f32 %v1904, %v1947
      %v1951 = vadd.f32 %v1905, %v1948
      %v1952 = vld [vmem:[%s1 + $0x53] sm:$0x1]
      %1953 = vset.pattern.permute.xlu0 83
      %1954 = vperm.xlu0 %1953, %v37
      %v1955 = vpop.permute.xlu0 %1954
      %1957 = vset.pattern.permute.xlu0 83
      %1958 = vperm.xlu0 %1957, %v38
      %v1959 = vpop.permute.xlu0 %1958
      %1961 = vset.pattern.permute.xlu0 83
      %1962 = vperm.xlu0 %1961, %v39
      %v1963 = vpop.permute.xlu0 %1962
      %v1965 = vperm.slane %v1952, 0
      %v1966 = vsub.f32 %v1955, %v1965
      %v1967 = vsub.f32 %v1959, %v1965
      %v1968 = vsub.f32 %v1963, %v1965
      %v1969 = vand.u32 2147483647, %v1966
      %v1970 = vand.u32 2147483647, %v1967
      %v1971 = vand.u32 2147483647, %v1968
      %v1972 = vadd.f32 %v1926, %v1969
      %v1973 = vadd.f32 %v1927, %v1970
      %v1974 = vadd.f32 %v1928, %v1971
      %v1975 = vld [vmem:[%s1 + $0x54] sm:$0x1]
      %1976 = vset.pattern.permute.xlu0 84
      %1977 = vperm.xlu0 %1976, %v37
      %v1978 = vpop.permute.xlu0 %1977
      %1980 = vset.pattern.permute.xlu0 84
      %1981 = vperm.xlu0 %1980, %v38
      %v1982 = vpop.permute.xlu0 %1981
      %1984 = vset.pattern.permute.xlu0 84
      %1985 = vperm.xlu0 %1984, %v39
      %v1986 = vpop.permute.xlu0 %1985
      %v1988 = vperm.slane %v1975, 0
      %v1989 = vsub.f32 %v1978, %v1988
      %v1990 = vsub.f32 %v1982, %v1988
      %v1991 = vsub.f32 %v1986, %v1988
      %v1992 = vand.u32 2147483647, %v1989
      %v1993 = vand.u32 2147483647, %v1990
      %v1994 = vand.u32 2147483647, %v1991
      %v1995 = vadd.f32 %v1949, %v1992
      %v1996 = vadd.f32 %v1950, %v1993
      %v1997 = vadd.f32 %v1951, %v1994
      %v1998 = vld [vmem:[%s1 + $0x55] sm:$0x1]
      %1999 = vset.pattern.permute.xlu0 85
      %2000 = vperm.xlu0 %1999, %v37
      %v2001 = vpop.permute.xlu0 %2000
      %2003 = vset.pattern.permute.xlu0 85
      %2004 = vperm.xlu0 %2003, %v38
      %v2005 = vpop.permute.xlu0 %2004
      %2007 = vset.pattern.permute.xlu0 85
      %2008 = vperm.xlu0 %2007, %v39
      %v2009 = vpop.permute.xlu0 %2008
      %v2011 = vperm.slane %v1998, 0
      %v2012 = vsub.f32 %v2001, %v2011
      %v2013 = vsub.f32 %v2005, %v2011
      %v2014 = vsub.f32 %v2009, %v2011
      %v2015 = vand.u32 2147483647, %v2012
      %v2016 = vand.u32 2147483647, %v2013
      %v2017 = vand.u32 2147483647, %v2014
      %v2018 = vadd.f32 %v1972, %v2015
      %v2019 = vadd.f32 %v1973, %v2016
      %v2020 = vadd.f32 %v1974, %v2017
      %v2021 = vld [vmem:[%s1 + $0x56] sm:$0x1]
      %2022 = vset.pattern.permute.xlu0 86
      %2023 = vperm.xlu0 %2022, %v37
      %v2024 = vpop.permute.xlu0 %2023
      %2026 = vset.pattern.permute.xlu0 86
      %2027 = vperm.xlu0 %2026, %v38
      %v2028 = vpop.permute.xlu0 %2027
      %2030 = vset.pattern.permute.xlu0 86
      %2031 = vperm.xlu0 %2030, %v39
      %v2032 = vpop.permute.xlu0 %2031
      %v2034 = vperm.slane %v2021, 0
      %v2035 = vsub.f32 %v2024, %v2034
      %v2036 = vsub.f32 %v2028, %v2034
      %v2037 = vsub.f32 %v2032, %v2034
      %v2038 = vand.u32 2147483647, %v2035
      %v2039 = vand.u32 2147483647, %v2036
      %v2040 = vand.u32 2147483647, %v2037
      %v2041 = vadd.f32 %v1995, %v2038
      %v2042 = vadd.f32 %v1996, %v2039
      %v2043 = vadd.f32 %v1997, %v2040
      %v2044 = vld [vmem:[%s1 + $0x57] sm:$0x1]
      %2045 = vset.pattern.permute.xlu0 87
      %2046 = vperm.xlu0 %2045, %v37
      %v2047 = vpop.permute.xlu0 %2046
      %2049 = vset.pattern.permute.xlu0 87
      %2050 = vperm.xlu0 %2049, %v38
      %v2051 = vpop.permute.xlu0 %2050
      %2053 = vset.pattern.permute.xlu0 87
      %2054 = vperm.xlu0 %2053, %v39
      %v2055 = vpop.permute.xlu0 %2054
      %v2057 = vperm.slane %v2044, 0
      %v2058 = vsub.f32 %v2047, %v2057
      %v2059 = vsub.f32 %v2051, %v2057
      %v2060 = vsub.f32 %v2055, %v2057
      %v2061 = vand.u32 2147483647, %v2058
      %v2062 = vand.u32 2147483647, %v2059
      %v2063 = vand.u32 2147483647, %v2060
      %v2064 = vadd.f32 %v2018, %v2061
      %v2065 = vadd.f32 %v2019, %v2062
      %v2066 = vadd.f32 %v2020, %v2063
      %v2067 = vld [vmem:[%s1 + $0x58] sm:$0x1]
      %2068 = vset.pattern.permute.xlu0 88
      %2069 = vperm.xlu0 %2068, %v37
      %v2070 = vpop.permute.xlu0 %2069
      %2072 = vset.pattern.permute.xlu0 88
      %2073 = vperm.xlu0 %2072, %v38
      %v2074 = vpop.permute.xlu0 %2073
      %2076 = vset.pattern.permute.xlu0 88
      %2077 = vperm.xlu0 %2076, %v39
      %v2078 = vpop.permute.xlu0 %2077
      %v2080 = vperm.slane %v2067, 0
      %v2081 = vsub.f32 %v2070, %v2080
      %v2082 = vsub.f32 %v2074, %v2080
      %v2083 = vsub.f32 %v2078, %v2080
      %v2084 = vand.u32 2147483647, %v2081
      %v2085 = vand.u32 2147483647, %v2082
      %v2086 = vand.u32 2147483647, %v2083
      %v2087 = vadd.f32 %v2041, %v2084
      %v2088 = vadd.f32 %v2042, %v2085
      %v2089 = vadd.f32 %v2043, %v2086
      %v2090 = vld [vmem:[%s1 + $0x59] sm:$0x1]
      %2091 = vset.pattern.permute.xlu0 89
      %2092 = vperm.xlu0 %2091, %v37
      %v2093 = vpop.permute.xlu0 %2092
      %2095 = vset.pattern.permute.xlu0 89
      %2096 = vperm.xlu0 %2095, %v38
      %v2097 = vpop.permute.xlu0 %2096
      %2099 = vset.pattern.permute.xlu0 89
      %2100 = vperm.xlu0 %2099, %v39
      %v2101 = vpop.permute.xlu0 %2100
      %v2103 = vperm.slane %v2090, 0
      %v2104 = vsub.f32 %v2093, %v2103
      %v2105 = vsub.f32 %v2097, %v2103
      %v2106 = vsub.f32 %v2101, %v2103
      %v2107 = vand.u32 2147483647, %v2104
      %v2108 = vand.u32 2147483647, %v2105
      %v2109 = vand.u32 2147483647, %v2106
      %v2110 = vadd.f32 %v2064, %v2107
      %v2111 = vadd.f32 %v2065, %v2108
      %v2112 = vadd.f32 %v2066, %v2109
      %v2113 = vld [vmem:[%s1 + $0x5a] sm:$0x1]
      %2114 = vset.pattern.permute.xlu0 90
      %2115 = vperm.xlu0 %2114, %v37
      %v2116 = vpop.permute.xlu0 %2115
      %2118 = vset.pattern.permute.xlu0 90
      %2119 = vperm.xlu0 %2118, %v38
      %v2120 = vpop.permute.xlu0 %2119
      %2122 = vset.pattern.permute.xlu0 90
      %2123 = vperm.xlu0 %2122, %v39
      %v2124 = vpop.permute.xlu0 %2123
      %v2126 = vperm.slane %v2113, 0
      %v2127 = vsub.f32 %v2116, %v2126
      %v2128 = vsub.f32 %v2120, %v2126
      %v2129 = vsub.f32 %v2124, %v2126
      %v2130 = vand.u32 2147483647, %v2127
      %v2131 = vand.u32 2147483647, %v2128
      %v2132 = vand.u32 2147483647, %v2129
      %v2133 = vadd.f32 %v2087, %v2130
      %v2134 = vadd.f32 %v2088, %v2131
      %v2135 = vadd.f32 %v2089, %v2132
      %v2136 = vld [vmem:[%s1 + $0x5b] sm:$0x1]
      %2137 = vset.pattern.permute.xlu0 91
      %2138 = vperm.xlu0 %2137, %v37
      %v2139 = vpop.permute.xlu0 %2138
      %2141 = vset.pattern.permute.xlu0 91
      %2142 = vperm.xlu0 %2141, %v38
      %v2143 = vpop.permute.xlu0 %2142
      %2145 = vset.pattern.permute.xlu0 91
      %2146 = vperm.xlu0 %2145, %v39
      %v2147 = vpop.permute.xlu0 %2146
      %v2149 = vperm.slane %v2136, 0
      %v2150 = vsub.f32 %v2139, %v2149
      %v2151 = vsub.f32 %v2143, %v2149
      %v2152 = vsub.f32 %v2147, %v2149
      %v2153 = vand.u32 2147483647, %v2150
      %v2154 = vand.u32 2147483647, %v2151
      %v2155 = vand.u32 2147483647, %v2152
      %v2156 = vadd.f32 %v2110, %v2153
      %v2157 = vadd.f32 %v2111, %v2154
      %v2158 = vadd.f32 %v2112, %v2155
      %v2159 = vld [vmem:[%s1 + $0x5c] sm:$0x1]
      %2160 = vset.pattern.permute.xlu0 92
      %2161 = vperm.xlu0 %2160, %v37
      %v2162 = vpop.permute.xlu0 %2161
      %2164 = vset.pattern.permute.xlu0 92
      %2165 = vperm.xlu0 %2164, %v38
      %v2166 = vpop.permute.xlu0 %2165
      %2168 = vset.pattern.permute.xlu0 92
      %2169 = vperm.xlu0 %2168, %v39
      %v2170 = vpop.permute.xlu0 %2169
      %v2172 = vperm.slane %v2159, 0
      %v2173 = vsub.f32 %v2162, %v2172
      %v2174 = vsub.f32 %v2166, %v2172
      %v2175 = vsub.f32 %v2170, %v2172
      %v2176 = vand.u32 2147483647, %v2173
      %v2177 = vand.u32 2147483647, %v2174
      %v2178 = vand.u32 2147483647, %v2175
      %v2179 = vadd.f32 %v2133, %v2176
      %v2180 = vadd.f32 %v2134, %v2177
      %v2181 = vadd.f32 %v2135, %v2178
      %v2182 = vld [vmem:[%s1 + $0x5d] sm:$0x1]
      %2183 = vset.pattern.permute.xlu0 93
      %2184 = vperm.xlu0 %2183, %v37
      %v2185 = vpop.permute.xlu0 %2184
      %2187 = vset.pattern.permute.xlu0 93
      %2188 = vperm.xlu0 %2187, %v38
      %v2189 = vpop.permute.xlu0 %2188
      %2191 = vset.pattern.permute.xlu0 93
      %2192 = vperm.xlu0 %2191, %v39
      %v2193 = vpop.permute.xlu0 %2192
      %v2195 = vperm.slane %v2182, 0
      %v2196 = vsub.f32 %v2185, %v2195
      %v2197 = vsub.f32 %v2189, %v2195
      %v2198 = vsub.f32 %v2193, %v2195
      %v2199 = vand.u32 2147483647, %v2196
      %v2200 = vand.u32 2147483647, %v2197
      %v2201 = vand.u32 2147483647, %v2198
      %v2202 = vadd.f32 %v2156, %v2199
      %v2203 = vadd.f32 %v2157, %v2200
      %v2204 = vadd.f32 %v2158, %v2201
      %v2205 = vld [vmem:[%s1 + $0x5e] sm:$0x1]
      %2206 = vset.pattern.permute.xlu0 94
      %2207 = vperm.xlu0 %2206, %v37
      %v2208 = vpop.permute.xlu0 %2207
      %2210 = vset.pattern.permute.xlu0 94
      %2211 = vperm.xlu0 %2210, %v38
      %v2212 = vpop.permute.xlu0 %2211
      %2214 = vset.pattern.permute.xlu0 94
      %2215 = vperm.xlu0 %2214, %v39
      %v2216 = vpop.permute.xlu0 %2215
      %v2218 = vperm.slane %v2205, 0
      %v2219 = vsub.f32 %v2208, %v2218
      %v2220 = vsub.f32 %v2212, %v2218
      %v2221 = vsub.f32 %v2216, %v2218
      %v2222 = vand.u32 2147483647, %v2219
      %v2223 = vand.u32 2147483647, %v2220
      %v2224 = vand.u32 2147483647, %v2221
      %v2225 = vadd.f32 %v2179, %v2222
      %v2226 = vadd.f32 %v2180, %v2223
      %v2227 = vadd.f32 %v2181, %v2224
      %v2228 = vld [vmem:[%s1 + $0x5f] sm:$0x1]
      %2229 = vset.pattern.permute.xlu0 95
      %2230 = vperm.xlu0 %2229, %v37
      %v2231 = vpop.permute.xlu0 %2230
      %2233 = vset.pattern.permute.xlu0 95
      %2234 = vperm.xlu0 %2233, %v38
      %v2235 = vpop.permute.xlu0 %2234
      %2237 = vset.pattern.permute.xlu0 95
      %2238 = vperm.xlu0 %2237, %v39
      %v2239 = vpop.permute.xlu0 %2238
      %v2241 = vperm.slane %v2228, 0
      %v2242 = vsub.f32 %v2231, %v2241
      %v2243 = vsub.f32 %v2235, %v2241
      %v2244 = vsub.f32 %v2239, %v2241
      %v2245 = vand.u32 2147483647, %v2242
      %v2246 = vand.u32 2147483647, %v2243
      %v2247 = vand.u32 2147483647, %v2244
      %v2248 = vadd.f32 %v2202, %v2245
      %v2249 = vadd.f32 %v2203, %v2246
      %v2250 = vadd.f32 %v2204, %v2247
      %v2251 = vld [vmem:[%s1 + $0x60] sm:$0x1]
      %2252 = vset.pattern.permute.xlu0 96
      %2253 = vperm.xlu0 %2252, %v37
      %v2254 = vpop.permute.xlu0 %2253
      %2256 = vset.pattern.permute.xlu0 96
      %2257 = vperm.xlu0 %2256, %v38
      %v2258 = vpop.permute.xlu0 %2257
      %2260 = vset.pattern.permute.xlu0 96
      %2261 = vperm.xlu0 %2260, %v39
      %v2262 = vpop.permute.xlu0 %2261
      %v2264 = vperm.slane %v2251, 0
      %v2265 = vsub.f32 %v2254, %v2264
      %v2266 = vsub.f32 %v2258, %v2264
      %v2267 = vsub.f32 %v2262, %v2264
      %v2268 = vand.u32 2147483647, %v2265
      %v2269 = vand.u32 2147483647, %v2266
      %v2270 = vand.u32 2147483647, %v2267
      %v2271 = vadd.f32 %v2225, %v2268
      %v2272 = vadd.f32 %v2226, %v2269
      %v2273 = vadd.f32 %v2227, %v2270
      %v2274 = vld [vmem:[%s1 + $0x61] sm:$0x1]
      %2275 = vset.pattern.permute.xlu0 97
      %2276 = vperm.xlu0 %2275, %v37
      %v2277 = vpop.permute.xlu0 %2276
      %2279 = vset.pattern.permute.xlu0 97
      %2280 = vperm.xlu0 %2279, %v38
      %v2281 = vpop.permute.xlu0 %2280
      %2283 = vset.pattern.permute.xlu0 97
      %2284 = vperm.xlu0 %2283, %v39
      %v2285 = vpop.permute.xlu0 %2284
      %v2287 = vperm.slane %v2274, 0
      %v2288 = vsub.f32 %v2277, %v2287
      %v2289 = vsub.f32 %v2281, %v2287
      %v2290 = vsub.f32 %v2285, %v2287
      %v2291 = vand.u32 2147483647, %v2288
      %v2292 = vand.u32 2147483647, %v2289
      %v2293 = vand.u32 2147483647, %v2290
      %v2294 = vadd.f32 %v2248, %v2291
      %v2295 = vadd.f32 %v2249, %v2292
      %v2296 = vadd.f32 %v2250, %v2293
      %v2297 = vld [vmem:[%s1 + $0x62] sm:$0x1]
      %2298 = vset.pattern.permute.xlu0 98
      %2299 = vperm.xlu0 %2298, %v37
      %v2300 = vpop.permute.xlu0 %2299
      %2302 = vset.pattern.permute.xlu0 98
      %2303 = vperm.xlu0 %2302, %v38
      %v2304 = vpop.permute.xlu0 %2303
      %2306 = vset.pattern.permute.xlu0 98
      %2307 = vperm.xlu0 %2306, %v39
      %v2308 = vpop.permute.xlu0 %2307
      %v2310 = vperm.slane %v2297, 0
      %v2311 = vsub.f32 %v2300, %v2310
      %v2312 = vsub.f32 %v2304, %v2310
      %v2313 = vsub.f32 %v2308, %v2310
      %v2314 = vand.u32 2147483647, %v2311
      %v2315 = vand.u32 2147483647, %v2312
      %v2316 = vand.u32 2147483647, %v2313
      %v2317 = vadd.f32 %v2271, %v2314
      %v2318 = vadd.f32 %v2272, %v2315
      %v2319 = vadd.f32 %v2273, %v2316
      %v2320 = vld [vmem:[%s1 + $0x63] sm:$0x1]
      %2321 = vset.pattern.permute.xlu0 99
      %2322 = vperm.xlu0 %2321, %v37
      %v2323 = vpop.permute.xlu0 %2322
      %2325 = vset.pattern.permute.xlu0 99
      %2326 = vperm.xlu0 %2325, %v38
      %v2327 = vpop.permute.xlu0 %2326
      %2329 = vset.pattern.permute.xlu0 99
      %2330 = vperm.xlu0 %2329, %v39
      %v2331 = vpop.permute.xlu0 %2330
      %v2333 = vperm.slane %v2320, 0
      %v2334 = vsub.f32 %v2323, %v2333
      %v2335 = vsub.f32 %v2327, %v2333
      %v2336 = vsub.f32 %v2331, %v2333
      %v2337 = vand.u32 2147483647, %v2334
      %v2338 = vand.u32 2147483647, %v2335
      %v2339 = vand.u32 2147483647, %v2336
      %v2340 = vadd.f32 %v2294, %v2337
      %v2341 = vadd.f32 %v2295, %v2338
      %v2342 = vadd.f32 %v2296, %v2339
      %v2343 = vld [vmem:[%s1 + $0x64] sm:$0x1]
      %2344 = vset.pattern.permute.xlu0 100
      %2345 = vperm.xlu0 %2344, %v37
      %v2346 = vpop.permute.xlu0 %2345
      %2348 = vset.pattern.permute.xlu0 100
      %2349 = vperm.xlu0 %2348, %v38
      %v2350 = vpop.permute.xlu0 %2349
      %2352 = vset.pattern.permute.xlu0 100
      %2353 = vperm.xlu0 %2352, %v39
      %v2354 = vpop.permute.xlu0 %2353
      %v2356 = vperm.slane %v2343, 0
      %v2357 = vsub.f32 %v2346, %v2356
      %v2358 = vsub.f32 %v2350, %v2356
      %v2359 = vsub.f32 %v2354, %v2356
      %v2360 = vand.u32 2147483647, %v2357
      %v2361 = vand.u32 2147483647, %v2358
      %v2362 = vand.u32 2147483647, %v2359
      %v2363 = vadd.f32 %v2317, %v2360
      %v2364 = vadd.f32 %v2318, %v2361
      %v2365 = vadd.f32 %v2319, %v2362
      %v2366 = vld [vmem:[%s1 + $0x65] sm:$0x1]
      %2367 = vset.pattern.permute.xlu0 101
      %2368 = vperm.xlu0 %2367, %v37
      %v2369 = vpop.permute.xlu0 %2368
      %2371 = vset.pattern.permute.xlu0 101
      %2372 = vperm.xlu0 %2371, %v38
      %v2373 = vpop.permute.xlu0 %2372
      %2375 = vset.pattern.permute.xlu0 101
      %2376 = vperm.xlu0 %2375, %v39
      %v2377 = vpop.permute.xlu0 %2376
      %v2379 = vperm.slane %v2366, 0
      %v2380 = vsub.f32 %v2369, %v2379
      %v2381 = vsub.f32 %v2373, %v2379
      %v2382 = vsub.f32 %v2377, %v2379
      %v2383 = vand.u32 2147483647, %v2380
      %v2384 = vand.u32 2147483647, %v2381
      %v2385 = vand.u32 2147483647, %v2382
      %v2386 = vadd.f32 %v2340, %v2383
      %v2387 = vadd.f32 %v2341, %v2384
      %v2388 = vadd.f32 %v2342, %v2385
      %v2389 = vld [vmem:[%s1 + $0x66] sm:$0x1]
      %2390 = vset.pattern.permute.xlu0 102
      %2391 = vperm.xlu0 %2390, %v37
      %v2392 = vpop.permute.xlu0 %2391
      %2394 = vset.pattern.permute.xlu0 102
      %2395 = vperm.xlu0 %2394, %v38
      %v2396 = vpop.permute.xlu0 %2395
      %2398 = vset.pattern.permute.xlu0 102
      %2399 = vperm.xlu0 %2398, %v39
      %v2400 = vpop.permute.xlu0 %2399
      %v2402 = vperm.slane %v2389, 0
      %v2403 = vsub.f32 %v2392, %v2402
      %v2404 = vsub.f32 %v2396, %v2402
      %v2405 = vsub.f32 %v2400, %v2402
      %v2406 = vand.u32 2147483647, %v2403
      %v2407 = vand.u32 2147483647, %v2404
      %v2408 = vand.u32 2147483647, %v2405
      %v2409 = vadd.f32 %v2363, %v2406
      %v2410 = vadd.f32 %v2364, %v2407
      %v2411 = vadd.f32 %v2365, %v2408
      %v2412 = vld [vmem:[%s1 + $0x67] sm:$0x1]
      %2413 = vset.pattern.permute.xlu0 103
      %2414 = vperm.xlu0 %2413, %v37
      %v2415 = vpop.permute.xlu0 %2414
      %2417 = vset.pattern.permute.xlu0 103
      %2418 = vperm.xlu0 %2417, %v38
      %v2419 = vpop.permute.xlu0 %2418
      %2421 = vset.pattern.permute.xlu0 103
      %2422 = vperm.xlu0 %2421, %v39
      %v2423 = vpop.permute.xlu0 %2422
      %v2425 = vperm.slane %v2412, 0
      %v2426 = vsub.f32 %v2415, %v2425
      %v2427 = vsub.f32 %v2419, %v2425
      %v2428 = vsub.f32 %v2423, %v2425
      %v2429 = vand.u32 2147483647, %v2426
      %v2430 = vand.u32 2147483647, %v2427
      %v2431 = vand.u32 2147483647, %v2428
      %v2432 = vadd.f32 %v2386, %v2429
      %v2433 = vadd.f32 %v2387, %v2430
      %v2434 = vadd.f32 %v2388, %v2431
      %v2435 = vld [vmem:[%s1 + $0x68] sm:$0x1]
      %2436 = vset.pattern.permute.xlu0 104
      %2437 = vperm.xlu0 %2436, %v37
      %v2438 = vpop.permute.xlu0 %2437
      %2440 = vset.pattern.permute.xlu0 104
      %2441 = vperm.xlu0 %2440, %v38
      %v2442 = vpop.permute.xlu0 %2441
      %2444 = vset.pattern.permute.xlu0 104
      %2445 = vperm.xlu0 %2444, %v39
      %v2446 = vpop.permute.xlu0 %2445
      %v2448 = vperm.slane %v2435, 0
      %v2449 = vsub.f32 %v2438, %v2448
      %v2450 = vsub.f32 %v2442, %v2448
      %v2451 = vsub.f32 %v2446, %v2448
      %v2452 = vand.u32 2147483647, %v2449
      %v2453 = vand.u32 2147483647, %v2450
      %v2454 = vand.u32 2147483647, %v2451
      %v2455 = vadd.f32 %v2409, %v2452
      %v2456 = vadd.f32 %v2410, %v2453
      %v2457 = vadd.f32 %v2411, %v2454
      %v2458 = vld [vmem:[%s1 + $0x69] sm:$0x1]
      %2459 = vset.pattern.permute.xlu0 105
      %2460 = vperm.xlu0 %2459, %v37
      %v2461 = vpop.permute.xlu0 %2460
      %2463 = vset.pattern.permute.xlu0 105
      %2464 = vperm.xlu0 %2463, %v38
      %v2465 = vpop.permute.xlu0 %2464
      %2467 = vset.pattern.permute.xlu0 105
      %2468 = vperm.xlu0 %2467, %v39
      %v2469 = vpop.permute.xlu0 %2468
      %v2471 = vperm.slane %v2458, 0
      %v2472 = vsub.f32 %v2461, %v2471
      %v2473 = vsub.f32 %v2465, %v2471
      %v2474 = vsub.f32 %v2469, %v2471
      %v2475 = vand.u32 2147483647, %v2472
      %v2476 = vand.u32 2147483647, %v2473
      %v2477 = vand.u32 2147483647, %v2474
      %v2478 = vadd.f32 %v2432, %v2475
      %v2479 = vadd.f32 %v2433, %v2476
      %v2480 = vadd.f32 %v2434, %v2477
      %v2481 = vld [vmem:[%s1 + $0x6a] sm:$0x1]
      %2482 = vset.pattern.permute.xlu0 106
      %2483 = vperm.xlu0 %2482, %v37
      %v2484 = vpop.permute.xlu0 %2483
      %2486 = vset.pattern.permute.xlu0 106
      %2487 = vperm.xlu0 %2486, %v38
      %v2488 = vpop.permute.xlu0 %2487
      %2490 = vset.pattern.permute.xlu0 106
      %2491 = vperm.xlu0 %2490, %v39
      %v2492 = vpop.permute.xlu0 %2491
      %v2494 = vperm.slane %v2481, 0
      %v2495 = vsub.f32 %v2484, %v2494
      %v2496 = vsub.f32 %v2488, %v2494
      %v2497 = vsub.f32 %v2492, %v2494
      %v2498 = vand.u32 2147483647, %v2495
      %v2499 = vand.u32 2147483647, %v2496
      %v2500 = vand.u32 2147483647, %v2497
      %v2501 = vadd.f32 %v2455, %v2498
      %v2502 = vadd.f32 %v2456, %v2499
      %v2503 = vadd.f32 %v2457, %v2500
      %v2504 = vld [vmem:[%s1 + $0x6b] sm:$0x1]
      %2505 = vset.pattern.permute.xlu0 107
      %2506 = vperm.xlu0 %2505, %v37
      %v2507 = vpop.permute.xlu0 %2506
      %2509 = vset.pattern.permute.xlu0 107
      %2510 = vperm.xlu0 %2509, %v38
      %v2511 = vpop.permute.xlu0 %2510
      %2513 = vset.pattern.permute.xlu0 107
      %2514 = vperm.xlu0 %2513, %v39
      %v2515 = vpop.permute.xlu0 %2514
      %v2517 = vperm.slane %v2504, 0
      %v2518 = vsub.f32 %v2507, %v2517
      %v2519 = vsub.f32 %v2511, %v2517
      %v2520 = vsub.f32 %v2515, %v2517
      %v2521 = vand.u32 2147483647, %v2518
      %v2522 = vand.u32 2147483647, %v2519
      %v2523 = vand.u32 2147483647, %v2520
      %v2524 = vadd.f32 %v2478, %v2521
      %v2525 = vadd.f32 %v2479, %v2522
      %v2526 = vadd.f32 %v2480, %v2523
      %v2527 = vld [vmem:[%s1 + $0x6c] sm:$0x1]
      %2528 = vset.pattern.permute.xlu0 108
      %2529 = vperm.xlu0 %2528, %v37
      %v2530 = vpop.permute.xlu0 %2529
      %2532 = vset.pattern.permute.xlu0 108
      %2533 = vperm.xlu0 %2532, %v38
      %v2534 = vpop.permute.xlu0 %2533
      %2536 = vset.pattern.permute.xlu0 108
      %2537 = vperm.xlu0 %2536, %v39
      %v2538 = vpop.permute.xlu0 %2537
      %v2540 = vperm.slane %v2527, 0
      %v2541 = vsub.f32 %v2530, %v2540
      %v2542 = vsub.f32 %v2534, %v2540
      %v2543 = vsub.f32 %v2538, %v2540
      %v2544 = vand.u32 2147483647, %v2541
      %v2545 = vand.u32 2147483647, %v2542
      %v2546 = vand.u32 2147483647, %v2543
      %v2547 = vadd.f32 %v2501, %v2544
      %v2548 = vadd.f32 %v2502, %v2545
      %v2549 = vadd.f32 %v2503, %v2546
      %v2550 = vld [vmem:[%s1 + $0x6d] sm:$0x1]
      %2551 = vset.pattern.permute.xlu0 109
      %2552 = vperm.xlu0 %2551, %v37
      %v2553 = vpop.permute.xlu0 %2552
      %2555 = vset.pattern.permute.xlu0 109
      %2556 = vperm.xlu0 %2555, %v38
      %v2557 = vpop.permute.xlu0 %2556
      %2559 = vset.pattern.permute.xlu0 109
      %2560 = vperm.xlu0 %2559, %v39
      %v2561 = vpop.permute.xlu0 %2560
      %v2563 = vperm.slane %v2550, 0
      %v2564 = vsub.f32 %v2553, %v2563
      %v2565 = vsub.f32 %v2557, %v2563
      %v2566 = vsub.f32 %v2561, %v2563
      %v2567 = vand.u32 2147483647, %v2564
      %v2568 = vand.u32 2147483647, %v2565
      %v2569 = vand.u32 2147483647, %v2566
      %v2570 = vadd.f32 %v2524, %v2567
      %v2571 = vadd.f32 %v2525, %v2568
      %v2572 = vadd.f32 %v2526, %v2569
      %v2573 = vld [vmem:[%s1 + $0x6e] sm:$0x1]
      %2574 = vset.pattern.permute.xlu0 110
      %2575 = vperm.xlu0 %2574, %v37
      %v2576 = vpop.permute.xlu0 %2575
      %2578 = vset.pattern.permute.xlu0 110
      %2579 = vperm.xlu0 %2578, %v38
      %v2580 = vpop.permute.xlu0 %2579
      %2582 = vset.pattern.permute.xlu0 110
      %2583 = vperm.xlu0 %2582, %v39
      %v2584 = vpop.permute.xlu0 %2583
      %v2586 = vperm.slane %v2573, 0
      %v2587 = vsub.f32 %v2576, %v2586
      %v2588 = vsub.f32 %v2580, %v2586
      %v2589 = vsub.f32 %v2584, %v2586
      %v2590 = vand.u32 2147483647, %v2587
      %v2591 = vand.u32 2147483647, %v2588
      %v2592 = vand.u32 2147483647, %v2589
      %v2593 = vadd.f32 %v2547, %v2590
      %v2594 = vadd.f32 %v2548, %v2591
      %v2595 = vadd.f32 %v2549, %v2592
      %v2596 = vld [vmem:[%s1 + $0x6f] sm:$0x1]
      %2597 = vset.pattern.permute.xlu0 111
      %2598 = vperm.xlu0 %2597, %v37
      %v2599 = vpop.permute.xlu0 %2598
      %2601 = vset.pattern.permute.xlu0 111
      %2602 = vperm.xlu0 %2601, %v38
      %v2603 = vpop.permute.xlu0 %2602
      %2605 = vset.pattern.permute.xlu0 111
      %2606 = vperm.xlu0 %2605, %v39
      %v2607 = vpop.permute.xlu0 %2606
      %v2609 = vperm.slane %v2596, 0
      %v2610 = vsub.f32 %v2599, %v2609
      %v2611 = vsub.f32 %v2603, %v2609
      %v2612 = vsub.f32 %v2607, %v2609
      %v2613 = vand.u32 2147483647, %v2610
      %v2614 = vand.u32 2147483647, %v2611
      %v2615 = vand.u32 2147483647, %v2612
      %v2616 = vadd.f32 %v2570, %v2613
      %v2617 = vadd.f32 %v2571, %v2614
      %v2618 = vadd.f32 %v2572, %v2615
      %v2619 = vld [vmem:[%s1 + $0x70] sm:$0x1]
      %2620 = vset.pattern.permute.xlu0 112
      %2621 = vperm.xlu0 %2620, %v37
      %v2622 = vpop.permute.xlu0 %2621
      %2624 = vset.pattern.permute.xlu0 112
      %2625 = vperm.xlu0 %2624, %v38
      %v2626 = vpop.permute.xlu0 %2625
      %2628 = vset.pattern.permute.xlu0 112
      %2629 = vperm.xlu0 %2628, %v39
      %v2630 = vpop.permute.xlu0 %2629
      %v2632 = vperm.slane %v2619, 0
      %v2633 = vsub.f32 %v2622, %v2632
      %v2634 = vsub.f32 %v2626, %v2632
      %v2635 = vsub.f32 %v2630, %v2632
      %v2636 = vand.u32 2147483647, %v2633
      %v2637 = vand.u32 2147483647, %v2634
      %v2638 = vand.u32 2147483647, %v2635
      %v2639 = vadd.f32 %v2593, %v2636
      %v2640 = vadd.f32 %v2594, %v2637
      %v2641 = vadd.f32 %v2595, %v2638
      %v2642 = vld [vmem:[%s1 + $0x71] sm:$0x1]
      %2643 = vset.pattern.permute.xlu0 113
      %2644 = vperm.xlu0 %2643, %v37
      %v2645 = vpop.permute.xlu0 %2644
      %2647 = vset.pattern.permute.xlu0 113
      %2648 = vperm.xlu0 %2647, %v38
      %v2649 = vpop.permute.xlu0 %2648
      %2651 = vset.pattern.permute.xlu0 113
      %2652 = vperm.xlu0 %2651, %v39
      %v2653 = vpop.permute.xlu0 %2652
      %v2655 = vperm.slane %v2642, 0
      %v2656 = vsub.f32 %v2645, %v2655
      %v2657 = vsub.f32 %v2649, %v2655
      %v2658 = vsub.f32 %v2653, %v2655
      %v2659 = vand.u32 2147483647, %v2656
      %v2660 = vand.u32 2147483647, %v2657
      %v2661 = vand.u32 2147483647, %v2658
      %v2662 = vadd.f32 %v2616, %v2659
      %v2663 = vadd.f32 %v2617, %v2660
      %v2664 = vadd.f32 %v2618, %v2661
      %v2665 = vld [vmem:[%s1 + $0x72] sm:$0x1]
      %2666 = vset.pattern.permute.xlu0 114
      %2667 = vperm.xlu0 %2666, %v37
      %v2668 = vpop.permute.xlu0 %2667
      %2670 = vset.pattern.permute.xlu0 114
      %2671 = vperm.xlu0 %2670, %v38
      %v2672 = vpop.permute.xlu0 %2671
      %2674 = vset.pattern.permute.xlu0 114
      %2675 = vperm.xlu0 %2674, %v39
      %v2676 = vpop.permute.xlu0 %2675
      %v2678 = vperm.slane %v2665, 0
      %v2679 = vsub.f32 %v2668, %v2678
      %v2680 = vsub.f32 %v2672, %v2678
      %v2681 = vsub.f32 %v2676, %v2678
      %v2682 = vand.u32 2147483647, %v2679
      %v2683 = vand.u32 2147483647, %v2680
      %v2684 = vand.u32 2147483647, %v2681
      %v2685 = vadd.f32 %v2639, %v2682
      %v2686 = vadd.f32 %v2640, %v2683
      %v2687 = vadd.f32 %v2641, %v2684
      %v2688 = vld [vmem:[%s1 + $0x73] sm:$0x1]
      %2689 = vset.pattern.permute.xlu0 115
      %2690 = vperm.xlu0 %2689, %v37
      %v2691 = vpop.permute.xlu0 %2690
      %2693 = vset.pattern.permute.xlu0 115
      %2694 = vperm.xlu0 %2693, %v38
      %v2695 = vpop.permute.xlu0 %2694
      %2697 = vset.pattern.permute.xlu0 115
      %2698 = vperm.xlu0 %2697, %v39
      %v2699 = vpop.permute.xlu0 %2698
      %v2701 = vperm.slane %v2688, 0
      %v2702 = vsub.f32 %v2691, %v2701
      %v2703 = vsub.f32 %v2695, %v2701
      %v2704 = vsub.f32 %v2699, %v2701
      %v2705 = vand.u32 2147483647, %v2702
      %v2706 = vand.u32 2147483647, %v2703
      %v2707 = vand.u32 2147483647, %v2704
      %v2708 = vadd.f32 %v2662, %v2705
      %v2709 = vadd.f32 %v2663, %v2706
      %v2710 = vadd.f32 %v2664, %v2707
      %v2711 = vld [vmem:[%s1 + $0x74] sm:$0x1]
      %2712 = vset.pattern.permute.xlu0 116
      %2713 = vperm.xlu0 %2712, %v37
      %v2714 = vpop.permute.xlu0 %2713
      %2716 = vset.pattern.permute.xlu0 116
      %2717 = vperm.xlu0 %2716, %v38
      %v2718 = vpop.permute.xlu0 %2717
      %2720 = vset.pattern.permute.xlu0 116
      %2721 = vperm.xlu0 %2720, %v39
      %v2722 = vpop.permute.xlu0 %2721
      %v2724 = vperm.slane %v2711, 0
      %v2725 = vsub.f32 %v2714, %v2724
      %v2726 = vsub.f32 %v2718, %v2724
      %v2727 = vsub.f32 %v2722, %v2724
      %v2728 = vand.u32 2147483647, %v2725
      %v2729 = vand.u32 2147483647, %v2726
      %v2730 = vand.u32 2147483647, %v2727
      %v2731 = vadd.f32 %v2685, %v2728
      %v2732 = vadd.f32 %v2686, %v2729
      %v2733 = vadd.f32 %v2687, %v2730
      %v2734 = vld [vmem:[%s1 + $0x75] sm:$0x1]
      %2735 = vset.pattern.permute.xlu0 117
      %2736 = vperm.xlu0 %2735, %v37
      %v2737 = vpop.permute.xlu0 %2736
      %2739 = vset.pattern.permute.xlu0 117
      %2740 = vperm.xlu0 %2739, %v38
      %v2741 = vpop.permute.xlu0 %2740
      %2743 = vset.pattern.permute.xlu0 117
      %2744 = vperm.xlu0 %2743, %v39
      %v2745 = vpop.permute.xlu0 %2744
      %v2747 = vperm.slane %v2734, 0
      %v2748 = vsub.f32 %v2737, %v2747
      %v2749 = vsub.f32 %v2741, %v2747
      %v2750 = vsub.f32 %v2745, %v2747
      %v2751 = vand.u32 2147483647, %v2748
      %v2752 = vand.u32 2147483647, %v2749
      %v2753 = vand.u32 2147483647, %v2750
      %v2754 = vadd.f32 %v2708, %v2751
      %v2755 = vadd.f32 %v2709, %v2752
      %v2756 = vadd.f32 %v2710, %v2753
      %v2757 = vld [vmem:[%s1 + $0x76] sm:$0x1]
      %2758 = vset.pattern.permute.xlu0 118
      %2759 = vperm.xlu0 %2758, %v37
      %v2760 = vpop.permute.xlu0 %2759
      %2762 = vset.pattern.permute.xlu0 118
      %2763 = vperm.xlu0 %2762, %v38
      %v2764 = vpop.permute.xlu0 %2763
      %2766 = vset.pattern.permute.xlu0 118
      %2767 = vperm.xlu0 %2766, %v39
      %v2768 = vpop.permute.xlu0 %2767
      %v2770 = vperm.slane %v2757, 0
      %v2771 = vsub.f32 %v2760, %v2770
      %v2772 = vsub.f32 %v2764, %v2770
      %v2773 = vsub.f32 %v2768, %v2770
      %v2774 = vand.u32 2147483647, %v2771
      %v2775 = vand.u32 2147483647, %v2772
      %v2776 = vand.u32 2147483647, %v2773
      %v2777 = vadd.f32 %v2731, %v2774
      %v2778 = vadd.f32 %v2732, %v2775
      %v2779 = vadd.f32 %v2733, %v2776
      %v2780 = vld [vmem:[%s1 + $0x77] sm:$0x1]
      %2781 = vset.pattern.permute.xlu0 119
      %2782 = vperm.xlu0 %2781, %v37
      %v2783 = vpop.permute.xlu0 %2782
      %2785 = vset.pattern.permute.xlu0 119
      %2786 = vperm.xlu0 %2785, %v38
      %v2787 = vpop.permute.xlu0 %2786
      %2789 = vset.pattern.permute.xlu0 119
      %2790 = vperm.xlu0 %2789, %v39
      %v2791 = vpop.permute.xlu0 %2790
      %v2793 = vperm.slane %v2780, 0
      %v2794 = vsub.f32 %v2783, %v2793
      %v2795 = vsub.f32 %v2787, %v2793
      %v2796 = vsub.f32 %v2791, %v2793
      %v2797 = vand.u32 2147483647, %v2794
      %v2798 = vand.u32 2147483647, %v2795
      %v2799 = vand.u32 2147483647, %v2796
      %v2800 = vadd.f32 %v2754, %v2797
      %v2801 = vadd.f32 %v2755, %v2798
      %v2802 = vadd.f32 %v2756, %v2799
      %v2803 = vld [vmem:[%s1 + $0x78] sm:$0x1]
      %2804 = vset.pattern.permute.xlu0 120
      %2805 = vperm.xlu0 %2804, %v37
      %v2806 = vpop.permute.xlu0 %2805
      %2808 = vset.pattern.permute.xlu0 120
      %2809 = vperm.xlu0 %2808, %v38
      %v2810 = vpop.permute.xlu0 %2809
      %2812 = vset.pattern.permute.xlu0 120
      %2813 = vperm.xlu0 %2812, %v39
      %v2814 = vpop.permute.xlu0 %2813
      %v2816 = vperm.slane %v2803, 0
      %v2817 = vsub.f32 %v2806, %v2816
      %v2818 = vsub.f32 %v2810, %v2816
      %v2819 = vsub.f32 %v2814, %v2816
      %v2820 = vand.u32 2147483647, %v2817
      %v2821 = vand.u32 2147483647, %v2818
      %v2822 = vand.u32 2147483647, %v2819
      %v2823 = vadd.f32 %v2777, %v2820
      %v2824 = vadd.f32 %v2778, %v2821
      %v2825 = vadd.f32 %v2779, %v2822
      %v2826 = vld [vmem:[%s1 + $0x79] sm:$0x1]
      %2827 = vset.pattern.permute.xlu0 121
      %2828 = vperm.xlu0 %2827, %v37
      %v2829 = vpop.permute.xlu0 %2828
      %2831 = vset.pattern.permute.xlu0 121
      %2832 = vperm.xlu0 %2831, %v38
      %v2833 = vpop.permute.xlu0 %2832
      %2835 = vset.pattern.permute.xlu0 121
      %2836 = vperm.xlu0 %2835, %v39
      %v2837 = vpop.permute.xlu0 %2836
      %v2839 = vperm.slane %v2826, 0
      %v2840 = vsub.f32 %v2829, %v2839
      %v2841 = vsub.f32 %v2833, %v2839
      %v2842 = vsub.f32 %v2837, %v2839
      %v2843 = vand.u32 2147483647, %v2840
      %v2844 = vand.u32 2147483647, %v2841
      %v2845 = vand.u32 2147483647, %v2842
      %v2846 = vadd.f32 %v2800, %v2843
      %v2847 = vadd.f32 %v2801, %v2844
      %v2848 = vadd.f32 %v2802, %v2845
      %v2849 = vld [vmem:[%s1 + $0x7a] sm:$0x1]
      %2850 = vset.pattern.permute.xlu0 122
      %2851 = vperm.xlu0 %2850, %v37
      %v2852 = vpop.permute.xlu0 %2851
      %2854 = vset.pattern.permute.xlu0 122
      %2855 = vperm.xlu0 %2854, %v38
      %v2856 = vpop.permute.xlu0 %2855
      %2858 = vset.pattern.permute.xlu0 122
      %2859 = vperm.xlu0 %2858, %v39
      %v2860 = vpop.permute.xlu0 %2859
      %v2862 = vperm.slane %v2849, 0
      %v2863 = vsub.f32 %v2852, %v2862
      %v2864 = vsub.f32 %v2856, %v2862
      %v2865 = vsub.f32 %v2860, %v2862
      %v2866 = vand.u32 2147483647, %v2863
      %v2867 = vand.u32 2147483647, %v2864
      %v2868 = vand.u32 2147483647, %v2865
      %v2869 = vadd.f32 %v2823, %v2866
      %v2870 = vadd.f32 %v2824, %v2867
      %v2871 = vadd.f32 %v2825, %v2868
      %v2872 = vld [vmem:[%s1 + $0x7b] sm:$0x1]
      %2873 = vset.pattern.permute.xlu0 123
      %2874 = vperm.xlu0 %2873, %v37
      %v2875 = vpop.permute.xlu0 %2874
      %2877 = vset.pattern.permute.xlu0 123
      %2878 = vperm.xlu0 %2877, %v38
      %v2879 = vpop.permute.xlu0 %2878
      %2881 = vset.pattern.permute.xlu0 123
      %2882 = vperm.xlu0 %2881, %v39
      %v2883 = vpop.permute.xlu0 %2882
      %v2885 = vperm.slane %v2872, 0
      %v2886 = vsub.f32 %v2875, %v2885
      %v2887 = vsub.f32 %v2879, %v2885
      %v2888 = vsub.f32 %v2883, %v2885
      %v2889 = vand.u32 2147483647, %v2886
      %v2890 = vand.u32 2147483647, %v2887
      %v2891 = vand.u32 2147483647, %v2888
      %v2892 = vadd.f32 %v2846, %v2889
      %v2893 = vadd.f32 %v2847, %v2890
      %v2894 = vadd.f32 %v2848, %v2891
      %v2895 = vld [vmem:[%s1 + $0x7c] sm:$0x1]
      %2896 = vset.pattern.permute.xlu0 124
      %2897 = vperm.xlu0 %2896, %v37
      %v2898 = vpop.permute.xlu0 %2897
      %2900 = vset.pattern.permute.xlu0 124
      %2901 = vperm.xlu0 %2900, %v38
      %v2902 = vpop.permute.xlu0 %2901
      %2904 = vset.pattern.permute.xlu0 124
      %2905 = vperm.xlu0 %2904, %v39
      %v2906 = vpop.permute.xlu0 %2905
      %v2908 = vperm.slane %v2895, 0
      %v2909 = vsub.f32 %v2898, %v2908
      %v2910 = vsub.f32 %v2902, %v2908
      %v2911 = vsub.f32 %v2906, %v2908
      %v2912 = vand.u32 2147483647, %v2909
      %v2913 = vand.u32 2147483647, %v2910
      %v2914 = vand.u32 2147483647, %v2911
      %v2915 = vadd.f32 %v2869, %v2912
      %v2916 = vadd.f32 %v2870, %v2913
      %v2917 = vadd.f32 %v2871, %v2914
      %v2918 = vld [vmem:[%s1 + $0x7d] sm:$0x1]
      %2919 = vset.pattern.permute.xlu0 125
      %2920 = vperm.xlu0 %2919, %v37
      %v2921 = vpop.permute.xlu0 %2920
      %2923 = vset.pattern.permute.xlu0 125
      %2924 = vperm.xlu0 %2923, %v38
      %v2925 = vpop.permute.xlu0 %2924
      %2927 = vset.pattern.permute.xlu0 125
      %2928 = vperm.xlu0 %2927, %v39
      %v2929 = vpop.permute.xlu0 %2928
      %v2931 = vperm.slane %v2918, 0
      %v2932 = vsub.f32 %v2921, %v2931
      %v2933 = vsub.f32 %v2925, %v2931
      %v2934 = vsub.f32 %v2929, %v2931
      %v2935 = vand.u32 2147483647, %v2932
      %v2936 = vand.u32 2147483647, %v2933
      %v2937 = vand.u32 2147483647, %v2934
      %v2938 = vadd.f32 %v2892, %v2935
      %v2939 = vadd.f32 %v2893, %v2936
      %v2940 = vadd.f32 %v2894, %v2937
      %v2941 = vld [vmem:[%s1 + $0x7e] sm:$0x1]
      %2942 = vset.pattern.permute.xlu0 126
      %2943 = vperm.xlu0 %2942, %v37
      %v2944 = vpop.permute.xlu0 %2943
      %2946 = vset.pattern.permute.xlu0 126
      %2947 = vperm.xlu0 %2946, %v38
      %v2948 = vpop.permute.xlu0 %2947
      %2950 = vset.pattern.permute.xlu0 126
      %2951 = vperm.xlu0 %2950, %v39
      %v2952 = vpop.permute.xlu0 %2951
      %v2954 = vperm.slane %v2941, 0
      %v2955 = vsub.f32 %v2944, %v2954
      %v2956 = vsub.f32 %v2948, %v2954
      %v2957 = vsub.f32 %v2952, %v2954
      %v2958 = vand.u32 2147483647, %v2955
      %v2959 = vand.u32 2147483647, %v2956
      %v2960 = vand.u32 2147483647, %v2957
      %v2961 = vadd.f32 %v2915, %v2958
      %v2962 = vadd.f32 %v2916, %v2959
      %v2963 = vadd.f32 %v2917, %v2960
      %v2964 = vld [vmem:[%s1 + $0x7f] sm:$0x1]
      %2965 = vset.pattern.permute.xlu0 127
      %2966 = vperm.xlu0 %2965, %v37
      %v2967 = vpop.permute.xlu0 %2966
      %2969 = vset.pattern.permute.xlu0 127
      %2970 = vperm.xlu0 %2969, %v38
      %v2971 = vpop.permute.xlu0 %2970
      %2973 = vset.pattern.permute.xlu0 127
      %2974 = vperm.xlu0 %2973, %v39
      %v2975 = vpop.permute.xlu0 %2974
      %v2977 = vperm.slane %v2964, 0
      %v2978 = vsub.f32 %v2967, %v2977
      %v2979 = vsub.f32 %v2971, %v2977
      %v2980 = vsub.f32 %v2975, %v2977
      %v2981 = vand.u32 2147483647, %v2978
      %v2982 = vand.u32 2147483647, %v2979
      %v2983 = vand.u32 2147483647, %v2980
      %v2984 = vadd.f32 %v2938, %v2981
      %v2985 = vadd.f32 %v2939, %v2982
      %v2986 = vadd.f32 %v2940, %v2983
      %v2987 = vadd.f32 %v2961, %v2984
      %v2988 = vadd.f32 %v2962, %v2985
      %v2989 = vadd.f32 %v2963, %v2986
      %s2990 = scalar_lea.vmem [#allocation2], %s35
      %v2991 = vld [vmem:[%s2990] sm:$0xff]
      %v2992 = vld [vmem:[%s2990 + $0x8] sm:$0xff]
      %v2993 = vld [vmem:[%s2990 + $0x10] sm:$0xff]
      %v2994 = vadd.f32 %v2991, %v2987
      %v2995 = vadd.f32 %v2992, %v2988
      %v2996 = vadd.f32 %v2993, %v2989
      %vm2997 = vcmask 523264
      %2998 = vst.msk [vmem:[%s2990] sm:$0xff] %vm2997, %v2994
      %2999 = vst.msk [vmem:[%s2990 + $0x8] sm:$0xff] %vm2997, %v2995
      %3000 = vst.msk [vmem:[%s2990 + $0x10] sm:$0xff] %vm2997, %v2996
    $region26: #{tpu_custom_call.1} parent=1 // loop_footer
      %s34 = sadd.s32 1, %s30
    $region27: #{tpu_custom_call.1} parent=1 // loop_footer_branch
      %29 = sbr.rel target = $region23
    $region28: #{tpu_custom_call.1} parent=1 // loop_exit
      _
    // Predicated region
    $region29: #{tpu_custom_call.1} parent=1 // pred_check
      %p3001 = pneg %p18
    $region30: #{tpu_custom_call.1} parent=1 // pred_check_branch
      %3003 = sbr.rel (%p3001) target = $region32
    $region31: #{tpu_custom_call.1} parent=1 // pred_region
      %v3004 = vld [vmem:[#allocation2] sm:$0xff]
      %v3005 = vld [vmem:[#allocation2 + $0x8] sm:$0xff]
      %v3006 = vld [vmem:[#allocation2 + $0x10] sm:$0xff]
      %v3007 = vld [vmem:[#allocation2 + $0x18] sm:$0xff]
      %v3008 = vld [vmem:[#allocation2 + $0x20] sm:$0xff]
      %v3009 = vld [vmem:[#allocation2 + $0x28] sm:$0xff]
      %v3010 = vsub.f32 0.0, %v3004
      %v3011 = vsub.f32 0.0, %v3005
      %v3012 = vsub.f32 0.0, %v3006
      %v3013 = vsub.f32 0.0, %v3007
      %v3014 = vsub.f32 0.0, %v3008
      %v3015 = vsub.f32 0.0, %v3009
      %vm3016 = vcmask 523264
      %3017 = vst.msk [vmem:[#allocation2] sm:$0xff] %vm3016, %v3010
      %3018 = vst.msk [vmem:[#allocation2 + $0x8] sm:$0xff] %vm3016, %v3011
      %3019 = vst.msk [vmem:[#allocation2 + $0x10] sm:$0xff] %vm3016, %v3012
      %3020 = vst.msk [vmem:[#allocation2 + $0x18] sm:$0xff] %vm3016, %v3013
      %3021 = vst.msk [vmem:[#allocation2 + $0x20] sm:$0xff] %vm3016, %v3014
      %3022 = vst.msk [vmem:[#allocation2 + $0x28] sm:$0xff] %vm3016, %v3015
    $region32: #{tpu_custom_call.1} parent=1 // pred_fallthru
      _
    // Predicated region
    $region33: #{tpu_custom_call.1} parent=1 // pred_check
      _
    $region34: #{tpu_custom_call.1} parent=1 // pred_check_branch
      %3024 = sbr.rel (0) target = $region36
    $region35: #{tpu_custom_call.1} parent=1 // pred_region
      %3026 = vsyncadd [#allocation3], 0
      %s3027 = sshll.u32 [#allocation2], 4
      %s3028 = int_to_ptr.vmem [resolvable:$true] %s3027
      %s3029 = sshll.u32 %s4, 4
      %s3030 = int_to_ptr.hbm [resolvable:$true] %s3029
      %3035 = dma.vmem_to_hbm [thread:$0]  %s3028, 768, %s3030, [#allocation3], 128, 128, 8
    $region36: #{tpu_custom_call.1} parent=1 // pred_fallthru
      _
    // Predicated region
    $region37: #{tpu_custom_call.1} parent=1 // pred_check
      _
    $region38: #{tpu_custom_call.1} parent=1 // pred_check_branch
      %3037 = sbr.rel (0) target = $region40
    $region39: #{tpu_custom_call.1} parent=1 // pred_region
      %3039 = dma.done [#allocation3], 768
    $region40: #{tpu_custom_call.1} parent=1 // pred_fallthru
      _
    %3040 = vsyncpa [#allocation3], 1

</llo_original>
